<compile_context>
chip_gen: v6e
topology: v6e:2x2x1
jax: 0.10.0
libtpu: 0.0.40
codegen_flags: <defaults>
</compile_context>

<pallas_src>
import numpy as np

import jax
import jax.numpy as jnp
from jax.experimental import pallas as pl
from jax.experimental.pallas import tpu as pltpu


# ----------------------------------------------------------------------------
# LeNet geometry (fixed by the PyTorch module)
# ----------------------------------------------------------------------------
_HP1, _WP1 = 32, 32            # conv1 input, spatially padded by 2
_HO1, _WO1, _O1 = 28, 28, 6    # conv1 output
_H2, _W2, _C2 = 14, 14, 6      # pool1 output / conv2 input
_HO2, _WO2, _O2 = 10, 10, 16   # conv2 output
_HP3, _WP3 = 5, 5              # pool2 output spatial
_FC1, _FC2, _NCLS = 120, 84, 10
_NPAD = 128                    # lane-dense padded logits width
_KH = 5


# ----------------------------------------------------------------------------
# One-time host-side weight re-layouts
# ----------------------------------------------------------------------------
def _banded_conv_weight(w, wp, wo):
    """w: [O, C, KH, KW] (PyTorch) -> [KH, wp*C, wo*O] banded matrices so that
    conv(x)[ho, wo*O+o] = sum_i x[ho+i, :] @ out[i]."""
    O, C, KH, KW = w.shape
    m = np.zeros((KH, wp * C, wo * O), np.float32)
    for i in range(KH):
        for j in range(KW):
            wij = w[:, :, i, j].T                     # [C, O]
            for woi in range(wo):
                m[i, (woi + j) * C:(woi + j + 1) * C,
                  woi * O:(woi + 1) * O] = wij
    return m


def _pool_h_matrix(hi):
    """[hi//2, hi]: left-multiply to average row pairs."""
    m = np.zeros((hi // 2, hi), np.float32)
    for h in range(hi):
        m[h // 2, h] = 0.5
    return m


def _pool_w_matrix(wi, c):
    """[wi*c, (wi//2)*c]: right-multiply to average column pairs in the
    interleaved (W*C) lane layout, per channel."""
    m = np.zeros((wi * c, (wi // 2) * c), np.float32)
    for w in range(wi):
        for ci in range(c):
            m[w * c + ci, (w // 2) * c + ci] = 0.5
    return m


def prepare_params(params):
    """One-time transform of PyTorch-layout params into kernel-ready operands
    (banded conv weights, pooling matrices, permuted & lane-padded FC weights).
    Matmul operands go to bf16; biases stay f32."""
    w1 = np.asarray(params['conv1_w'], np.float32)
    b1 = np.asarray(params['conv1_b'], np.float32)
    w2 = np.asarray(params['conv2_w'], np.float32)
    b2 = np.asarray(params['conv2_b'], np.float32)
    wf1 = np.asarray(params['fc1_w'], np.float32)    # [400,120], rows c*25+h*5+w
    bf1 = np.asarray(params['fc1_b'], np.float32)
    wf2 = np.asarray(params['fc2_w'], np.float32)    # [120,84]
    bf2 = np.asarray(params['fc2_b'], np.float32)
    wf3 = np.asarray(params['fc3_w'], np.float32)    # [84,10]
    bf3 = np.asarray(params['fc3_b'], np.float32)

    # fc1 rows: PyTorch flatten order (c,h,w) -> our (h, w*16+c) layout.
    wf1_k = wf1.reshape(_O2, _HP3, _WP3, _FC1).transpose(1, 2, 0, 3)
    wf1_k = wf1_k.reshape(_HP3, _WP3 * _O2, _FC1)    # [5, 80, 120]

    # fc3 padded to 128 output lanes (sliced back to 10 outside the kernel).
    wf3_pad = np.zeros((_FC2, _NPAD), np.float32)
    wf3_pad[:, :_NCLS] = wf3
    bf3_pad = np.zeros((1, _NPAD), np.float32)
    bf3_pad[0, :_NCLS] = bf3

    to_bf16 = lambda a: jnp.asarray(a, jnp.bfloat16)
    to_f32 = lambda a: jnp.asarray(a, jnp.float32)
    return {
        'w1': to_bf16(_banded_conv_weight(w1, _WP1, _WO1)),   # [5, 32, 168]
        'b1': to_f32(np.tile(b1, _WO1)[None, :]),             # [1, 168]
        'ah1': to_f32(_pool_h_matrix(_HO1)),                  # [14, 28]
        'aw1': to_f32(_pool_w_matrix(_WO1, _O1)),             # [168, 84]
        'w2': to_bf16(_banded_conv_weight(w2, _W2, _WO2)),    # [5, 84, 160]
        'b2': to_f32(np.tile(b2, _WO2)[None, :]),             # [1, 160]
        'ah2': to_f32(_pool_h_matrix(_HO2)),                  # [5, 10]
        'aw2': to_f32(_pool_w_matrix(_WO2, _O2)),             # [160, 80]
        'wf1': to_bf16(wf1_k),                                # [5, 80, 120]
        'bf1': to_f32(bf1[None, :]),                          # [1, 120]
        'wf2': to_bf16(wf2),                                  # [120, 84]
        'bf2': to_f32(bf2[None, :]),                          # [1, 84]
        'wf3': to_bf16(wf3_pad),                              # [84, 128]
        'bf3': to_f32(bf3_pad),                               # [1, 128]
    }


# ----------------------------------------------------------------------------
# The fused kernel
# ----------------------------------------------------------------------------
def _lenet_kernel(x_ref, w1_ref, b1_ref, ah1_ref, aw1_ref,
                  w2_ref, b2_ref, ah2_ref, aw2_ref,
                  wf1_ref, bf1_ref, wf2_ref, bf2_ref, wf3_ref, bf3_ref,
                  out_ref):
    f32, bf16 = jnp.float32, jnp.bfloat16
    batch = x_ref.shape[0]
    for b in range(batch):                                   # static unroll (B=2)
        xb = x_ref[b]                                        # [32, 32] f32
        # conv1 (5x5, pad 2) as 5 banded matmuls over kernel rows, + ReLU.
        acc1 = jnp.zeros((_HO1, _WO1 * _O1), f32)            # [28, 168]
        for i in range(_KH):
            acc1 = acc1 + jnp.dot(xb[i:i + _HO1, :].astype(bf16), w1_ref[i],
                                  preferred_element_type=f32)
        a1 = jnp.maximum(acc1 + b1_ref[...], 0.0)            # [28, 168]
        # 2x2 avg pool (H then interleaved W/channel), exact in f32.
        p1 = jnp.dot(jnp.dot(ah1_ref[...], a1, preferred_element_type=f32),
                     aw1_ref[...], preferred_element_type=f32)   # [14, 84]
        # conv2 (5x5, valid) + ReLU.
        acc2 = jnp.zeros((_HO2, _WO2 * _O2), f32)            # [10, 160]
        for i in range(_KH):
            acc2 = acc2 + jnp.dot(p1[i:i + _HO2, :].astype(bf16), w2_ref[i],
                                  preferred_element_type=f32)
        a2 = jnp.maximum(acc2 + b2_ref[...], 0.0)            # [10, 160]
        # 2x2 avg pool.
        p2 = jnp.dot(ah2_ref[...],
                     jnp.dot(a2, aw2_ref[...], preferred_element_type=f32),
                     preferred_element_type=f32)             # [5, 80]
        # fc1 (+ReLU): contract the flattened [5, 80] row-by-row; PyTorch's
        # .view(-1, 400) order is already absorbed into wf1.
        accf = jnp.zeros((1, _FC1), f32)
        for h in range(_HP3):
            accf = accf + jnp.dot(p2[h:h + 1, :].astype(bf16), wf1_ref[h],
                                  preferred_element_type=f32)
        h1 = jnp.maximum(accf + bf1_ref[...], 0.0)           # [1, 120]
        # fc2 (+ReLU), fc3 (lane-padded to 128).
        h2 = jnp.maximum(jnp.dot(h1.astype(bf16), wf2_ref[...],
                                 preferred_element_type=f32) + bf2_ref[...],
                         0.0)                                # [1, 84]
        logits = jnp.dot(h2.astype(bf16), wf3_ref[...],
                         preferred_element_type=f32) + bf3_ref[...]   # [1, 128]
        out_ref[b:b + 1, :] = logits


# ----------------------------------------------------------------------------
# Wrapper
# ----------------------------------------------------------------------------
def lenet_forward(prepped, x):
    # x: [B, 1, 28, 28] f32 (NCHW, matches the PyTorch module).
    batch = x.shape[0]
    x_pad = jnp.pad(x[:, 0], ((0, 0), (2, 2), (2, 2)))       # [B, 32, 32]
    args = (x_pad,
            prepped['w1'], prepped['b1'], prepped['ah1'], prepped['aw1'],
            prepped['w2'], prepped['b2'], prepped['ah2'], prepped['aw2'],
            prepped['wf1'], prepped['bf1'], prepped['wf2'], prepped['bf2'],
            prepped['wf3'], prepped['bf3'])

    def full_spec(a):
        nd = a.ndim
        return pl.BlockSpec(tuple(a.shape), lambda i, _nd=nd: (0,) * _nd)

    out = pl.pallas_call(
        _lenet_kernel,
        out_shape=jax.ShapeDtypeStruct((batch, _NPAD), jnp.float32),
        grid=(1,),
        in_specs=[full_spec(a) for a in args],
        out_specs=pl.BlockSpec((batch, _NPAD), lambda i: (0, 0)),
        compiler_params=pltpu.CompilerParams(
            dimension_semantics=("arbitrary",)),
    )(*args)
    return out[:, :_NCLS]                                    # [B, 10]


# ----------------------------------------------------------------------------
# Parameter init (mirrors PyTorch default uniform(-1/sqrt(fan_in), ...))
# ----------------------------------------------------------------------------
def init_params(key):
    # FC weights stored as [in, out] (transposed from PyTorch [out, in]).
    def uni(k, shape, fan_in):
        bound = 1.0 / (fan_in ** 0.5)
        return jax.random.uniform(k, shape, jnp.float32, -bound, bound)

    ks = jax.random.split(key, 10)
    return {
        'conv1_w': uni(ks[0], (6, 1, 5, 5), 1 * 5 * 5),
        'conv1_b': uni(ks[1], (6,), 1 * 5 * 5),
        'conv2_w': uni(ks[2], (16, 6, 5, 5), 6 * 5 * 5),
        'conv2_b': uni(ks[3], (16,), 6 * 5 * 5),
        'fc1_w': uni(ks[4], (16 * 5 * 5, 120), 16 * 5 * 5),
        'fc1_b': uni(ks[5], (120,), 16 * 5 * 5),
        'fc2_w': uni(ks[6], (120, 84), 120),
        'fc2_b': uni(ks[7], (84,), 120),
        'fc3_w': uni(ks[8], (84, 10), 84),
        'fc3_b': uni(ks[9], (10,), 84),
    }


if __name__ == "__main__":
    key = jax.random.PRNGKey(0)
    pkey, xkey = jax.random.split(key)
    params = init_params(pkey)
    prepped = prepare_params(params)        # one-time weight re-layout
    # LeNet geometry requires 28x28 single-channel input (flatten -> 16*5*5).
    x = jax.random.normal(xkey, (2, 1, 28, 28), dtype=jnp.float32)

    fwd = jax.jit(lenet_forward)
    out = fwd(prepped, x)
    jax.block_until_ready(out)
    assert out.shape == (2, 10) and out.dtype == jnp.float32
    print("KERNEL_OK")
</pallas_src>

<mosaic_0001>
module attributes {stable_mosaic.version = 11 : i64} {
  func.func @_lenet_kernel(%arg0: i32, %arg1: memref<2x32x32xf32, #tpu.memory_space<vmem>>, %arg2: memref<5x32x168xbf16, #tpu.memory_space<vmem>>, %arg3: memref<1x168xf32, #tpu.memory_space<vmem>>, %arg4: memref<14x28xf32, #tpu.memory_space<vmem>>, %arg5: memref<168x84xf32, #tpu.memory_space<vmem>>, %arg6: memref<5x84x160xbf16, #tpu.memory_space<vmem>>, %arg7: memref<1x160xf32, #tpu.memory_space<vmem>>, %arg8: memref<5x10xf32, #tpu.memory_space<vmem>>, %arg9: memref<160x80xf32, #tpu.memory_space<vmem>>, %arg10: memref<5x80x120xbf16, #tpu.memory_space<vmem>>, %arg11: memref<1x120xf32, #tpu.memory_space<vmem>>, %arg12: memref<120x84xbf16, #tpu.memory_space<vmem>>, %arg13: memref<1x84xf32, #tpu.memory_space<vmem>>, %arg14: memref<84x128xbf16, #tpu.memory_space<vmem>>, %arg15: memref<1x128xf32, #tpu.memory_space<vmem>>, %arg16: memref<2x128xf32, #tpu.memory_space<vmem>>) attributes {dimension_semantics = [#tpu.dimension_semantics<arbitrary>], iteration_bounds = array<i64: 1>, scalar_prefetch = 0 : i64, scratch_operands = 0 : i64, tpu.core_type = #tpu.core_type<tc>, window_params = [{pipeline_mode = #tpu.pipeline_mode<synchronous>, transform_indices = @transform_0, window_bounds = array<i64: 2, 32, 32>}, {pipeline_mode = #tpu.pipeline_mode<synchronous>, transform_indices = @transform_1, window_bounds = array<i64: 5, 32, 168>}, {pipeline_mode = #tpu.pipeline_mode<synchronous>, transform_indices = @transform_2, window_bounds = array<i64: 1, 168>}, {pipeline_mode = #tpu.pipeline_mode<synchronous>, transform_indices = @transform_3, window_bounds = array<i64: 14, 28>}, {pipeline_mode = #tpu.pipeline_mode<synchronous>, transform_indices = @transform_4, window_bounds = array<i64: 168, 84>}, {pipeline_mode = #tpu.pipeline_mode<synchronous>, transform_indices = @transform_5, window_bounds = array<i64: 5, 84, 160>}, {pipeline_mode = #tpu.pipeline_mode<synchronous>, transform_indices = @transform_6, window_bounds = array<i64: 1, 160>}, {pipeline_mode = #tpu.pipeline_mode<synchronous>, transform_indices = @transform_7, window_bounds = array<i64: 5, 10>}, {pipeline_mode = #tpu.pipeline_mode<synchronous>, transform_indices = @transform_8, window_bounds = array<i64: 160, 80>}, {pipeline_mode = #tpu.pipeline_mode<synchronous>, transform_indices = @transform_9, window_bounds = array<i64: 5, 80, 120>}, {pipeline_mode = #tpu.pipeline_mode<synchronous>, transform_indices = @transform_10, window_bounds = array<i64: 1, 120>}, {pipeline_mode = #tpu.pipeline_mode<synchronous>, transform_indices = @transform_11, window_bounds = array<i64: 120, 84>}, {pipeline_mode = #tpu.pipeline_mode<synchronous>, transform_indices = @transform_12, window_bounds = array<i64: 1, 84>}, {pipeline_mode = #tpu.pipeline_mode<synchronous>, transform_indices = @transform_13, window_bounds = array<i64: 84, 128>}, {pipeline_mode = #tpu.pipeline_mode<synchronous>, transform_indices = @transform_14, window_bounds = array<i64: 1, 128>}, {pipeline_mode = #tpu.pipeline_mode<synchronous>, transform_indices = @transform_15, window_bounds = array<i64: 2, 128>}]} {
    %c0 = arith.constant 0 : index
    %c0_0 = arith.constant 0 : index
    %c0_1 = arith.constant 0 : index
    %0 = vector.load %arg1[%c0, %c0_0, %c0_1] : memref<2x32x32xf32, #tpu.memory_space<vmem>>, vector<1x32x32xf32>
    %1 = vector.shape_cast %0 : vector<1x32x32xf32> to vector<32x32xf32>
    %cst = arith.constant 0.000000e+00 : f32
    %2 = vector.broadcast %cst : f32 to vector<28x168xf32>
    %3 = vector.extract_strided_slice %1 {offsets = [0, 0], sizes = [28, 32], strides = [1, 1]} : vector<32x32xf32> to vector<28x32xf32>
    %4 = arith.truncf %3 : vector<28x32xf32> to vector<28x32xbf16>
    %c0_2 = arith.constant 0 : index
    %c0_3 = arith.constant 0 : index
    %c0_4 = arith.constant 0 : index
    %5 = vector.load %arg2[%c0_2, %c0_3, %c0_4] : memref<5x32x168xbf16, #tpu.memory_space<vmem>>, vector<1x32x168xbf16>
    %6 = vector.shape_cast %5 : vector<1x32x168xbf16> to vector<32x168xbf16>
    %cst_5 = arith.constant dense<0.000000e+00> : vector<28x168xf32>
    %7 = tpu.matmul %4, %6, %cst_5 {dimension_numbers = #tpu.dot_dimension_numbers<[1], [0], [0], [1], [0, 0, 1, 1], [], []>} : vector<28x32xbf16>, vector<32x168xbf16>, vector<28x168xf32> -> vector<28x168xf32>
    %8 = arith.addf %2, %7 : vector<28x168xf32>
    %9 = vector.extract_strided_slice %1 {offsets = [1, 0], sizes = [28, 32], strides = [1, 1]} : vector<32x32xf32> to vector<28x32xf32>
    %10 = arith.truncf %9 : vector<28x32xf32> to vector<28x32xbf16>
    %c1 = arith.constant 1 : index
    %c0_6 = arith.constant 0 : index
    %c0_7 = arith.constant 0 : index
    %11 = vector.load %arg2[%c1, %c0_6, %c0_7] : memref<5x32x168xbf16, #tpu.memory_space<vmem>>, vector<1x32x168xbf16>
    %12 = vector.shape_cast %11 : vector<1x32x168xbf16> to vector<32x168xbf16>
    %cst_8 = arith.constant dense<0.000000e+00> : vector<28x168xf32>
    %13 = tpu.matmul %10, %12, %cst_8 {dimension_numbers = #tpu.dot_dimension_numbers<[1], [0], [0], [1], [0, 0, 1, 1], [], []>} : vector<28x32xbf16>, vector<32x168xbf16>, vector<28x168xf32> -> vector<28x168xf32>
    %14 = arith.addf %8, %13 : vector<28x168xf32>
    %15 = vector.extract_strided_slice %1 {offsets = [2, 0], sizes = [28, 32], strides = [1, 1]} : vector<32x32xf32> to vector<28x32xf32>
    %16 = arith.truncf %15 : vector<28x32xf32> to vector<28x32xbf16>
    %c2 = arith.constant 2 : index
    %c0_9 = arith.constant 0 : index
    %c0_10 = arith.constant 0 : index
    %17 = vector.load %arg2[%c2, %c0_9, %c0_10] : memref<5x32x168xbf16, #tpu.memory_space<vmem>>, vector<1x32x168xbf16>
    %18 = vector.shape_cast %17 : vector<1x32x168xbf16> to vector<32x168xbf16>
    %cst_11 = arith.constant dense<0.000000e+00> : vector<28x168xf32>
    %19 = tpu.matmul %16, %18, %cst_11 {dimension_numbers = #tpu.dot_dimension_numbers<[1], [0], [0], [1], [0, 0, 1, 1], [], []>} : vector<28x32xbf16>, vector<32x168xbf16>, vector<28x168xf32> -> vector<28x168xf32>
    %20 = arith.addf %14, %19 : vector<28x168xf32>
    %21 = vector.extract_strided_slice %1 {offsets = [3, 0], sizes = [28, 32], strides = [1, 1]} : vector<32x32xf32> to vector<28x32xf32>
    %22 = arith.truncf %21 : vector<28x32xf32> to vector<28x32xbf16>
    %c3 = arith.constant 3 : index
    %c0_12 = arith.constant 0 : index
    %c0_13 = arith.constant 0 : index
    %23 = vector.load %arg2[%c3, %c0_12, %c0_13] : memref<5x32x168xbf16, #tpu.memory_space<vmem>>, vector<1x32x168xbf16>
    %24 = vector.shape_cast %23 : vector<1x32x168xbf16> to vector<32x168xbf16>
    %cst_14 = arith.constant dense<0.000000e+00> : vector<28x168xf32>
    %25 = tpu.matmul %22, %24, %cst_14 {dimension_numbers = #tpu.dot_dimension_numbers<[1], [0], [0], [1], [0, 0, 1, 1], [], []>} : vector<28x32xbf16>, vector<32x168xbf16>, vector<28x168xf32> -> vector<28x168xf32>
    %26 = arith.addf %20, %25 : vector<28x168xf32>
    %27 = vector.extract_strided_slice %1 {offsets = [4, 0], sizes = [28, 32], strides = [1, 1]} : vector<32x32xf32> to vector<28x32xf32>
    %28 = arith.truncf %27 : vector<28x32xf32> to vector<28x32xbf16>
    %c4 = arith.constant 4 : index
    %c0_15 = arith.constant 0 : index
    %c0_16 = arith.constant 0 : index
    %29 = vector.load %arg2[%c4, %c0_15, %c0_16] : memref<5x32x168xbf16, #tpu.memory_space<vmem>>, vector<1x32x168xbf16>
    %30 = vector.shape_cast %29 : vector<1x32x168xbf16> to vector<32x168xbf16>
    %cst_17 = arith.constant dense<0.000000e+00> : vector<28x168xf32>
    %31 = tpu.matmul %28, %30, %cst_17 {dimension_numbers = #tpu.dot_dimension_numbers<[1], [0], [0], [1], [0, 0, 1, 1], [], []>} : vector<28x32xbf16>, vector<32x168xbf16>, vector<28x168xf32> -> vector<28x168xf32>
    %32 = arith.addf %26, %31 : vector<28x168xf32>
    %c0_18 = arith.constant 0 : index
    %c0_19 = arith.constant 0 : index
    %33 = vector.load %arg3[%c0_18, %c0_19] : memref<1x168xf32, #tpu.memory_space<vmem>>, vector<1x168xf32>
    %34 = vector.broadcast %33 : vector<1x168xf32> to vector<28x168xf32>
    %35 = arith.addf %32, %34 : vector<28x168xf32>
    %cst_20 = arith.constant 0.000000e+00 : f32
    %36 = vector.broadcast %cst_20 : f32 to vector<28x168xf32>
    %37 = arith.maximumf %35, %36 : vector<28x168xf32>
    %c0_21 = arith.constant 0 : index
    %c0_22 = arith.constant 0 : index
    %38 = vector.load %arg4[%c0_21, %c0_22] : memref<14x28xf32, #tpu.memory_space<vmem>>, vector<14x28xf32>
    %cst_23 = arith.constant dense<0.000000e+00> : vector<14x168xf32>
    %39 = tpu.matmul %38, %37, %cst_23 {dimension_numbers = #tpu.dot_dimension_numbers<[1], [0], [0], [1], [0, 0, 1, 1], [], []>} : vector<14x28xf32>, vector<28x168xf32>, vector<14x168xf32> -> vector<14x168xf32>
    %c0_24 = arith.constant 0 : index
    %c0_25 = arith.constant 0 : index
    %40 = vector.load %arg5[%c0_24, %c0_25] : memref<168x84xf32, #tpu.memory_space<vmem>>, vector<168x84xf32>
    %cst_26 = arith.constant dense<0.000000e+00> : vector<14x84xf32>
    %41 = tpu.matmul %39, %40, %cst_26 {dimension_numbers = #tpu.dot_dimension_numbers<[1], [0], [0], [1], [0, 0, 1, 1], [], []>} : vector<14x168xf32>, vector<168x84xf32>, vector<14x84xf32> -> vector<14x84xf32>
    %cst_27 = arith.constant 0.000000e+00 : f32
    %42 = vector.broadcast %cst_27 : f32 to vector<10x160xf32>
    %43 = vector.extract_strided_slice %41 {offsets = [0, 0], sizes = [10, 84], strides = [1, 1]} : vector<14x84xf32> to vector<10x84xf32>
    %44 = arith.truncf %43 : vector<10x84xf32> to vector<10x84xbf16>
    %c0_28 = arith.constant 0 : index
    %c0_29 = arith.constant 0 : index
    %c0_30 = arith.constant 0 : index
    %45 = vector.load %arg6[%c0_28, %c0_29, %c0_30] : memref<5x84x160xbf16, #tpu.memory_space<vmem>>, vector<1x84x160xbf16>
    %46 = vector.shape_cast %45 : vector<1x84x160xbf16> to vector<84x160xbf16>
    %cst_31 = arith.constant dense<0.000000e+00> : vector<10x160xf32>
    %47 = tpu.matmul %44, %46, %cst_31 {dimension_numbers = #tpu.dot_dimension_numbers<[1], [0], [0], [1], [0, 0, 1, 1], [], []>} : vector<10x84xbf16>, vector<84x160xbf16>, vector<10x160xf32> -> vector<10x160xf32>
    %48 = arith.addf %42, %47 : vector<10x160xf32>
    %49 = vector.extract_strided_slice %41 {offsets = [1, 0], sizes = [10, 84], strides = [1, 1]} : vector<14x84xf32> to vector<10x84xf32>
    %50 = arith.truncf %49 : vector<10x84xf32> to vector<10x84xbf16>
    %c1_32 = arith.constant 1 : index
    %c0_33 = arith.constant 0 : index
    %c0_34 = arith.constant 0 : index
    %51 = vector.load %arg6[%c1_32, %c0_33, %c0_34] : memref<5x84x160xbf16, #tpu.memory_space<vmem>>, vector<1x84x160xbf16>
    %52 = vector.shape_cast %51 : vector<1x84x160xbf16> to vector<84x160xbf16>
    %cst_35 = arith.constant dense<0.000000e+00> : vector<10x160xf32>
    %53 = tpu.matmul %50, %52, %cst_35 {dimension_numbers = #tpu.dot_dimension_numbers<[1], [0], [0], [1], [0, 0, 1, 1], [], []>} : vector<10x84xbf16>, vector<84x160xbf16>, vector<10x160xf32> -> vector<10x160xf32>
    %54 = arith.addf %48, %53 : vector<10x160xf32>
    %55 = vector.extract_strided_slice %41 {offsets = [2, 0], sizes = [10, 84], strides = [1, 1]} : vector<14x84xf32> to vector<10x84xf32>
    %56 = arith.truncf %55 : vector<10x84xf32> to vector<10x84xbf16>
    %c2_36 = arith.constant 2 : index
    %c0_37 = arith.constant 0 : index
    %c0_38 = arith.constant 0 : index
    %57 = vector.load %arg6[%c2_36, %c0_37, %c0_38] : memref<5x84x160xbf16, #tpu.memory_space<vmem>>, vector<1x84x160xbf16>
    %58 = vector.shape_cast %57 : vector<1x84x160xbf16> to vector<84x160xbf16>
    %cst_39 = arith.constant dense<0.000000e+00> : vector<10x160xf32>
    %59 = tpu.matmul %56, %58, %cst_39 {dimension_numbers = #tpu.dot_dimension_numbers<[1], [0], [0], [1], [0, 0, 1, 1], [], []>} : vector<10x84xbf16>, vector<84x160xbf16>, vector<10x160xf32> -> vector<10x160xf32>
    %60 = arith.addf %54, %59 : vector<10x160xf32>
    %61 = vector.extract_strided_slice %41 {offsets = [3, 0], sizes = [10, 84], strides = [1, 1]} : vector<14x84xf32> to vector<10x84xf32>
    %62 = arith.truncf %61 : vector<10x84xf32> to vector<10x84xbf16>
    %c3_40 = arith.constant 3 : index
    %c0_41 = arith.constant 0 : index
    %c0_42 = arith.constant 0 : index
    %63 = vector.load %arg6[%c3_40, %c0_41, %c0_42] : memref<5x84x160xbf16, #tpu.memory_space<vmem>>, vector<1x84x160xbf16>
    %64 = vector.shape_cast %63 : vector<1x84x160xbf16> to vector<84x160xbf16>
    %cst_43 = arith.constant dense<0.000000e+00> : vector<10x160xf32>
    %65 = tpu.matmul %62, %64, %cst_43 {dimension_numbers = #tpu.dot_dimension_numbers<[1], [0], [0], [1], [0, 0, 1, 1], [], []>} : vector<10x84xbf16>, vector<84x160xbf16>, vector<10x160xf32> -> vector<10x160xf32>
    %66 = arith.addf %60, %65 : vector<10x160xf32>
    %67 = vector.extract_strided_slice %41 {offsets = [4, 0], sizes = [10, 84], strides = [1, 1]} : vector<14x84xf32> to vector<10x84xf32>
    %68 = arith.truncf %67 : vector<10x84xf32> to vector<10x84xbf16>
    %c4_44 = arith.constant 4 : index
    %c0_45 = arith.constant 0 : index
    %c0_46 = arith.constant 0 : index
    %69 = vector.load %arg6[%c4_44, %c0_45, %c0_46] : memref<5x84x160xbf16, #tpu.memory_space<vmem>>, vector<1x84x160xbf16>
    %70 = vector.shape_cast %69 : vector<1x84x160xbf16> to vector<84x160xbf16>
    %cst_47 = arith.constant dense<0.000000e+00> : vector<10x160xf32>
    %71 = tpu.matmul %68, %70, %cst_47 {dimension_numbers = #tpu.dot_dimension_numbers<[1], [0], [0], [1], [0, 0, 1, 1], [], []>} : vector<10x84xbf16>, vector<84x160xbf16>, vector<10x160xf32> -> vector<10x160xf32>
    %72 = arith.addf %66, %71 : vector<10x160xf32>
    %c0_48 = arith.constant 0 : index
    %c0_49 = arith.constant 0 : index
    %73 = vector.load %arg7[%c0_48, %c0_49] : memref<1x160xf32, #tpu.memory_space<vmem>>, vector<1x160xf32>
    %74 = vector.broadcast %73 : vector<1x160xf32> to vector<10x160xf32>
    %75 = arith.addf %72, %74 : vector<10x160xf32>
    %cst_50 = arith.constant 0.000000e+00 : f32
    %76 = vector.broadcast %cst_50 : f32 to vector<10x160xf32>
    %77 = arith.maximumf %75, %76 : vector<10x160xf32>
    %c0_51 = arith.constant 0 : index
    %c0_52 = arith.constant 0 : index
    %78 = vector.load %arg8[%c0_51, %c0_52] : memref<5x10xf32, #tpu.memory_space<vmem>>, vector<5x10xf32>
    %c0_53 = arith.constant 0 : index
    %c0_54 = arith.constant 0 : index
    %79 = vector.load %arg9[%c0_53, %c0_54] : memref<160x80xf32, #tpu.memory_space<vmem>>, vector<160x80xf32>
    %cst_55 = arith.constant dense<0.000000e+00> : vector<10x80xf32>
    %80 = tpu.matmul %77, %79, %cst_55 {dimension_numbers = #tpu.dot_dimension_numbers<[1], [0], [0], [1], [0, 0, 1, 1], [], []>} : vector<10x160xf32>, vector<160x80xf32>, vector<10x80xf32> -> vector<10x80xf32>
    %cst_56 = arith.constant dense<0.000000e+00> : vector<5x80xf32>
    %81 = tpu.matmul %78, %80, %cst_56 {dimension_numbers = #tpu.dot_dimension_numbers<[1], [0], [0], [1], [0, 0, 1, 1], [], []>} : vector<5x10xf32>, vector<10x80xf32>, vector<5x80xf32> -> vector<5x80xf32>
    %cst_57 = arith.constant 0.000000e+00 : f32
    %82 = vector.broadcast %cst_57 : f32 to vector<1x120xf32>
    %83 = vector.extract_strided_slice %81 {offsets = [0, 0], sizes = [1, 80], strides = [1, 1]} : vector<5x80xf32> to vector<1x80xf32>
    %84 = arith.truncf %83 : vector<1x80xf32> to vector<1x80xbf16>
    %c0_58 = arith.constant 0 : index
    %c0_59 = arith.constant 0 : index
    %c0_60 = arith.constant 0 : index
    %85 = vector.load %arg10[%c0_58, %c0_59, %c0_60] : memref<5x80x120xbf16, #tpu.memory_space<vmem>>, vector<1x80x120xbf16>
    %86 = vector.shape_cast %85 : vector<1x80x120xbf16> to vector<80x120xbf16>
    %cst_61 = arith.constant dense<0.000000e+00> : vector<1x120xf32>
    %87 = tpu.matmul %84, %86, %cst_61 {dimension_numbers = #tpu.dot_dimension_numbers<[1], [0], [0], [1], [0, 0, 1, 1], [], []>} : vector<1x80xbf16>, vector<80x120xbf16>, vector<1x120xf32> -> vector<1x120xf32>
    %88 = arith.addf %82, %87 : vector<1x120xf32>
    %89 = vector.extract_strided_slice %81 {offsets = [1, 0], sizes = [1, 80], strides = [1, 1]} : vector<5x80xf32> to vector<1x80xf32>
    %90 = arith.truncf %89 : vector<1x80xf32> to vector<1x80xbf16>
    %c1_62 = arith.constant 1 : index
    %c0_63 = arith.constant 0 : index
    %c0_64 = arith.constant 0 : index
    %91 = vector.load %arg10[%c1_62, %c0_63, %c0_64] : memref<5x80x120xbf16, #tpu.memory_space<vmem>>, vector<1x80x120xbf16>
    %92 = vector.shape_cast %91 : vector<1x80x120xbf16> to vector<80x120xbf16>
    %cst_65 = arith.constant dense<0.000000e+00> : vector<1x120xf32>
    %93 = tpu.matmul %90, %92, %cst_65 {dimension_numbers = #tpu.dot_dimension_numbers<[1], [0], [0], [1], [0, 0, 1, 1], [], []>} : vector<1x80xbf16>, vector<80x120xbf16>, vector<1x120xf32> -> vector<1x120xf32>
    %94 = arith.addf %88, %93 : vector<1x120xf32>
    %95 = vector.extract_strided_slice %81 {offsets = [2, 0], sizes = [1, 80], strides = [1, 1]} : vector<5x80xf32> to vector<1x80xf32>
    %96 = arith.truncf %95 : vector<1x80xf32> to vector<1x80xbf16>
    %c2_66 = arith.constant 2 : index
    %c0_67 = arith.constant 0 : index
    %c0_68 = arith.constant 0 : index
    %97 = vector.load %arg10[%c2_66, %c0_67, %c0_68] : memref<5x80x120xbf16, #tpu.memory_space<vmem>>, vector<1x80x120xbf16>
    %98 = vector.shape_cast %97 : vector<1x80x120xbf16> to vector<80x120xbf16>
    %cst_69 = arith.constant dense<0.000000e+00> : vector<1x120xf32>
    %99 = tpu.matmul %96, %98, %cst_69 {dimension_numbers = #tpu.dot_dimension_numbers<[1], [0], [0], [1], [0, 0, 1, 1], [], []>} : vector<1x80xbf16>, vector<80x120xbf16>, vector<1x120xf32> -> vector<1x120xf32>
    %100 = arith.addf %94, %99 : vector<1x120xf32>
    %101 = vector.extract_strided_slice %81 {offsets = [3, 0], sizes = [1, 80], strides = [1, 1]} : vector<5x80xf32> to vector<1x80xf32>
    %102 = arith.truncf %101 : vector<1x80xf32> to vector<1x80xbf16>
    %c3_70 = arith.constant 3 : index
    %c0_71 = arith.constant 0 : index
    %c0_72 = arith.constant 0 : index
    %103 = vector.load %arg10[%c3_70, %c0_71, %c0_72] : memref<5x80x120xbf16, #tpu.memory_space<vmem>>, vector<1x80x120xbf16>
    %104 = vector.shape_cast %103 : vector<1x80x120xbf16> to vector<80x120xbf16>
    %cst_73 = arith.constant dense<0.000000e+00> : vector<1x120xf32>
    %105 = tpu.matmul %102, %104, %cst_73 {dimension_numbers = #tpu.dot_dimension_numbers<[1], [0], [0], [1], [0, 0, 1, 1], [], []>} : vector<1x80xbf16>, vector<80x120xbf16>, vector<1x120xf32> -> vector<1x120xf32>
    %106 = arith.addf %100, %105 : vector<1x120xf32>
    %107 = vector.extract_strided_slice %81 {offsets = [4, 0], sizes = [1, 80], strides = [1, 1]} : vector<5x80xf32> to vector<1x80xf32>
    %108 = arith.truncf %107 : vector<1x80xf32> to vector<1x80xbf16>
    %c4_74 = arith.constant 4 : index
    %c0_75 = arith.constant 0 : index
    %c0_76 = arith.constant 0 : index
    %109 = vector.load %arg10[%c4_74, %c0_75, %c0_76] : memref<5x80x120xbf16, #tpu.memory_space<vmem>>, vector<1x80x120xbf16>
    %110 = vector.shape_cast %109 : vector<1x80x120xbf16> to vector<80x120xbf16>
    %cst_77 = arith.constant dense<0.000000e+00> : vector<1x120xf32>
    %111 = tpu.matmul %108, %110, %cst_77 {dimension_numbers = #tpu.dot_dimension_numbers<[1], [0], [0], [1], [0, 0, 1, 1], [], []>} : vector<1x80xbf16>, vector<80x120xbf16>, vector<1x120xf32> -> vector<1x120xf32>
    %112 = arith.addf %106, %111 : vector<1x120xf32>
    %c0_78 = arith.constant 0 : index
    %c0_79 = arith.constant 0 : index
    %113 = vector.load %arg11[%c0_78, %c0_79] : memref<1x120xf32, #tpu.memory_space<vmem>>, vector<1x120xf32>
    %114 = arith.addf %112, %113 : vector<1x120xf32>
    %cst_80 = arith.constant 0.000000e+00 : f32
    %115 = vector.broadcast %cst_80 : f32 to vector<1x120xf32>
    %116 = arith.maximumf %114, %115 : vector<1x120xf32>
    %117 = arith.truncf %116 : vector<1x120xf32> to vector<1x120xbf16>
    %c0_81 = arith.constant 0 : index
    %c0_82 = arith.constant 0 : index
    %118 = vector.load %arg12[%c0_81, %c0_82] : memref<120x84xbf16, #tpu.memory_space<vmem>>, vector<120x84xbf16>
    %cst_83 = arith.constant dense<0.000000e+00> : vector<1x84xf32>
    %119 = tpu.matmul %117, %118, %cst_83 {dimension_numbers = #tpu.dot_dimension_numbers<[1], [0], [0], [1], [0, 0, 1, 1], [], []>} : vector<1x120xbf16>, vector<120x84xbf16>, vector<1x84xf32> -> vector<1x84xf32>
    %c0_84 = arith.constant 0 : index
    %c0_85 = arith.constant 0 : index
    %120 = vector.load %arg13[%c0_84, %c0_85] : memref<1x84xf32, #tpu.memory_space<vmem>>, vector<1x84xf32>
    %121 = arith.addf %119, %120 : vector<1x84xf32>
    %cst_86 = arith.constant 0.000000e+00 : f32
    %122 = vector.broadcast %cst_86 : f32 to vector<1x84xf32>
    %123 = arith.maximumf %121, %122 : vector<1x84xf32>
    %124 = arith.truncf %123 : vector<1x84xf32> to vector<1x84xbf16>
    %c0_87 = arith.constant 0 : index
    %c0_88 = arith.constant 0 : index
    %125 = vector.load %arg14[%c0_87, %c0_88] : memref<84x128xbf16, #tpu.memory_space<vmem>>, vector<84x128xbf16>
    %cst_89 = arith.constant dense<0.000000e+00> : vector<1x128xf32>
    %126 = tpu.matmul %124, %125, %cst_89 {dimension_numbers = #tpu.dot_dimension_numbers<[1], [0], [0], [1], [0, 0, 1, 1], [], []>} : vector<1x84xbf16>, vector<84x128xbf16>, vector<1x128xf32> -> vector<1x128xf32>
    %c0_90 = arith.constant 0 : index
    %c0_91 = arith.constant 0 : index
    %127 = vector.load %arg15[%c0_90, %c0_91] : memref<1x128xf32, #tpu.memory_space<vmem>>, vector<1x128xf32>
    %128 = arith.addf %126, %127 : vector<1x128xf32>
    %c0_92 = arith.constant 0 : index
    %c0_93 = arith.constant 0 : index
    %129 = vector.load %arg16[%c0_92, %c0_93] : memref<2x128xf32, #tpu.memory_space<vmem>>, vector<1x128xf32>
    tpu.vector_store %arg16[%c0_92, %c0_93], %128 {strides = array<i32>} : memref<2x128xf32, #tpu.memory_space<vmem>>, vector<1x128xf32>,
    %c1_94 = arith.constant 1 : index
    %c0_95 = arith.constant 0 : index
    %c0_96 = arith.constant 0 : index
    %130 = vector.load %arg1[%c1_94, %c0_95, %c0_96] : memref<2x32x32xf32, #tpu.memory_space<vmem>>, vector<1x32x32xf32>
    %131 = vector.shape_cast %130 : vector<1x32x32xf32> to vector<32x32xf32>
    %cst_97 = arith.constant 0.000000e+00 : f32
    %132 = vector.broadcast %cst_97 : f32 to vector<28x168xf32>
    %133 = vector.extract_strided_slice %131 {offsets = [0, 0], sizes = [28, 32], strides = [1, 1]} : vector<32x32xf32> to vector<28x32xf32>
    %134 = arith.truncf %133 : vector<28x32xf32> to vector<28x32xbf16>
    %c0_98 = arith.constant 0 : index
    %c0_99 = arith.constant 0 : index
    %c0_100 = arith.constant 0 : index
    %135 = vector.load %arg2[%c0_98, %c0_99, %c0_100] : memref<5x32x168xbf16, #tpu.memory_space<vmem>>, vector<1x32x168xbf16>
    %136 = vector.shape_cast %135 : vector<1x32x168xbf16> to vector<32x168xbf16>
    %cst_101 = arith.constant dense<0.000000e+00> : vector<28x168xf32>
    %137 = tpu.matmul %134, %136, %cst_101 {dimension_numbers = #tpu.dot_dimension_numbers<[1], [0], [0], [1], [0, 0, 1, 1], [], []>} : vector<28x32xbf16>, vector<32x168xbf16>, vector<28x168xf32> -> vector<28x168xf32>
    %138 = arith.addf %132, %137 : vector<28x168xf32>
    %139 = vector.extract_strided_slice %131 {offsets = [1, 0], sizes = [28, 32], strides = [1, 1]} : vector<32x32xf32> to vector<28x32xf32>
    %140 = arith.truncf %139 : vector<28x32xf32> to vector<28x32xbf16>
    %c1_102 = arith.constant 1 : index
    %c0_103 = arith.constant 0 : index
    %c0_104 = arith.constant 0 : index
    %141 = vector.load %arg2[%c1_102, %c0_103, %c0_104] : memref<5x32x168xbf16, #tpu.memory_space<vmem>>, vector<1x32x168xbf16>
    %142 = vector.shape_cast %141 : vector<1x32x168xbf16> to vector<32x168xbf16>
    %cst_105 = arith.constant dense<0.000000e+00> : vector<28x168xf32>
    %143 = tpu.matmul %140, %142, %cst_105 {dimension_numbers = #tpu.dot_dimension_numbers<[1], [0], [0], [1], [0, 0, 1, 1], [], []>} : vector<28x32xbf16>, vector<32x168xbf16>, vector<28x168xf32> -> vector<28x168xf32>
    %144 = arith.addf %138, %143 : vector<28x168xf32>
    %145 = vector.extract_strided_slice %131 {offsets = [2, 0], sizes = [28, 32], strides = [1, 1]} : vector<32x32xf32> to vector<28x32xf32>
    %146 = arith.truncf %145 : vector<28x32xf32> to vector<28x32xbf16>
    %c2_106 = arith.constant 2 : index
    %c0_107 = arith.constant 0 : index
    %c0_108 = arith.constant 0 : index
    %147 = vector.load %arg2[%c2_106, %c0_107, %c0_108] : memref<5x32x168xbf16, #tpu.memory_space<vmem>>, vector<1x32x168xbf16>
    %148 = vector.shape_cast %147 : vector<1x32x168xbf16> to vector<32x168xbf16>
    %cst_109 = arith.constant dense<0.000000e+00> : vector<28x168xf32>
    %149 = tpu.matmul %146, %148, %cst_109 {dimension_numbers = #tpu.dot_dimension_numbers<[1], [0], [0], [1], [0, 0, 1, 1], [], []>} : vector<28x32xbf16>, vector<32x168xbf16>, vector<28x168xf32> -> vector<28x168xf32>
    %150 = arith.addf %144, %149 : vector<28x168xf32>
    %151 = vector.extract_strided_slice %131 {offsets = [3, 0], sizes = [28, 32], strides = [1, 1]} : vector<32x32xf32> to vector<28x32xf32>
    %152 = arith.truncf %151 : vector<28x32xf32> to vector<28x32xbf16>
    %c3_110 = arith.constant 3 : index
    %c0_111 = arith.constant 0 : index
    %c0_112 = arith.constant 0 : index
    %153 = vector.load %arg2[%c3_110, %c0_111, %c0_112] : memref<5x32x168xbf16, #tpu.memory_space<vmem>>, vector<1x32x168xbf16>
    %154 = vector.shape_cast %153 : vector<1x32x168xbf16> to vector<32x168xbf16>
    %cst_113 = arith.constant dense<0.000000e+00> : vector<28x168xf32>
    %155 = tpu.matmul %152, %154, %cst_113 {dimension_numbers = #tpu.dot_dimension_numbers<[1], [0], [0], [1], [0, 0, 1, 1], [], []>} : vector<28x32xbf16>, vector<32x168xbf16>, vector<28x168xf32> -> vector<28x168xf32>
    %156 = arith.addf %150, %155 : vector<28x168xf32>
    %157 = vector.extract_strided_slice %131 {offsets = [4, 0], sizes = [28, 32], strides = [1, 1]} : vector<32x32xf32> to vector<28x32xf32>
    %158 = arith.truncf %157 : vector<28x32xf32> to vector<28x32xbf16>
    %c4_114 = arith.constant 4 : index
    %c0_115 = arith.constant 0 : index
    %c0_116 = arith.constant 0 : index
    %159 = vector.load %arg2[%c4_114, %c0_115, %c0_116] : memref<5x32x168xbf16, #tpu.memory_space<vmem>>, vector<1x32x168xbf16>
    %160 = vector.shape_cast %159 : vector<1x32x168xbf16> to vector<32x168xbf16>
    %cst_117 = arith.constant dense<0.000000e+00> : vector<28x168xf32>
    %161 = tpu.matmul %158, %160, %cst_117 {dimension_numbers = #tpu.dot_dimension_numbers<[1], [0], [0], [1], [0, 0, 1, 1], [], []>} : vector<28x32xbf16>, vector<32x168xbf16>, vector<28x168xf32> -> vector<28x168xf32>
    %162 = arith.addf %156, %161 : vector<28x168xf32>
    %c0_118 = arith.constant 0 : index
    %c0_119 = arith.constant 0 : index
    %163 = vector.load %arg3[%c0_118, %c0_119] : memref<1x168xf32, #tpu.memory_space<vmem>>, vector<1x168xf32>
    %164 = vector.broadcast %163 : vector<1x168xf32> to vector<28x168xf32>
    %165 = arith.addf %162, %164 : vector<28x168xf32>
    %cst_120 = arith.constant 0.000000e+00 : f32
    %166 = vector.broadcast %cst_120 : f32 to vector<28x168xf32>
    %167 = arith.maximumf %165, %166 : vector<28x168xf32>
    %c0_121 = arith.constant 0 : index
    %c0_122 = arith.constant 0 : index
    %168 = vector.load %arg4[%c0_121, %c0_122] : memref<14x28xf32, #tpu.memory_space<vmem>>, vector<14x28xf32>
    %cst_123 = arith.constant dense<0.000000e+00> : vector<14x168xf32>
    %169 = tpu.matmul %168, %167, %cst_123 {dimension_numbers = #tpu.dot_dimension_numbers<[1], [0], [0], [1], [0, 0, 1, 1], [], []>} : vector<14x28xf32>, vector<28x168xf32>, vector<14x168xf32> -> vector<14x168xf32>
    %c0_124 = arith.constant 0 : index
    %c0_125 = arith.constant 0 : index
    %170 = vector.load %arg5[%c0_124, %c0_125] : memref<168x84xf32, #tpu.memory_space<vmem>>, vector<168x84xf32>
    %cst_126 = arith.constant dense<0.000000e+00> : vector<14x84xf32>
    %171 = tpu.matmul %169, %170, %cst_126 {dimension_numbers = #tpu.dot_dimension_numbers<[1], [0], [0], [1], [0, 0, 1, 1], [], []>} : vector<14x168xf32>, vector<168x84xf32>, vector<14x84xf32> -> vector<14x84xf32>
    %cst_127 = arith.constant 0.000000e+00 : f32
    %172 = vector.broadcast %cst_127 : f32 to vector<10x160xf32>
    %173 = vector.extract_strided_slice %171 {offsets = [0, 0], sizes = [10, 84], strides = [1, 1]} : vector<14x84xf32> to vector<10x84xf32>
    %174 = arith.truncf %173 : vector<10x84xf32> to vector<10x84xbf16>
    %c0_128 = arith.constant 0 : index
    %c0_129 = arith.constant 0 : index
    %c0_130 = arith.constant 0 : index
    %175 = vector.load %arg6[%c0_128, %c0_129, %c0_130] : memref<5x84x160xbf16, #tpu.memory_space<vmem>>, vector<1x84x160xbf16>
    %176 = vector.shape_cast %175 : vector<1x84x160xbf16> to vector<84x160xbf16>
    %cst_131 = arith.constant dense<0.000000e+00> : vector<10x160xf32>
    %177 = tpu.matmul %174, %176, %cst_131 {dimension_numbers = #tpu.dot_dimension_numbers<[1], [0], [0], [1], [0, 0, 1, 1], [], []>} : vector<10x84xbf16>, vector<84x160xbf16>, vector<10x160xf32> -> vector<10x160xf32>
    %178 = arith.addf %172, %177 : vector<10x160xf32>
    %179 = vector.extract_strided_slice %171 {offsets = [1, 0], sizes = [10, 84], strides = [1, 1]} : vector<14x84xf32> to vector<10x84xf32>
    %180 = arith.truncf %179 : vector<10x84xf32> to vector<10x84xbf16>
    %c1_132 = arith.constant 1 : index
    %c0_133 = arith.constant 0 : index
    %c0_134 = arith.constant 0 : index
    %181 = vector.load %arg6[%c1_132, %c0_133, %c0_134] : memref<5x84x160xbf16, #tpu.memory_space<vmem>>, vector<1x84x160xbf16>
    %182 = vector.shape_cast %181 : vector<1x84x160xbf16> to vector<84x160xbf16>
    %cst_135 = arith.constant dense<0.000000e+00> : vector<10x160xf32>
    %183 = tpu.matmul %180, %182, %cst_135 {dimension_numbers = #tpu.dot_dimension_numbers<[1], [0], [0], [1], [0, 0, 1, 1], [], []>} : vector<10x84xbf16>, vector<84x160xbf16>, vector<10x160xf32> -> vector<10x160xf32>
    %184 = arith.addf %178, %183 : vector<10x160xf32>
    %185 = vector.extract_strided_slice %171 {offsets = [2, 0], sizes = [10, 84], strides = [1, 1]} : vector<14x84xf32> to vector<10x84xf32>
    %186 = arith.truncf %185 : vector<10x84xf32> to vector<10x84xbf16>
    %c2_136 = arith.constant 2 : index
    %c0_137 = arith.constant 0 : index
    %c0_138 = arith.constant 0 : index
    %187 = vector.load %arg6[%c2_136, %c0_137, %c0_138] : memref<5x84x160xbf16, #tpu.memory_space<vmem>>, vector<1x84x160xbf16>
    %188 = vector.shape_cast %187 : vector<1x84x160xbf16> to vector<84x160xbf16>
    %cst_139 = arith.constant dense<0.000000e+00> : vector<10x160xf32>
    %189 = tpu.matmul %186, %188, %cst_139 {dimension_numbers = #tpu.dot_dimension_numbers<[1], [0], [0], [1], [0, 0, 1, 1], [], []>} : vector<10x84xbf16>, vector<84x160xbf16>, vector<10x160xf32> -> vector<10x160xf32>
    %190 = arith.addf %184, %189 : vector<10x160xf32>
    %191 = vector.extract_strided_slice %171 {offsets = [3, 0], sizes = [10, 84], strides = [1, 1]} : vector<14x84xf32> to vector<10x84xf32>
    %192 = arith.truncf %191 : vector<10x84xf32> to vector<10x84xbf16>
    %c3_140 = arith.constant 3 : index
    %c0_141 = arith.constant 0 : index
    %c0_142 = arith.constant 0 : index
    %193 = vector.load %arg6[%c3_140, %c0_141, %c0_142] : memref<5x84x160xbf16, #tpu.memory_space<vmem>>, vector<1x84x160xbf16>
    %194 = vector.shape_cast %193 : vector<1x84x160xbf16> to vector<84x160xbf16>
    %cst_143 = arith.constant dense<0.000000e+00> : vector<10x160xf32>
    %195 = tpu.matmul %192, %194, %cst_143 {dimension_numbers = #tpu.dot_dimension_numbers<[1], [0], [0], [1], [0, 0, 1, 1], [], []>} : vector<10x84xbf16>, vector<84x160xbf16>, vector<10x160xf32> -> vector<10x160xf32>
    %196 = arith.addf %190, %195 : vector<10x160xf32>
    %197 = vector.extract_strided_slice %171 {offsets = [4, 0], sizes = [10, 84], strides = [1, 1]} : vector<14x84xf32> to vector<10x84xf32>
    %198 = arith.truncf %197 : vector<10x84xf32> to vector<10x84xbf16>
    %c4_144 = arith.constant 4 : index
    %c0_145 = arith.constant 0 : index
    %c0_146 = arith.constant 0 : index
    %199 = vector.load %arg6[%c4_144, %c0_145, %c0_146] : memref<5x84x160xbf16, #tpu.memory_space<vmem>>, vector<1x84x160xbf16>
    %200 = vector.shape_cast %199 : vector<1x84x160xbf16> to vector<84x160xbf16>
    %cst_147 = arith.constant dense<0.000000e+00> : vector<10x160xf32>
    %201 = tpu.matmul %198, %200, %cst_147 {dimension_numbers = #tpu.dot_dimension_numbers<[1], [0], [0], [1], [0, 0, 1, 1], [], []>} : vector<10x84xbf16>, vector<84x160xbf16>, vector<10x160xf32> -> vector<10x160xf32>
    %202 = arith.addf %196, %201 : vector<10x160xf32>
    %c0_148 = arith.constant 0 : index
    %c0_149 = arith.constant 0 : index
    %203 = vector.load %arg7[%c0_148, %c0_149] : memref<1x160xf32, #tpu.memory_space<vmem>>, vector<1x160xf32>
    %204 = vector.broadcast %203 : vector<1x160xf32> to vector<10x160xf32>
    %205 = arith.addf %202, %204 : vector<10x160xf32>
    %cst_150 = arith.constant 0.000000e+00 : f32
    %206 = vector.broadcast %cst_150 : f32 to vector<10x160xf32>
    %207 = arith.maximumf %205, %206 : vector<10x160xf32>
    %c0_151 = arith.constant 0 : index
    %c0_152 = arith.constant 0 : index
    %208 = vector.load %arg8[%c0_151, %c0_152] : memref<5x10xf32, #tpu.memory_space<vmem>>, vector<5x10xf32>
    %c0_153 = arith.constant 0 : index
    %c0_154 = arith.constant 0 : index
    %209 = vector.load %arg9[%c0_153, %c0_154] : memref<160x80xf32, #tpu.memory_space<vmem>>, vector<160x80xf32>
    %cst_155 = arith.constant dense<0.000000e+00> : vector<10x80xf32>
    %210 = tpu.matmul %207, %209, %cst_155 {dimension_numbers = #tpu.dot_dimension_numbers<[1], [0], [0], [1], [0, 0, 1, 1], [], []>} : vector<10x160xf32>, vector<160x80xf32>, vector<10x80xf32> -> vector<10x80xf32>
    %cst_156 = arith.constant dense<0.000000e+00> : vector<5x80xf32>
    %211 = tpu.matmul %208, %210, %cst_156 {dimension_numbers = #tpu.dot_dimension_numbers<[1], [0], [0], [1], [0, 0, 1, 1], [], []>} : vector<5x10xf32>, vector<10x80xf32>, vector<5x80xf32> -> vector<5x80xf32>
    %cst_157 = arith.constant 0.000000e+00 : f32
    %212 = vector.broadcast %cst_157 : f32 to vector<1x120xf32>
    %213 = vector.extract_strided_slice %211 {offsets = [0, 0], sizes = [1, 80], strides = [1, 1]} : vector<5x80xf32> to vector<1x80xf32>
    %214 = arith.truncf %213 : vector<1x80xf32> to vector<1x80xbf16>
    %c0_158 = arith.constant 0 : index
    %c0_159 = arith.constant 0 : index
    %c0_160 = arith.constant 0 : index
    %215 = vector.load %arg10[%c0_158, %c0_159, %c0_160] : memref<5x80x120xbf16, #tpu.memory_space<vmem>>, vector<1x80x120xbf16>
    %216 = vector.shape_cast %215 : vector<1x80x120xbf16> to vector<80x120xbf16>
    %cst_161 = arith.constant dense<0.000000e+00> : vector<1x120xf32>
    %217 = tpu.matmul %214, %216, %cst_161 {dimension_numbers = #tpu.dot_dimension_numbers<[1], [0], [0], [1], [0, 0, 1, 1], [], []>} : vector<1x80xbf16>, vector<80x120xbf16>, vector<1x120xf32> -> vector<1x120xf32>
    %218 = arith.addf %212, %217 : vector<1x120xf32>
    %219 = vector.extract_strided_slice %211 {offsets = [1, 0], sizes = [1, 80], strides = [1, 1]} : vector<5x80xf32> to vector<1x80xf32>
    %220 = arith.truncf %219 : vector<1x80xf32> to vector<1x80xbf16>
    %c1_162 = arith.constant 1 : index
    %c0_163 = arith.constant 0 : index
    %c0_164 = arith.constant 0 : index
    %221 = vector.load %arg10[%c1_162, %c0_163, %c0_164] : memref<5x80x120xbf16, #tpu.memory_space<vmem>>, vector<1x80x120xbf16>
    %222 = vector.shape_cast %221 : vector<1x80x120xbf16> to vector<80x120xbf16>
    %cst_165 = arith.constant dense<0.000000e+00> : vector<1x120xf32>
    %223 = tpu.matmul %220, %222, %cst_165 {dimension_numbers = #tpu.dot_dimension_numbers<[1], [0], [0], [1], [0, 0, 1, 1], [], []>} : vector<1x80xbf16>, vector<80x120xbf16>, vector<1x120xf32> -> vector<1x120xf32>
    %224 = arith.addf %218, %223 : vector<1x120xf32>
    %225 = vector.extract_strided_slice %211 {offsets = [2, 0], sizes = [1, 80], strides = [1, 1]} : vector<5x80xf32> to vector<1x80xf32>
    %226 = arith.truncf %225 : vector<1x80xf32> to vector<1x80xbf16>
    %c2_166 = arith.constant 2 : index
    %c0_167 = arith.constant 0 : index
    %c0_168 = arith.constant 0 : index
    %227 = vector.load %arg10[%c2_166, %c0_167, %c0_168] : memref<5x80x120xbf16, #tpu.memory_space<vmem>>, vector<1x80x120xbf16>
    %228 = vector.shape_cast %227 : vector<1x80x120xbf16> to vector<80x120xbf16>
    %cst_169 = arith.constant dense<0.000000e+00> : vector<1x120xf32>
    %229 = tpu.matmul %226, %228, %cst_169 {dimension_numbers = #tpu.dot_dimension_numbers<[1], [0], [0], [1], [0, 0, 1, 1], [], []>} : vector<1x80xbf16>, vector<80x120xbf16>, vector<1x120xf32> -> vector<1x120xf32>
    %230 = arith.addf %224, %229 : vector<1x120xf32>
    %231 = vector.extract_strided_slice %211 {offsets = [3, 0], sizes = [1, 80], strides = [1, 1]} : vector<5x80xf32> to vector<1x80xf32>
    %232 = arith.truncf %231 : vector<1x80xf32> to vector<1x80xbf16>
    %c3_170 = arith.constant 3 : index
    %c0_171 = arith.constant 0 : index
    %c0_172 = arith.constant 0 : index
    %233 = vector.load %arg10[%c3_170, %c0_171, %c0_172] : memref<5x80x120xbf16, #tpu.memory_space<vmem>>, vector<1x80x120xbf16>
    %234 = vector.shape_cast %233 : vector<1x80x120xbf16> to vector<80x120xbf16>
    %cst_173 = arith.constant dense<0.000000e+00> : vector<1x120xf32>
    %235 = tpu.matmul %232, %234, %cst_173 {dimension_numbers = #tpu.dot_dimension_numbers<[1], [0], [0], [1], [0, 0, 1, 1], [], []>} : vector<1x80xbf16>, vector<80x120xbf16>, vector<1x120xf32> -> vector<1x120xf32>
    %236 = arith.addf %230, %235 : vector<1x120xf32>
    %237 = vector.extract_strided_slice %211 {offsets = [4, 0], sizes = [1, 80], strides = [1, 1]} : vector<5x80xf32> to vector<1x80xf32>
    %238 = arith.truncf %237 : vector<1x80xf32> to vector<1x80xbf16>
    %c4_174 = arith.constant 4 : index
    %c0_175 = arith.constant 0 : index
    %c0_176 = arith.constant 0 : index
    %239 = vector.load %arg10[%c4_174, %c0_175, %c0_176] : memref<5x80x120xbf16, #tpu.memory_space<vmem>>, vector<1x80x120xbf16>
    %240 = vector.shape_cast %239 : vector<1x80x120xbf16> to vector<80x120xbf16>
    %cst_177 = arith.constant dense<0.000000e+00> : vector<1x120xf32>
    %241 = tpu.matmul %238, %240, %cst_177 {dimension_numbers = #tpu.dot_dimension_numbers<[1], [0], [0], [1], [0, 0, 1, 1], [], []>} : vector<1x80xbf16>, vector<80x120xbf16>, vector<1x120xf32> -> vector<1x120xf32>
    %242 = arith.addf %236, %241 : vector<1x120xf32>
    %c0_178 = arith.constant 0 : index
    %c0_179 = arith.constant 0 : index
    %243 = vector.load %arg11[%c0_178, %c0_179] : memref<1x120xf32, #tpu.memory_space<vmem>>, vector<1x120xf32>
    %244 = arith.addf %242, %243 : vector<1x120xf32>
    %cst_180 = arith.constant 0.000000e+00 : f32
    %245 = vector.broadcast %cst_180 : f32 to vector<1x120xf32>
    %246 = arith.maximumf %244, %245 : vector<1x120xf32>
    %247 = arith.truncf %246 : vector<1x120xf32> to vector<1x120xbf16>
    %c0_181 = arith.constant 0 : index
    %c0_182 = arith.constant 0 : index
    %248 = vector.load %arg12[%c0_181, %c0_182] : memref<120x84xbf16, #tpu.memory_space<vmem>>, vector<120x84xbf16>
    %cst_183 = arith.constant dense<0.000000e+00> : vector<1x84xf32>
    %249 = tpu.matmul %247, %248, %cst_183 {dimension_numbers = #tpu.dot_dimension_numbers<[1], [0], [0], [1], [0, 0, 1, 1], [], []>} : vector<1x120xbf16>, vector<120x84xbf16>, vector<1x84xf32> -> vector<1x84xf32>
    %c0_184 = arith.constant 0 : index
    %c0_185 = arith.constant 0 : index
    %250 = vector.load %arg13[%c0_184, %c0_185] : memref<1x84xf32, #tpu.memory_space<vmem>>, vector<1x84xf32>
    %251 = arith.addf %249, %250 : vector<1x84xf32>
    %cst_186 = arith.constant 0.000000e+00 : f32
    %252 = vector.broadcast %cst_186 : f32 to vector<1x84xf32>
    %253 = arith.maximumf %251, %252 : vector<1x84xf32>
    %254 = arith.truncf %253 : vector<1x84xf32> to vector<1x84xbf16>
    %c0_187 = arith.constant 0 : index
    %c0_188 = arith.constant 0 : index
    %255 = vector.load %arg14[%c0_187, %c0_188] : memref<84x128xbf16, #tpu.memory_space<vmem>>, vector<84x128xbf16>
    %cst_189 = arith.constant dense<0.000000e+00> : vector<1x128xf32>
    %256 = tpu.matmul %254, %255, %cst_189 {dimension_numbers = #tpu.dot_dimension_numbers<[1], [0], [0], [1], [0, 0, 1, 1], [], []>} : vector<1x84xbf16>, vector<84x128xbf16>, vector<1x128xf32> -> vector<1x128xf32>
    %c0_190 = arith.constant 0 : index
    %c0_191 = arith.constant 0 : index
    %257 = vector.load %arg15[%c0_190, %c0_191] : memref<1x128xf32, #tpu.memory_space<vmem>>, vector<1x128xf32>
    %258 = arith.addf %256, %257 : vector<1x128xf32>
    %c1_192 = arith.constant 1 : index
    %c0_193 = arith.constant 0 : index
    %259 = vector.load %arg16[%c1_192, %c0_193] : memref<2x128xf32, #tpu.memory_space<vmem>>, vector<1x128xf32>
    tpu.vector_store %arg16[%c1_192, %c0_193], %258 {strides = array<i32>} : memref<2x128xf32, #tpu.memory_space<vmem>>, vector<1x128xf32>,
    return
  }
  func.func @transform_0(%arg0: i32) -> (i32, i32, i32) {
    %c0_i32 = arith.constant 0 : i32
    %c0_i32_0 = arith.constant 0 : i32
    %c0_i32_1 = arith.constant 0 : i32
    %c0_i32_2 = arith.constant 0 : i32
    return %c0_i32, %c0_i32_0, %c0_i32_1 : i32, i32, i32
  }
  func.func @transform_1(%arg0: i32) -> (i32, i32, i32) {
    %c0_i32 = arith.constant 0 : i32
    %c0_i32_0 = arith.constant 0 : i32
    %c0_i32_1 = arith.constant 0 : i32
    %c0_i32_2 = arith.constant 0 : i32
    return %c0_i32, %c0_i32_0, %c0_i32_1 : i32, i32, i32
  }
  func.func @transform_2(%arg0: i32) -> (i32, i32) {
    %c0_i32 = arith.constant 0 : i32
    %c0_i32_0 = arith.constant 0 : i32
    %c0_i32_1 = arith.constant 0 : i32
    return %c0_i32, %c0_i32_0 : i32, i32
  }
  func.func @transform_3(%arg0: i32) -> (i32, i32) {
    %c0_i32 = arith.constant 0 : i32
    %c0_i32_0 = arith.constant 0 : i32
    %c0_i32_1 = arith.constant 0 : i32
    return %c0_i32, %c0_i32_0 : i32, i32
  }
  func.func @transform_4(%arg0: i32) -> (i32, i32) {
    %c0_i32 = arith.constant 0 : i32
    %c0_i32_0 = arith.constant 0 : i32
    %c0_i32_1 = arith.constant 0 : i32
    return %c0_i32, %c0_i32_0 : i32, i32
  }
  func.func @transform_5(%arg0: i32) -> (i32, i32, i32) {
    %c0_i32 = arith.constant 0 : i32
    %c0_i32_0 = arith.constant 0 : i32
    %c0_i32_1 = arith.constant 0 : i32
    %c0_i32_2 = arith.constant 0 : i32
    return %c0_i32, %c0_i32_0, %c0_i32_1 : i32, i32, i32
  }
  func.func @transform_6(%arg0: i32) -> (i32, i32) {
    %c0_i32 = arith.constant 0 : i32
    %c0_i32_0 = arith.constant 0 : i32
    %c0_i32_1 = arith.constant 0 : i32
    return %c0_i32, %c0_i32_0 : i32, i32
  }
  func.func @transform_7(%arg0: i32) -> (i32, i32) {
    %c0_i32 = arith.constant 0 : i32
    %c0_i32_0 = arith.constant 0 : i32
    %c0_i32_1 = arith.constant 0 : i32
    return %c0_i32, %c0_i32_0 : i32, i32
  }
  func.func @transform_8(%arg0: i32) -> (i32, i32) {
    %c0_i32 = arith.constant 0 : i32
    %c0_i32_0 = arith.constant 0 : i32
    %c0_i32_1 = arith.constant 0 : i32
    return %c0_i32, %c0_i32_0 : i32, i32
  }
  func.func @transform_9(%arg0: i32) -> (i32, i32, i32) {
    %c0_i32 = arith.constant 0 : i32
    %c0_i32_0 = arith.constant 0 : i32
    %c0_i32_1 = arith.constant 0 : i32
    %c0_i32_2 = arith.constant 0 : i32
    return %c0_i32, %c0_i32_0, %c0_i32_1 : i32, i32, i32
  }
  func.func @transform_10(%arg0: i32) -> (i32, i32) {
    %c0_i32 = arith.constant 0 : i32
    %c0_i32_0 = arith.constant 0 : i32
    %c0_i32_1 = arith.constant 0 : i32
    return %c0_i32, %c0_i32_0 : i32, i32
  }
  func.func @transform_11(%arg0: i32) -> (i32, i32) {
    %c0_i32 = arith.constant 0 : i32
    %c0_i32_0 = arith.constant 0 : i32
    %c0_i32_1 = arith.constant 0 : i32
    return %c0_i32, %c0_i32_0 : i32, i32
  }
  func.func @transform_12(%arg0: i32) -> (i32, i32) {
    %c0_i32 = arith.constant 0 : i32
    %c0_i32_0 = arith.constant 0 : i32
    %c0_i32_1 = arith.constant 0 : i32
    return %c0_i32, %c0_i32_0 : i32, i32
  }
  func.func @transform_13(%arg0: i32) -> (i32, i32) {
    %c0_i32 = arith.constant 0 : i32
    %c0_i32_0 = arith.constant 0 : i32
    %c0_i32_1 = arith.constant 0 : i32
    return %c0_i32, %c0_i32_0 : i32, i32
  }
  func.func @transform_14(%arg0: i32) -> (i32, i32) {
    %c0_i32 = arith.constant 0 : i32
    %c0_i32_0 = arith.constant 0 : i32
    %c0_i32_1 = arith.constant 0 : i32
    return %c0_i32, %c0_i32_0 : i32, i32
  }
  func.func @transform_15(%arg0: i32) -> (i32, i32) {
    %c0_i32 = arith.constant 0 : i32
    %c0_i32_0 = arith.constant 0 : i32
    %c0_i32_1 = arith.constant 0 : i32
    return %c0_i32, %c0_i32_0 : i32, i32
  }
}

</mosaic_0001>

<llo_original>
// kernel: lenet_forward.1
$region0: #{lenet_forward.1}
  #allocation0 [shape = 'u32[]', space=smem, size = 0x4, offset = 0x4, fixed_abs, tag = 'smem constant byte address 0x4 - core index']
  #allocation1 [shape = 'u32[144,128]{1,0:T(1,128)}', space=vmem, size = 0x12000, scoped, tag = 'internal scratch']
  %s0 = inlined_call_operand.vmem [shape: f32[2,32,32], index: 0, kind: input, shape index: {}]
  %s1 = inlined_call_operand.vmem [shape: bf16[5,32,168], index: 1, kind: input, shape index: {}]
  %s2 = inlined_call_operand.vmem [shape: f32[1,168], index: 2, kind: input, shape index: {}]
  %s3 = inlined_call_operand.vmem [shape: f32[14,28], index: 3, kind: input, shape index: {}]
  %s4 = inlined_call_operand.vmem [shape: f32[168,84], index: 4, kind: input, shape index: {}]
  %s5 = inlined_call_operand.vmem [shape: bf16[5,84,160], index: 5, kind: input, shape index: {}]
  %s6 = inlined_call_operand.vmem [shape: f32[1,160], index: 6, kind: input, shape index: {}]
  %s7 = inlined_call_operand.vmem [shape: f32[5,10], index: 7, kind: input, shape index: {}]
  %s8 = inlined_call_operand.vmem [shape: f32[160,80], index: 8, kind: input, shape index: {}]
  %s9 = inlined_call_operand.vmem [shape: bf16[5,80,120], index: 9, kind: input, shape index: {}]
  %s10 = inlined_call_operand.vmem [shape: f32[1,120], index: 10, kind: input, shape index: {}]
  %s11 = inlined_call_operand.vmem [shape: bf16[120,84], index: 11, kind: input, shape index: {}]
  %s12 = inlined_call_operand.vmem [shape: f32[1,84], index: 12, kind: input, shape index: {}]
  %s13 = inlined_call_operand.vmem [shape: bf16[84,128], index: 13, kind: input, shape index: {}]
  %s14 = inlined_call_operand.vmem [shape: f32[1,128], index: 14, kind: input, shape index: {}]
  %s15 = inlined_call_operand.hbm [shape: f32[2,128], index: 15, kind: output, shape index: {}]
  %s16 = sld [smem:[#allocation0]]
  $region70: #{lenet_forward.1} parent=0
    _
  %s18 = ssub.s32 1, %s16
  %s19 = scalar_select 0, %s18, %s16
  $region1: #{lenet_forward.1} parent=0
    #allocation2 [shape = 'u8[1024]{0}', space=vmem, size = 0x400, scoped, tag = 'output window, operand 0, single buffered']
    #allocation3 [shape = 's32[1]{0}', space=sflag, size = 0x4, scoped, tag = 'scoped memory for lenet_forward.1']
    %20 = vsyncpa [#allocation3], 0
    // Predicated region
    $region2: #{lenet_forward.1} parent=1 // pred_check
      _
    $region3: #{lenet_forward.1} parent=1 // pred_check_branch
      %22 = sbr.rel (0) target = $region5
    $region4: #{lenet_forward.1} parent=1 // pred_region
      _
    $region5: #{lenet_forward.1} parent=1 // pred_fallthru
      _
    // Predicated region
    $region6: #{lenet_forward.1} parent=1 // pred_check
      _
    $region7: #{lenet_forward.1} parent=1 // pred_check_branch
      %24 = sbr.rel (0) target = $region9
    $region8: #{lenet_forward.1} parent=1 // pred_region
      _
    $region9: #{lenet_forward.1} parent=1 // pred_fallthru
      _
    // Predicated region
    $region10: #{lenet_forward.1} parent=1 // pred_check
      _
    $region11: #{lenet_forward.1} parent=1 // pred_check_branch
      %26 = sbr.rel (0) target = $region13
    $region12: #{lenet_forward.1} parent=1 // pred_region
      _
    $region13: #{lenet_forward.1} parent=1 // pred_fallthru
      _
    // Predicated region
    $region14: #{lenet_forward.1} parent=1 // pred_check
      _
    $region15: #{lenet_forward.1} parent=1 // pred_check_branch
      %28 = sbr.rel (0) target = $region17
    $region16: #{lenet_forward.1} parent=1 // pred_region
      _
    $region17: #{lenet_forward.1} parent=1 // pred_fallthru
      _
    // Predicated region
    $region18: #{lenet_forward.1} parent=1 // pred_check
      _
    $region19: #{lenet_forward.1} parent=1 // pred_check_branch
      %30 = sbr.rel (0) target = $region21
    $region20: #{lenet_forward.1} parent=1 // pred_region
      _
    $region21: #{lenet_forward.1} parent=1 // pred_fallthru
      _
    // Predicated region
    $region22: #{lenet_forward.1} parent=1 // pred_check
      _
    $region23: #{lenet_forward.1} parent=1 // pred_check_branch
      %32 = sbr.rel (0) target = $region25
    $region24: #{lenet_forward.1} parent=1 // pred_region
      _
    $region25: #{lenet_forward.1} parent=1 // pred_fallthru
      _
    // Predicated region
    $region26: #{lenet_forward.1} parent=1 // pred_check
      _
    $region27: #{lenet_forward.1} parent=1 // pred_check_branch
      %34 = sbr.rel (0) target = $region29
    $region28: #{lenet_forward.1} parent=1 // pred_region
      _
    $region29: #{lenet_forward.1} parent=1 // pred_fallthru
      _
    // Predicated region
    $region30: #{lenet_forward.1} parent=1 // pred_check
      _
    $region31: #{lenet_forward.1} parent=1 // pred_check_branch
      %36 = sbr.rel (0) target = $region33
    $region32: #{lenet_forward.1} parent=1 // pred_region
      _
    $region33: #{lenet_forward.1} parent=1 // pred_fallthru
      _
    // Predicated region
    $region34: #{lenet_forward.1} parent=1 // pred_check
      _
    $region35: #{lenet_forward.1} parent=1 // pred_check_branch
      %38 = sbr.rel (0) target = $region37
    $region36: #{lenet_forward.1} parent=1 // pred_region
      _
    $region37: #{lenet_forward.1} parent=1 // pred_fallthru
      _
    // Predicated region
    $region38: #{lenet_forward.1} parent=1 // pred_check
      _
    $region39: #{lenet_forward.1} parent=1 // pred_check_branch
      %40 = sbr.rel (0) target = $region41
    $region40: #{lenet_forward.1} parent=1 // pred_region
      _
    $region41: #{lenet_forward.1} parent=1 // pred_fallthru
      _
    // Predicated region
    $region42: #{lenet_forward.1} parent=1 // pred_check
      _
    $region43: #{lenet_forward.1} parent=1 // pred_check_branch
      %42 = sbr.rel (0) target = $region45
    $region44: #{lenet_forward.1} parent=1 // pred_region
      _
    $region45: #{lenet_forward.1} parent=1 // pred_fallthru
      _
    // Predicated region
    $region46: #{lenet_forward.1} parent=1 // pred_check
      _
    $region47: #{lenet_forward.1} parent=1 // pred_check_branch
      %44 = sbr.rel (0) target = $region49
    $region48: #{lenet_forward.1} parent=1 // pred_region
      _
    $region49: #{lenet_forward.1} parent=1 // pred_fallthru
      _
    // Predicated region
    $region50: #{lenet_forward.1} parent=1 // pred_check
      _
    $region51: #{lenet_forward.1} parent=1 // pred_check_branch
      %46 = sbr.rel (0) target = $region53
    $region52: #{lenet_forward.1} parent=1 // pred_region
      _
    $region53: #{lenet_forward.1} parent=1 // pred_fallthru
      _
    // Predicated region
    $region54: #{lenet_forward.1} parent=1 // pred_check
      _
    $region55: #{lenet_forward.1} parent=1 // pred_check_branch
      %48 = sbr.rel (0) target = $region57
    $region56: #{lenet_forward.1} parent=1 // pred_region
      _
    $region57: #{lenet_forward.1} parent=1 // pred_fallthru
      _
    // Predicated region
    $region58: #{lenet_forward.1} parent=1 // pred_check
      _
    $region59: #{lenet_forward.1} parent=1 // pred_check_branch
      %50 = sbr.rel (0) target = $region61
    $region60: #{lenet_forward.1} parent=1 // pred_region
      _
    $region61: #{lenet_forward.1} parent=1 // pred_fallthru
      _
    %v52 = vld [vmem:[%s0] sm:$0xff]
    %v53 = vld [vmem:[%s0 + $0x8] sm:$0xff]
    %v54 = vld [vmem:[%s0 + $0x10] sm:$0xff]
    %v55 = vld [vmem:[%s0 + $0x18] sm:$0xff]
    %v56 = vpack.c.bf16 %v53, %v52
    %v57 = vpack.c.bf16 %v55, %v54
    %v58 = vld [vmem:[%s1] sm:$0xff]
    %v59 = vld [vmem:[%s1 + $0x8] sm:$0xff]
    %v60 = vld [vmem:[%s1 + $0x10] sm:$0xff]
    %v61 = vld [vmem:[%s1 + $0x18] sm:$0xff]
    %s62 = scalar_lea.vmem %s1, 32
    %v63 = vld [vmem:[%s62] sm:$0xff]
    %v64 = vld [vmem:[%s62 + $0x8] sm:$0xff]
    %v65 = vld [vmem:[%s62 + $0x10] sm:$0xff]
    %v66 = vld [vmem:[%s62 + $0x18] sm:$0xff]
    %vm67 = vsmask.f32 7424
    %v69 = vshrl.u32 %v56, 16
    %v71 = vshll.u32 %v56, 16
    %v73 = vrot.slane %v71, 1
    %v74 = vor.u32 %v69, %v73
    %v76 = vshll.u32 %v57, 16
    %v78 = vrot.slane %v76, 1
    %v79 = vsel %vm67, %v74, %v78
    %v80 = vshrl.u32 %v57, 16
    %v82 = vor.u32 %v80, %v78
    %v87 = vunpack.c.l.b16 %v63
    %v88 = vunpack.c.h.b16 %v63
    %v89 = vunpack.c.l.b16 %v64
    %v90 = vunpack.c.h.b16 %v64
    %v91 = vunpack.c.l.b16 %v65
    %v92 = vunpack.c.h.b16 %v65
    %v93 = vunpack.c.l.b16 %v66
    %v94 = vunpack.c.h.b16 %v66
    %v95 = vpack.c.b16 %v89, %v87
    %v96 = vpack.c.b16 %v90, %v88
    %v97 = vpack.c.b16 %v93, %v91
    %v98 = vpack.c.b16 %v94, %v92
    %vm103 = vcmask 261120
    %v105 = vsel %vm103, %v79, 0
    %v108 = vsel %vm103, %v82, 0
    %110 = vmatprep.subr.bf16.mxu0 0
    %111 = vmatpush1.bf16.msra.mxu0 0
    %112 = vmatprep.subr.bf16.mxu0 0
    %113 = vmatpush1.bf16.msra.mxu0 0
    %114 = vmatprep.subr.bf16.mxu0 0
    %115 = vmatpush1.bf16.msra.mxu0 0
    %116 = vmatprep.subr.bf16.mxu0 0
    %117 = vmatpush1.bf16.msra.mxu0 0
    %118 = vmatprep.subr.bf16.mxu0 0
    %119 = vmatpush1.bf16.msra.mxu0 0
    %120 = vmatprep.subr.bf16.mxu0 0
    %121 = vmatpush1.bf16.msra.mxu0 0
    %122 = vmatprep.subr.bf16.mxu0 %v98
    %123 = vmatpush1.bf16.msra.mxu0 %v97
    %124 = vmatprep.subr.bf16.mxu0 %v96
    %125 = vmatpush1.bf16.msra.mxu0 %v95
    %126 = vmatprep.subr.bf16.mxu0 0
    %127 = vmatpush2.bf16.msra.mxu0 0
    %128 = vmatprep.subr.bf16.mxu0 0
    %129 = vmatpush2.bf16.msra.mxu0 0
    %130 = vmatprep.subr.bf16.mxu0 0
    %131 = vmatpush2.bf16.msra.mxu0 0
    %132 = vmatprep.subr.bf16.mxu0 0
    %133 = vmatpush2.bf16.msra.mxu0 0
    %134 = vmatprep.subr.bf16.mxu0 0
    %135 = vmatpush2.bf16.msra.mxu0 0
    %136 = vmatprep.subr.bf16.mxu0 0
    %137 = vmatpush2.bf16.msra.mxu0 0
    %138 = vmatprep.subr.bf16.mxu0 0
    %139 = vmatpush2.bf16.msra.mxu0 0
    %140 = vmatprep.subr.bf16.mxu0 0
    %141 = vmatpush2.bf16.msra.mxu0 0
    %142 = vmatprep.mubr.bf16.mxu0 0
    %143 = vmatmul.mubr.bf16.gmra.mxu0 %v105
    %v144 = vpop.f32.mrf.mxu0
    %v145 = vadd.f32 0.0, %v144
    %v146 = vpop.f32.mrf.mxu0
    %v147 = vadd.f32 0.0, %v146
    %v148 = vpop.f32.mrf.mxu0
    %v149 = vadd.f32 0.0, %v148
    %v150 = vpop.f32.mrf.mxu0
    %v151 = vadd.f32 0.0, %v150
    %152 = vmatprep.mubr.bf16.mxu0 0
    %153 = vmatmul.mubr.bf16.gmra.mxu0 %v108
    %v154 = vpop.f32.mrf.mxu0
    %v155 = vadd.f32 0.0, %v154
    %v156 = vpop.f32.mrf.mxu0
    %v157 = vadd.f32 0.0, %v156
    %v158 = vpop.f32.mrf.mxu0
    %v159 = vadd.f32 0.0, %v158
    %v160 = vpop.f32.mrf.mxu0
    %v161 = vadd.f32 0.0, %v160
    %162 = vdwg.mxu0
    %v167 = vunpack.c.l.b16 %v58
    %v168 = vunpack.c.h.b16 %v58
    %v169 = vunpack.c.l.b16 %v59
    %v170 = vunpack.c.h.b16 %v59
    %v171 = vunpack.c.l.b16 %v60
    %v172 = vunpack.c.h.b16 %v60
    %v173 = vunpack.c.l.b16 %v61
    %v174 = vunpack.c.h.b16 %v61
    %v175 = vpack.c.b16 %v169, %v167
    %v176 = vpack.c.b16 %v170, %v168
    %v177 = vpack.c.b16 %v173, %v171
    %v178 = vpack.c.b16 %v174, %v172
    %v183 = vsel %vm103, %v56, 0
    %v185 = vsel %vm103, %v57, 0
    %187 = vmatprep.subr.bf16.mxu0 0
    %188 = vmatpush1.bf16.msra.mxu0 0
    %189 = vmatprep.subr.bf16.mxu0 0
    %190 = vmatpush1.bf16.msra.mxu0 0
    %191 = vmatprep.subr.bf16.mxu0 0
    %192 = vmatpush1.bf16.msra.mxu0 0
    %193 = vmatprep.subr.bf16.mxu0 0
    %194 = vmatpush1.bf16.msra.mxu0 0
    %195 = vmatprep.subr.bf16.mxu0 0
    %196 = vmatpush1.bf16.msra.mxu0 0
    %197 = vmatprep.subr.bf16.mxu0 0
    %198 = vmatpush1.bf16.msra.mxu0 0
    %199 = vmatprep.subr.bf16.mxu0 %v178
    %200 = vmatpush1.bf16.msra.mxu0 %v177
    %201 = vmatprep.subr.bf16.mxu0 %v176
    %202 = vmatpush1.bf16.msra.mxu0 %v175
    %203 = vmatprep.subr.bf16.mxu0 0
    %204 = vmatpush2.bf16.msra.mxu0 0
    %205 = vmatprep.subr.bf16.mxu0 0
    %206 = vmatpush2.bf16.msra.mxu0 0
    %207 = vmatprep.subr.bf16.mxu0 0
    %208 = vmatpush2.bf16.msra.mxu0 0
    %209 = vmatprep.subr.bf16.mxu0 0
    %210 = vmatpush2.bf16.msra.mxu0 0
    %211 = vmatprep.subr.bf16.mxu0 0
    %212 = vmatpush2.bf16.msra.mxu0 0
    %213 = vmatprep.subr.bf16.mxu0 0
    %214 = vmatpush2.bf16.msra.mxu0 0
    %215 = vmatprep.subr.bf16.mxu0 0
    %216 = vmatpush2.bf16.msra.mxu0 0
    %217 = vmatprep.subr.bf16.mxu0 0
    %218 = vmatpush2.bf16.msra.mxu0 0
    %219 = vmatprep.mubr.bf16.mxu0 0
    %220 = vmatmul.mubr.bf16.gmra.mxu0 %v183
    %v221 = vpop.f32.mrf.mxu0
    %v222 = vadd.f32 %v145, %v221
    %v223 = vpop.f32.mrf.mxu0
    %v224 = vadd.f32 %v147, %v223
    %v225 = vpop.f32.mrf.mxu0
    %v226 = vadd.f32 %v149, %v225
    %v227 = vpop.f32.mrf.mxu0
    %v228 = vadd.f32 %v151, %v227
    %229 = vmatprep.mubr.bf16.mxu0 0
    %230 = vmatmul.mubr.bf16.gmra.mxu0 %v185
    %v231 = vpop.f32.mrf.mxu0
    %v232 = vadd.f32 %v155, %v231
    %v233 = vpop.f32.mrf.mxu0
    %v234 = vadd.f32 %v157, %v233
    %v235 = vpop.f32.mrf.mxu0
    %v236 = vadd.f32 %v159, %v235
    %v237 = vpop.f32.mrf.mxu0
    %v238 = vadd.f32 %v161, %v237
    %239 = vdwg.mxu0
    %s240 = scalar_lea.vmem %s1, 64
    %v241 = vld [vmem:[%s240] sm:$0xff]
    %v242 = vld [vmem:[%s240 + $0x8] sm:$0xff]
    %v243 = vld [vmem:[%s240 + $0x10] sm:$0xff]
    %v244 = vld [vmem:[%s240 + $0x18] sm:$0xff]
    %vm247 = vcmask 1046528
    %v248 = vrot.slane %v56, 1
    %v249 = vrot.slane %v57, 1
    %v250 = vsel %vm247, %v248, %v249
    %v255 = vunpack.c.l.b16 %v241
    %v256 = vunpack.c.h.b16 %v241
    %v257 = vunpack.c.l.b16 %v242
    %v258 = vunpack.c.h.b16 %v242
    %v259 = vunpack.c.l.b16 %v243
    %v260 = vunpack.c.h.b16 %v243
    %v261 = vunpack.c.l.b16 %v244
    %v262 = vunpack.c.h.b16 %v244
    %v263 = vpack.c.b16 %v257, %v255
    %v264 = vpack.c.b16 %v258, %v256
    %v265 = vpack.c.b16 %v261, %v259
    %v266 = vpack.c.b16 %v262, %v260
    %v272 = vsel %vm103, %v250, 0
    %v275 = vsel %vm103, %v249, 0
    %277 = vmatprep.subr.bf16.mxu0 0
    %278 = vmatpush1.bf16.msra.mxu0 0
    %279 = vmatprep.subr.bf16.mxu0 0
    %280 = vmatpush1.bf16.msra.mxu0 0
    %281 = vmatprep.subr.bf16.mxu0 0
    %282 = vmatpush1.bf16.msra.mxu0 0
    %283 = vmatprep.subr.bf16.mxu0 0
    %284 = vmatpush1.bf16.msra.mxu0 0
    %285 = vmatprep.subr.bf16.mxu0 0
    %286 = vmatpush1.bf16.msra.mxu0 0
    %287 = vmatprep.subr.bf16.mxu0 0
    %288 = vmatpush1.bf16.msra.mxu0 0
    %289 = vmatprep.subr.bf16.mxu0 %v266
    %290 = vmatpush1.bf16.msra.mxu0 %v265
    %291 = vmatprep.subr.bf16.mxu0 %v264
    %292 = vmatpush1.bf16.msra.mxu0 %v263
    %293 = vmatprep.subr.bf16.mxu0 0
    %294 = vmatpush2.bf16.msra.mxu0 0
    %295 = vmatprep.subr.bf16.mxu0 0
    %296 = vmatpush2.bf16.msra.mxu0 0
    %297 = vmatprep.subr.bf16.mxu0 0
    %298 = vmatpush2.bf16.msra.mxu0 0
    %299 = vmatprep.subr.bf16.mxu0 0
    %300 = vmatpush2.bf16.msra.mxu0 0
    %301 = vmatprep.subr.bf16.mxu0 0
    %302 = vmatpush2.bf16.msra.mxu0 0
    %303 = vmatprep.subr.bf16.mxu0 0
    %304 = vmatpush2.bf16.msra.mxu0 0
    %305 = vmatprep.subr.bf16.mxu0 0
    %306 = vmatpush2.bf16.msra.mxu0 0
    %307 = vmatprep.subr.bf16.mxu0 0
    %308 = vmatpush2.bf16.msra.mxu0 0
    %309 = vmatprep.mubr.bf16.mxu0 0
    %310 = vmatmul.mubr.bf16.gmra.mxu0 %v272
    %v311 = vpop.f32.mrf.mxu0
    %v312 = vadd.f32 0.0, %v311
    %v313 = vpop.f32.mrf.mxu0
    %v314 = vadd.f32 0.0, %v313
    %v315 = vpop.f32.mrf.mxu0
    %v316 = vadd.f32 0.0, %v315
    %v317 = vpop.f32.mrf.mxu0
    %v318 = vadd.f32 0.0, %v317
    %319 = vmatprep.mubr.bf16.mxu0 0
    %320 = vmatmul.mubr.bf16.gmra.mxu0 %v275
    %v321 = vpop.f32.mrf.mxu0
    %v322 = vadd.f32 0.0, %v321
    %v323 = vpop.f32.mrf.mxu0
    %v324 = vadd.f32 0.0, %v323
    %v325 = vpop.f32.mrf.mxu0
    %v326 = vadd.f32 0.0, %v325
    %v327 = vpop.f32.mrf.mxu0
    %v328 = vadd.f32 0.0, %v327
    %329 = vdwg.mxu0
    %v330 = vadd.f32 %v222, %v312
    %v331 = vadd.f32 %v224, %v314
    %v332 = vadd.f32 %v226, %v316
    %v333 = vadd.f32 %v228, %v318
    %v334 = vadd.f32 %v232, %v322
    %v335 = vadd.f32 %v234, %v324
    %v336 = vadd.f32 %v236, %v326
    %v337 = vadd.f32 %v238, %v328
    %s338 = scalar_lea.vmem %s1, 96
    %v339 = vld [vmem:[%s338] sm:$0xff]
    %v340 = vld [vmem:[%s338 + $0x8] sm:$0xff]
    %v341 = vld [vmem:[%s338 + $0x10] sm:$0xff]
    %v342 = vld [vmem:[%s338 + $0x18] sm:$0xff]
    %vm343 = vsmask.f32 6400
    %v344 = vrot.slane %v69, 1
    %v345 = vrot.slane %v71, 2
    %v346 = vor.u32 %v344, %v345
    %v347 = vrot.slane %v80, 1
    %v348 = vrot.slane %v76, 2
    %v349 = vor.u32 %v347, %v348
    %v350 = vsel %vm343, %v346, %v349
    %v355 = vunpack.c.l.b16 %v339
    %v356 = vunpack.c.h.b16 %v339
    %v357 = vunpack.c.l.b16 %v340
    %v358 = vunpack.c.h.b16 %v340
    %v359 = vunpack.c.l.b16 %v341
    %v360 = vunpack.c.h.b16 %v341
    %v361 = vunpack.c.l.b16 %v342
    %v362 = vunpack.c.h.b16 %v342
    %v363 = vpack.c.b16 %v357, %v355
    %v364 = vpack.c.b16 %v358, %v356
    %v365 = vpack.c.b16 %v361, %v359
    %v366 = vpack.c.b16 %v362, %v360
    %v372 = vsel %vm103, %v350, 0
    %v375 = vsel %vm103, %v349, 0
    %377 = vmatprep.subr.bf16.mxu0 0
    %378 = vmatpush1.bf16.msra.mxu0 0
    %379 = vmatprep.subr.bf16.mxu0 0
    %380 = vmatpush1.bf16.msra.mxu0 0
    %381 = vmatprep.subr.bf16.mxu0 0
    %382 = vmatpush1.bf16.msra.mxu0 0
    %383 = vmatprep.subr.bf16.mxu0 0
    %384 = vmatpush1.bf16.msra.mxu0 0
    %385 = vmatprep.subr.bf16.mxu0 0
    %386 = vmatpush1.bf16.msra.mxu0 0
    %387 = vmatprep.subr.bf16.mxu0 0
    %388 = vmatpush1.bf16.msra.mxu0 0
    %389 = vmatprep.subr.bf16.mxu0 %v366
    %390 = vmatpush1.bf16.msra.mxu0 %v365
    %391 = vmatprep.subr.bf16.mxu0 %v364
    %392 = vmatpush1.bf16.msra.mxu0 %v363
    %393 = vmatprep.subr.bf16.mxu0 0
    %394 = vmatpush2.bf16.msra.mxu0 0
    %395 = vmatprep.subr.bf16.mxu0 0
    %396 = vmatpush2.bf16.msra.mxu0 0
    %397 = vmatprep.subr.bf16.mxu0 0
    %398 = vmatpush2.bf16.msra.mxu0 0
    %399 = vmatprep.subr.bf16.mxu0 0
    %400 = vmatpush2.bf16.msra.mxu0 0
    %401 = vmatprep.subr.bf16.mxu0 0
    %402 = vmatpush2.bf16.msra.mxu0 0
    %403 = vmatprep.subr.bf16.mxu0 0
    %404 = vmatpush2.bf16.msra.mxu0 0
    %405 = vmatprep.subr.bf16.mxu0 0
    %406 = vmatpush2.bf16.msra.mxu0 0
    %407 = vmatprep.subr.bf16.mxu0 0
    %408 = vmatpush2.bf16.msra.mxu0 0
    %409 = vmatprep.mubr.bf16.mxu0 0
    %410 = vmatmul.mubr.bf16.gmra.mxu0 %v372
    %v411 = vpop.f32.mrf.mxu0
    %v412 = vadd.f32 0.0, %v411
    %v413 = vpop.f32.mrf.mxu0
    %v414 = vadd.f32 0.0, %v413
    %v415 = vpop.f32.mrf.mxu0
    %v416 = vadd.f32 0.0, %v415
    %v417 = vpop.f32.mrf.mxu0
    %v418 = vadd.f32 0.0, %v417
    %419 = vmatprep.mubr.bf16.mxu0 0
    %420 = vmatmul.mubr.bf16.gmra.mxu0 %v375
    %v421 = vpop.f32.mrf.mxu0
    %v422 = vadd.f32 0.0, %v421
    %v423 = vpop.f32.mrf.mxu0
    %v424 = vadd.f32 0.0, %v423
    %v425 = vpop.f32.mrf.mxu0
    %v426 = vadd.f32 0.0, %v425
    %v427 = vpop.f32.mrf.mxu0
    %v428 = vadd.f32 0.0, %v427
    %429 = vdwg.mxu0
    %v430 = vadd.f32 %v330, %v412
    %v431 = vadd.f32 %v331, %v414
    %v432 = vadd.f32 %v332, %v416
    %v433 = vadd.f32 %v333, %v418
    %v434 = vadd.f32 %v334, %v422
    %v435 = vadd.f32 %v335, %v424
    %v436 = vadd.f32 %v336, %v426
    %v437 = vadd.f32 %v337, %v428
    %s438 = scalar_lea.vmem %s1, 128
    %v439 = vld [vmem:[%s438] sm:$0xff]
    %v440 = vld [vmem:[%s438 + $0x8] sm:$0xff]
    %v441 = vld [vmem:[%s438 + $0x10] sm:$0xff]
    %v442 = vld [vmem:[%s438 + $0x18] sm:$0xff]
    %vm443 = vcmask 1045504
    %v444 = vrot.slane %v56, 2
    %v445 = vrot.slane %v57, 2
    %v446 = vsel %vm443, %v444, %v445
    %v451 = vunpack.c.l.b16 %v439
    %v452 = vunpack.c.h.b16 %v439
    %v453 = vunpack.c.l.b16 %v440
    %v454 = vunpack.c.h.b16 %v440
    %v455 = vunpack.c.l.b16 %v441
    %v456 = vunpack.c.h.b16 %v441
    %v457 = vunpack.c.l.b16 %v442
    %v458 = vunpack.c.h.b16 %v442
    %v459 = vpack.c.b16 %v453, %v451
    %v460 = vpack.c.b16 %v454, %v452
    %v461 = vpack.c.b16 %v457, %v455
    %v462 = vpack.c.b16 %v458, %v456
    %v468 = vsel %vm103, %v446, 0
    %v471 = vsel %vm103, %v445, 0
    %473 = vmatprep.subr.bf16.mxu0 0
    %474 = vmatpush1.bf16.msra.mxu0 0
    %475 = vmatprep.subr.bf16.mxu0 0
    %476 = vmatpush1.bf16.msra.mxu0 0
    %477 = vmatprep.subr.bf16.mxu0 0
    %478 = vmatpush1.bf16.msra.mxu0 0
    %479 = vmatprep.subr.bf16.mxu0 0
    %480 = vmatpush1.bf16.msra.mxu0 0
    %481 = vmatprep.subr.bf16.mxu0 0
    %482 = vmatpush1.bf16.msra.mxu0 0
    %483 = vmatprep.subr.bf16.mxu0 0
    %484 = vmatpush1.bf16.msra.mxu0 0
    %485 = vmatprep.subr.bf16.mxu0 %v462
    %486 = vmatpush1.bf16.msra.mxu0 %v461
    %487 = vmatprep.subr.bf16.mxu0 %v460
    %488 = vmatpush1.bf16.msra.mxu0 %v459
    %489 = vmatprep.subr.bf16.mxu0 0
    %490 = vmatpush2.bf16.msra.mxu0 0
    %491 = vmatprep.subr.bf16.mxu0 0
    %492 = vmatpush2.bf16.msra.mxu0 0
    %493 = vmatprep.subr.bf16.mxu0 0
    %494 = vmatpush2.bf16.msra.mxu0 0
    %495 = vmatprep.subr.bf16.mxu0 0
    %496 = vmatpush2.bf16.msra.mxu0 0
    %497 = vmatprep.subr.bf16.mxu0 0
    %498 = vmatpush2.bf16.msra.mxu0 0
    %499 = vmatprep.subr.bf16.mxu0 0
    %500 = vmatpush2.bf16.msra.mxu0 0
    %501 = vmatprep.subr.bf16.mxu0 0
    %502 = vmatpush2.bf16.msra.mxu0 0
    %503 = vmatprep.subr.bf16.mxu0 0
    %504 = vmatpush2.bf16.msra.mxu0 0
    %505 = vmatprep.mubr.bf16.mxu0 0
    %506 = vmatmul.mubr.bf16.gmra.mxu0 %v468
    %v507 = vpop.f32.mrf.mxu0
    %v508 = vadd.f32 0.0, %v507
    %v509 = vpop.f32.mrf.mxu0
    %v510 = vadd.f32 0.0, %v509
    %v511 = vpop.f32.mrf.mxu0
    %v512 = vadd.f32 0.0, %v511
    %v513 = vpop.f32.mrf.mxu0
    %v514 = vadd.f32 0.0, %v513
    %515 = vmatprep.mubr.bf16.mxu0 0
    %516 = vmatmul.mubr.bf16.gmra.mxu0 %v471
    %v517 = vpop.f32.mrf.mxu0
    %v518 = vadd.f32 0.0, %v517
    %v519 = vpop.f32.mrf.mxu0
    %v520 = vadd.f32 0.0, %v519
    %v521 = vpop.f32.mrf.mxu0
    %v522 = vadd.f32 0.0, %v521
    %v523 = vpop.f32.mrf.mxu0
    %v524 = vadd.f32 0.0, %v523
    %525 = vdwg.mxu0
    %v526 = vadd.f32 %v430, %v508
    %v527 = vadd.f32 %v431, %v510
    %v528 = vadd.f32 %v432, %v512
    %v529 = vadd.f32 %v433, %v514
    %v530 = vadd.f32 %v434, %v518
    %v531 = vadd.f32 %v435, %v520
    %v532 = vadd.f32 %v436, %v522
    %v533 = vadd.f32 %v437, %v524
    %v534 = vld [vmem:[%s2] sm:$0x3]
    %v536 = vlaneseq
    %v537 = vshrl.u32 %v536, 7
    %v538 = vsub.s32 0, %v537
    %v539 = vrot.slane %v534, %v538
    %v540 = vlaneseq
    %v541 = vshrl.u32 %v540, 7
    %v542 = vsub.s32 1, %v541
    %v543 = vrot.slane %v534, %v542
    %v546 = vadd.f32 %v526, %v539
    %v547 = vadd.f32 %v527, %v543
    %v548 = vadd.f32 %v528, %v539
    %v549 = vadd.f32 %v529, %v543
    %v550 = vadd.f32 %v530, %v539
    %v551 = vadd.f32 %v531, %v543
    %v552 = vadd.f32 %v532, %v539
    %v553 = vadd.f32 %v533, %v543
    %v554 = vmax.f32 %v546, 0.0
    %v555 = vmax.f32 %v547, 0.0
    %v556 = vmax.f32 %v548, 0.0
    %v557 = vmax.f32 %v549, 0.0
    %v558 = vmax.f32 %v550, 0.0
    %v559 = vmax.f32 %v551, 0.0
    %v560 = vmax.f32 %v552, 0.0
    %v561 = vmax.f32 %v553, 0.0
    %v562 = vld [vmem:[%s3] sm:$0xff]
    %v563 = vld [vmem:[%s3 + $0x8] sm:$0x3f]
    %vm564 = vcmask 228352
    %v566 = vsel %vm564, %v562, 0
    %v569 = vsel %vm564, %v563, 0
    %vm571 = vcmask 1043456
    %v573 = vsel %vm571, %v560, 0
    %v576 = vsel %vm571, %v561, 0
    %578 = vmatprep.subr.mxu0 0.0
    %579 = vmatpush1.msra.mxu0 0.0
    %580 = vmatprep.subr.mxu0 0.0
    %581 = vmatpush1.msra.mxu0 0.0
    %582 = vmatprep.subr.mxu0 0.0
    %583 = vmatpush1.msra.mxu0 0.0
    %584 = vmatprep.subr.mxu0 0.0
    %585 = vmatpush1.msra.mxu0 0.0
    %586 = vmatprep.subr.mxu0 0.0
    %587 = vmatpush1.msra.mxu0 0.0
    %588 = vmatprep.subr.mxu0 0.0
    %589 = vmatpush1.msra.mxu0 0.0
    %590 = vmatprep.subr.mxu0 0.0
    %591 = vmatpush1.msra.mxu0 0.0
    %592 = vmatprep.subr.mxu0 0.0
    %593 = vmatpush1.msra.mxu0 0.0
    %594 = vmatprep.subr.mxu0 0.0
    %595 = vmatpush1.msra.mxu0 0.0
    %596 = vmatprep.subr.mxu0 0.0
    %597 = vmatpush1.msra.mxu0 0.0
    %598 = vmatprep.subr.mxu0 0.0
    %599 = vmatpush1.msra.mxu0 0.0
    %600 = vmatprep.subr.mxu0 0.0
    %601 = vmatpush1.msra.mxu0 0.0
    %602 = vmatprep.subr.mxu0 %v576
    %603 = vmatpush1.msra.mxu0 %v573
    %604 = vmatprep.subr.mxu0 %v559
    %605 = vmatpush1.msra.mxu0 %v558
    %606 = vmatprep.subr.mxu0 %v557
    %607 = vmatpush1.msra.mxu0 %v556
    %608 = vmatprep.subr.mxu0 %v555
    %609 = vmatpush1.msra.mxu0 %v554
    %610 = vmatprep.subr.mxu0 0.0
    %611 = vmatpush2.msra.mxu0 0.0
    %612 = vmatprep.subr.mxu0 0.0
    %613 = vmatpush2.msra.mxu0 0.0
    %614 = vmatprep.subr.mxu0 0.0
    %615 = vmatpush2.msra.mxu0 0.0
    %616 = vmatprep.subr.mxu0 0.0
    %617 = vmatpush2.msra.mxu0 0.0
    %618 = vmatprep.subr.mxu0 0.0
    %619 = vmatpush2.msra.mxu0 0.0
    %620 = vmatprep.subr.mxu0 0.0
    %621 = vmatpush2.msra.mxu0 0.0
    %622 = vmatprep.subr.mxu0 0.0
    %623 = vmatpush2.msra.mxu0 0.0
    %624 = vmatprep.subr.mxu0 0.0
    %625 = vmatpush2.msra.mxu0 0.0
    %626 = vmatprep.subr.mxu0 0.0
    %627 = vmatpush2.msra.mxu0 0.0
    %628 = vmatprep.subr.mxu0 0.0
    %629 = vmatpush2.msra.mxu0 0.0
    %630 = vmatprep.subr.mxu0 0.0
    %631 = vmatpush2.msra.mxu0 0.0
    %632 = vmatprep.subr.mxu0 0.0
    %633 = vmatpush2.msra.mxu0 0.0
    %634 = vmatprep.subr.mxu0 0.0
    %635 = vmatpush2.msra.mxu0 0.0
    %636 = vmatprep.subr.mxu0 0.0
    %637 = vmatpush2.msra.mxu0 0.0
    %638 = vmatprep.subr.mxu0 0.0
    %639 = vmatpush2.msra.mxu0 0.0
    %640 = vmatprep.subr.mxu0 0.0
    %641 = vmatpush2.msra.mxu0 0.0
    %642 = vmatprep.mubr.f32.mxu0 0.0
    %643 = vmatmul.mubr.f32.gmra.mxu0 %v566
    %v644 = vpop.f32.mrf.mxu0
    %v645 = vadd.f32 0.0, %v644
    %v646 = vpop.f32.mrf.mxu0
    %v647 = vadd.f32 0.0, %v646
    %648 = vmatprep.mubr.f32.mxu0 0.0
    %649 = vmatmul.mubr.f32.gmra.mxu0 %v569
    %v650 = vpop.f32.mrf.mxu0
    %v651 = vadd.f32 0.0, %v650
    %v652 = vpop.f32.mrf.mxu0
    %v653 = vadd.f32 0.0, %v652
    %654 = vdwg.mxu0
    %v655 = vld [vmem:[%s4] sm:$0xff]
    %v656 = vld [vmem:[%s4 + $0x8] sm:$0xff]
    %v657 = vld [vmem:[%s4 + $0x10] sm:$0xff]
    %v658 = vld [vmem:[%s4 + $0x18] sm:$0xff]
    %v659 = vld [vmem:[%s4 + $0x20] sm:$0xff]
    %v660 = vld [vmem:[%s4 + $0x28] sm:$0xff]
    %v661 = vld [vmem:[%s4 + $0x30] sm:$0xff]
    %v662 = vld [vmem:[%s4 + $0x38] sm:$0xff]
    %v663 = vld [vmem:[%s4 + $0x40] sm:$0xff]
    %v664 = vld [vmem:[%s4 + $0x48] sm:$0xff]
    %v665 = vld [vmem:[%s4 + $0x50] sm:$0xff]
    %v666 = vld [vmem:[%s4 + $0x58] sm:$0xff]
    %v667 = vld [vmem:[%s4 + $0x60] sm:$0xff]
    %v668 = vld [vmem:[%s4 + $0x68] sm:$0xff]
    %v669 = vld [vmem:[%s4 + $0x70] sm:$0xff]
    %v670 = vld [vmem:[%s4 + $0x78] sm:$0xff]
    %v671 = vld [vmem:[%s4 + $0x80] sm:$0xff]
    %v672 = vld [vmem:[%s4 + $0x88] sm:$0xff]
    %v673 = vld [vmem:[%s4 + $0x90] sm:$0xff]
    %v674 = vld [vmem:[%s4 + $0x98] sm:$0xff]
    %v675 = vld [vmem:[%s4 + $0xa0] sm:$0xff]
    %vm676 = vcmask 326656
    %v678 = vsel %vm676, %v647, 0
    %v681 = vsel %vm676, %v653, 0
    %683 = vmatprep.subr.mxu0 0.0
    %684 = vmatpush1.msra.mxu0 %v670
    %685 = vmatprep.subr.mxu0 0.0
    %686 = vmatpush1.msra.mxu0 %v669
    %687 = vmatprep.subr.mxu0 0.0
    %688 = vmatpush1.msra.mxu0 %v668
    %689 = vmatprep.subr.mxu0 0.0
    %690 = vmatpush1.msra.mxu0 %v667
    %691 = vmatprep.subr.mxu0 0.0
    %692 = vmatpush1.msra.mxu0 %v666
    %693 = vmatprep.subr.mxu0 0.0
    %694 = vmatpush1.msra.mxu0 %v665
    %695 = vmatprep.subr.mxu0 0.0
    %696 = vmatpush1.msra.mxu0 %v664
    %697 = vmatprep.subr.mxu0 0.0
    %698 = vmatpush1.msra.mxu0 %v663
    %699 = vmatprep.subr.mxu0 0.0
    %700 = vmatpush1.msra.mxu0 %v662
    %701 = vmatprep.subr.mxu0 0.0
    %702 = vmatpush1.msra.mxu0 %v661
    %703 = vmatprep.subr.mxu0 0.0
    %704 = vmatpush1.msra.mxu0 %v660
    %705 = vmatprep.subr.mxu0 0.0
    %706 = vmatpush1.msra.mxu0 %v659
    %707 = vmatprep.subr.mxu0 0.0
    %708 = vmatpush1.msra.mxu0 %v658
    %709 = vmatprep.subr.mxu0 0.0
    %710 = vmatpush1.msra.mxu0 %v657
    %711 = vmatprep.subr.mxu0 0.0
    %712 = vmatpush1.msra.mxu0 %v656
    %713 = vmatprep.subr.mxu0 0.0
    %714 = vmatpush1.msra.mxu0 %v655
    %715 = vmatprep.subr.mxu0 0.0
    %716 = vmatpush2.msra.mxu0 0.0
    %717 = vmatprep.subr.mxu0 0.0
    %718 = vmatpush2.msra.mxu0 0.0
    %719 = vmatprep.subr.mxu0 0.0
    %720 = vmatpush2.msra.mxu0 0.0
    %721 = vmatprep.subr.mxu0 0.0
    %722 = vmatpush2.msra.mxu0 0.0
    %723 = vmatprep.subr.mxu0 0.0
    %724 = vmatpush2.msra.mxu0 0.0
    %725 = vmatprep.subr.mxu0 0.0
    %726 = vmatpush2.msra.mxu0 0.0
    %727 = vmatprep.subr.mxu0 0.0
    %728 = vmatpush2.msra.mxu0 0.0
    %729 = vmatprep.subr.mxu0 0.0
    %730 = vmatpush2.msra.mxu0 0.0
    %731 = vmatprep.subr.mxu0 0.0
    %732 = vmatpush2.msra.mxu0 0.0
    %733 = vmatprep.subr.mxu0 0.0
    %734 = vmatpush2.msra.mxu0 0.0
    %735 = vmatprep.subr.mxu0 0.0
    %736 = vmatpush2.msra.mxu0 0.0
    %737 = vmatprep.subr.mxu0 0.0
    %738 = vmatpush2.msra.mxu0 %v675
    %739 = vmatprep.subr.mxu0 0.0
    %740 = vmatpush2.msra.mxu0 %v674
    %741 = vmatprep.subr.mxu0 0.0
    %742 = vmatpush2.msra.mxu0 %v673
    %743 = vmatprep.subr.mxu0 0.0
    %744 = vmatpush2.msra.mxu0 %v672
    %745 = vmatprep.subr.mxu0 0.0
    %746 = vmatpush2.msra.mxu0 %v671
    %747 = vmatprep.mubr.f32.mxu0 %v678
    %748 = vmatmul.mubr.f32.gmra.mxu0 %v645
    %v749 = vpop.f32.mrf.mxu0
    %v750 = vadd.f32 0.0, %v749
    %v751 = vpop.f32.mrf.mxu0
    %752 = vmatprep.mubr.f32.mxu0 %v681
    %753 = vmatmul.mubr.f32.gmra.mxu0 %v651
    %v754 = vpop.f32.mrf.mxu0
    %v755 = vadd.f32 0.0, %v754
    %v756 = vpop.f32.mrf.mxu0
    %757 = vdwg.mxu0
    %v758 = vpack.c.bf16 %v755, %v750
    %v759 = vld [vmem:[%s5] sm:$0xff]
    %v760 = vld [vmem:[%s5 + $0x8] sm:$0xff]
    %v761 = vld [vmem:[%s5 + $0x10] sm:$0xff]
    %v762 = vld [vmem:[%s5 + $0x18] sm:$0xff]
    %v763 = vld [vmem:[%s5 + $0x20] sm:$0xff]
    %v764 = vld [vmem:[%s5 + $0x28] sm:$0xff]
    %v765 = vld [vmem:[%s5 + $0x30] sm:$0xff]
    %v766 = vld [vmem:[%s5 + $0x38] sm:$0xff]
    %v767 = vld [vmem:[%s5 + $0x40] sm:$0xff]
    %v768 = vld [vmem:[%s5 + $0x48] sm:$0xff]
    %v769 = vld [vmem:[%s5 + $0x50] sm:$0x33]
    %s770 = scalar_lea.vmem %s5, 88
    %v771 = vld [vmem:[%s770] sm:$0xff]
    %v772 = vld [vmem:[%s770 + $0x8] sm:$0xff]
    %v773 = vld [vmem:[%s770 + $0x10] sm:$0xff]
    %v774 = vld [vmem:[%s770 + $0x18] sm:$0xff]
    %v775 = vld [vmem:[%s770 + $0x20] sm:$0xff]
    %v776 = vld [vmem:[%s770 + $0x28] sm:$0xff]
    %v777 = vld [vmem:[%s770 + $0x30] sm:$0xff]
    %v778 = vld [vmem:[%s770 + $0x38] sm:$0xff]
    %v779 = vld [vmem:[%s770 + $0x40] sm:$0xff]
    %v780 = vld [vmem:[%s770 + $0x48] sm:$0xff]
    %v781 = vld [vmem:[%s770 + $0x50] sm:$0x33]
    %v783 = vshrl.u32 %v758, 16
    %v785 = vshll.u32 %v758, 16
    %v787 = vrot.slane %v785, 1
    %v788 = vor.u32 %v783, %v787
    %v800 = vunpack.c.l.b16 %v771
    %v801 = vunpack.c.h.b16 %v771
    %v802 = vunpack.c.l.b16 %v772
    %v803 = vunpack.c.h.b16 %v772
    %v804 = vunpack.c.l.b16 %v773
    %v805 = vunpack.c.h.b16 %v773
    %v806 = vunpack.c.l.b16 %v774
    %v807 = vunpack.c.h.b16 %v774
    %v808 = vunpack.c.l.b16 %v775
    %v809 = vunpack.c.h.b16 %v775
    %v810 = vunpack.c.l.b16 %v776
    %v811 = vunpack.c.h.b16 %v776
    %v812 = vunpack.c.l.b16 %v777
    %v813 = vunpack.c.h.b16 %v777
    %v814 = vunpack.c.l.b16 %v778
    %v815 = vunpack.c.h.b16 %v778
    %v816 = vunpack.c.l.b16 %v779
    %v817 = vunpack.c.h.b16 %v779
    %v818 = vunpack.c.l.b16 %v780
    %v819 = vunpack.c.h.b16 %v780
    %v820 = vunpack.c.l.b16 %v781
    %v821 = vunpack.c.h.b16 %v781
    %v822 = vpack.c.b16 %v802, %v800
    %v823 = vpack.c.b16 %v803, %v801
    %v824 = vpack.c.b16 %v806, %v804
    %v825 = vpack.c.b16 %v807, %v805
    %v826 = vpack.c.b16 %v810, %v808
    %v827 = vpack.c.b16 %v811, %v809
    %v828 = vpack.c.b16 %v814, %v812
    %v829 = vpack.c.b16 %v815, %v813
    %v830 = vpack.c.b16 %v818, %v816
    %v831 = vpack.c.b16 %v819, %v817
    %v832 = vpack.c.b16 %v820, %v820
    %v833 = vpack.c.b16 %v821, %v821
    %vm844 = vcmask 687104
    %v846 = vsel %vm844, %v788, 0
    %vm848 = vcmask 1041408
    %v850 = vsel %vm848, %v832, 0
    %v853 = vsel %vm848, %v833, 0
    %855 = vmatprep.subr.bf16.mxu0 0
    %856 = vmatpush1.bf16.msra.mxu0 0
    %857 = vmatprep.subr.bf16.mxu0 0
    %858 = vmatpush1.bf16.msra.mxu0 0
    %859 = vmatprep.subr.bf16.mxu0 %v853
    %860 = vmatpush1.bf16.msra.mxu0 %v850
    %861 = vmatprep.subr.bf16.mxu0 %v831
    %862 = vmatpush1.bf16.msra.mxu0 %v830
    %863 = vmatprep.subr.bf16.mxu0 %v829
    %864 = vmatpush1.bf16.msra.mxu0 %v828
    %865 = vmatprep.subr.bf16.mxu0 %v827
    %866 = vmatpush1.bf16.msra.mxu0 %v826
    %867 = vmatprep.subr.bf16.mxu0 %v825
    %868 = vmatpush1.bf16.msra.mxu0 %v824
    %869 = vmatprep.subr.bf16.mxu0 %v823
    %870 = vmatpush1.bf16.msra.mxu0 %v822
    %871 = vmatprep.subr.bf16.mxu0 0
    %872 = vmatpush2.bf16.msra.mxu0 0
    %873 = vmatprep.subr.bf16.mxu0 0
    %874 = vmatpush2.bf16.msra.mxu0 0
    %875 = vmatprep.subr.bf16.mxu0 0
    %876 = vmatpush2.bf16.msra.mxu0 0
    %877 = vmatprep.subr.bf16.mxu0 0
    %878 = vmatpush2.bf16.msra.mxu0 0
    %879 = vmatprep.subr.bf16.mxu0 0
    %880 = vmatpush2.bf16.msra.mxu0 0
    %881 = vmatprep.subr.bf16.mxu0 0
    %882 = vmatpush2.bf16.msra.mxu0 0
    %883 = vmatprep.subr.bf16.mxu0 0
    %884 = vmatpush2.bf16.msra.mxu0 0
    %885 = vmatprep.subr.bf16.mxu0 0
    %886 = vmatpush2.bf16.msra.mxu0 0
    %887 = vmatprep.mubr.bf16.mxu0 0
    %888 = vmatmul.mubr.bf16.gmra.mxu0 %v846
    %v889 = vpop.f32.mrf.mxu0
    %v890 = vadd.f32 0.0, %v889
    %v891 = vpop.f32.mrf.mxu0
    %v892 = vadd.f32 0.0, %v891
    %v893 = vpop.f32.mrf.mxu0
    %v894 = vadd.f32 0.0, %v893
    %v895 = vpop.f32.mrf.mxu0
    %v896 = vadd.f32 0.0, %v895
    %897 = vdwg.mxu0
    %v909 = vunpack.c.l.b16 %v759
    %v910 = vunpack.c.h.b16 %v759
    %v911 = vunpack.c.l.b16 %v760
    %v912 = vunpack.c.h.b16 %v760
    %v913 = vunpack.c.l.b16 %v761
    %v914 = vunpack.c.h.b16 %v761
    %v915 = vunpack.c.l.b16 %v762
    %v916 = vunpack.c.h.b16 %v762
    %v917 = vunpack.c.l.b16 %v763
    %v918 = vunpack.c.h.b16 %v763
    %v919 = vunpack.c.l.b16 %v764
    %v920 = vunpack.c.h.b16 %v764
    %v921 = vunpack.c.l.b16 %v765
    %v922 = vunpack.c.h.b16 %v765
    %v923 = vunpack.c.l.b16 %v766
    %v924 = vunpack.c.h.b16 %v766
    %v925 = vunpack.c.l.b16 %v767
    %v926 = vunpack.c.h.b16 %v767
    %v927 = vunpack.c.l.b16 %v768
    %v928 = vunpack.c.h.b16 %v768
    %v929 = vunpack.c.l.b16 %v769
    %v930 = vunpack.c.h.b16 %v769
    %v931 = vpack.c.b16 %v911, %v909
    %v932 = vpack.c.b16 %v912, %v910
    %v933 = vpack.c.b16 %v915, %v913
    %v934 = vpack.c.b16 %v916, %v914
    %v935 = vpack.c.b16 %v919, %v917
    %v936 = vpack.c.b16 %v920, %v918
    %v937 = vpack.c.b16 %v923, %v921
    %v938 = vpack.c.b16 %v924, %v922
    %v939 = vpack.c.b16 %v927, %v925
    %v940 = vpack.c.b16 %v928, %v926
    %v941 = vpack.c.b16 %v929, %v929
    %v942 = vpack.c.b16 %v930, %v930
    %v953 = vsel %vm844, %v758, 0
    %v956 = vsel %vm848, %v941, 0
    %v959 = vsel %vm848, %v942, 0
    %961 = vmatprep.subr.bf16.mxu0 0
    %962 = vmatpush1.bf16.msra.mxu0 0
    %963 = vmatprep.subr.bf16.mxu0 0
    %964 = vmatpush1.bf16.msra.mxu0 0
    %965 = vmatprep.subr.bf16.mxu0 %v959
    %966 = vmatpush1.bf16.msra.mxu0 %v956
    %967 = vmatprep.subr.bf16.mxu0 %v940
    %968 = vmatpush1.bf16.msra.mxu0 %v939
    %969 = vmatprep.subr.bf16.mxu0 %v938
    %970 = vmatpush1.bf16.msra.mxu0 %v937
    %971 = vmatprep.subr.bf16.mxu0 %v936
    %972 = vmatpush1.bf16.msra.mxu0 %v935
    %973 = vmatprep.subr.bf16.mxu0 %v934
    %974 = vmatpush1.bf16.msra.mxu0 %v933
    %975 = vmatprep.subr.bf16.mxu0 %v932
    %976 = vmatpush1.bf16.msra.mxu0 %v931
    %977 = vmatprep.subr.bf16.mxu0 0
    %978 = vmatpush2.bf16.msra.mxu0 0
    %979 = vmatprep.subr.bf16.mxu0 0
    %980 = vmatpush2.bf16.msra.mxu0 0
    %981 = vmatprep.subr.bf16.mxu0 0
    %982 = vmatpush2.bf16.msra.mxu0 0
    %983 = vmatprep.subr.bf16.mxu0 0
    %984 = vmatpush2.bf16.msra.mxu0 0
    %985 = vmatprep.subr.bf16.mxu0 0
    %986 = vmatpush2.bf16.msra.mxu0 0
    %987 = vmatprep.subr.bf16.mxu0 0
    %988 = vmatpush2.bf16.msra.mxu0 0
    %989 = vmatprep.subr.bf16.mxu0 0
    %990 = vmatpush2.bf16.msra.mxu0 0
    %991 = vmatprep.subr.bf16.mxu0 0
    %992 = vmatpush2.bf16.msra.mxu0 0
    %993 = vmatprep.mubr.bf16.mxu0 0
    %994 = vmatmul.mubr.bf16.gmra.mxu0 %v953
    %v995 = vpop.f32.mrf.mxu0
    %v996 = vadd.f32 %v890, %v995
    %v997 = vpop.f32.mrf.mxu0
    %v998 = vadd.f32 %v892, %v997
    %v999 = vpop.f32.mrf.mxu0
    %v1000 = vadd.f32 %v894, %v999
    %v1001 = vpop.f32.mrf.mxu0
    %v1002 = vadd.f32 %v896, %v1001
    %1003 = vdwg.mxu0
    %s1004 = scalar_lea.vmem %s5, 176
    %v1005 = vld [vmem:[%s1004] sm:$0xff]
    %v1006 = vld [vmem:[%s1004 + $0x8] sm:$0xff]
    %v1007 = vld [vmem:[%s1004 + $0x10] sm:$0xff]
    %v1008 = vld [vmem:[%s1004 + $0x18] sm:$0xff]
    %v1009 = vld [vmem:[%s1004 + $0x20] sm:$0xff]
    %v1010 = vld [vmem:[%s1004 + $0x28] sm:$0xff]
    %v1011 = vld [vmem:[%s1004 + $0x30] sm:$0xff]
    %v1012 = vld [vmem:[%s1004 + $0x38] sm:$0xff]
    %v1013 = vld [vmem:[%s1004 + $0x40] sm:$0xff]
    %v1014 = vld [vmem:[%s1004 + $0x48] sm:$0xff]
    %v1015 = vld [vmem:[%s1004 + $0x50] sm:$0x33]
    %v1017 = vrot.slane %v758, 1
    %v1029 = vunpack.c.l.b16 %v1005
    %v1030 = vunpack.c.h.b16 %v1005
    %v1031 = vunpack.c.l.b16 %v1006
    %v1032 = vunpack.c.h.b16 %v1006
    %v1033 = vunpack.c.l.b16 %v1007
    %v1034 = vunpack.c.h.b16 %v1007
    %v1035 = vunpack.c.l.b16 %v1008
    %v1036 = vunpack.c.h.b16 %v1008
    %v1037 = vunpack.c.l.b16 %v1009
    %v1038 = vunpack.c.h.b16 %v1009
    %v1039 = vunpack.c.l.b16 %v1010
    %v1040 = vunpack.c.h.b16 %v1010
    %v1041 = vunpack.c.l.b16 %v1011
    %v1042 = vunpack.c.h.b16 %v1011
    %v1043 = vunpack.c.l.b16 %v1012
    %v1044 = vunpack.c.h.b16 %v1012
    %v1045 = vunpack.c.l.b16 %v1013
    %v1046 = vunpack.c.h.b16 %v1013
    %v1047 = vunpack.c.l.b16 %v1014
    %v1048 = vunpack.c.h.b16 %v1014
    %v1049 = vunpack.c.l.b16 %v1015
    %v1050 = vunpack.c.h.b16 %v1015
    %v1051 = vpack.c.b16 %v1031, %v1029
    %v1052 = vpack.c.b16 %v1032, %v1030
    %v1053 = vpack.c.b16 %v1035, %v1033
    %v1054 = vpack.c.b16 %v1036, %v1034
    %v1055 = vpack.c.b16 %v1039, %v1037
    %v1056 = vpack.c.b16 %v1040, %v1038
    %v1057 = vpack.c.b16 %v1043, %v1041
    %v1058 = vpack.c.b16 %v1044, %v1042
    %v1059 = vpack.c.b16 %v1047, %v1045
    %v1060 = vpack.c.b16 %v1048, %v1046
    %v1061 = vpack.c.b16 %v1049, %v1049
    %v1062 = vpack.c.b16 %v1050, %v1050
    %v1074 = vsel %vm844, %v1017, 0
    %v1077 = vsel %vm848, %v1061, 0
    %v1080 = vsel %vm848, %v1062, 0
    %1082 = vmatprep.subr.bf16.mxu0 0
    %1083 = vmatpush1.bf16.msra.mxu0 0
    %1084 = vmatprep.subr.bf16.mxu0 0
    %1085 = vmatpush1.bf16.msra.mxu0 0
    %1086 = vmatprep.subr.bf16.mxu0 %v1080
    %1087 = vmatpush1.bf16.msra.mxu0 %v1077
    %1088 = vmatprep.subr.bf16.mxu0 %v1060
    %1089 = vmatpush1.bf16.msra.mxu0 %v1059
    %1090 = vmatprep.subr.bf16.mxu0 %v1058
    %1091 = vmatpush1.bf16.msra.mxu0 %v1057
    %1092 = vmatprep.subr.bf16.mxu0 %v1056
    %1093 = vmatpush1.bf16.msra.mxu0 %v1055
    %1094 = vmatprep.subr.bf16.mxu0 %v1054
    %1095 = vmatpush1.bf16.msra.mxu0 %v1053
    %1096 = vmatprep.subr.bf16.mxu0 %v1052
    %1097 = vmatpush1.bf16.msra.mxu0 %v1051
    %1098 = vmatprep.subr.bf16.mxu0 0
    %1099 = vmatpush2.bf16.msra.mxu0 0
    %1100 = vmatprep.subr.bf16.mxu0 0
    %1101 = vmatpush2.bf16.msra.mxu0 0
    %1102 = vmatprep.subr.bf16.mxu0 0
    %1103 = vmatpush2.bf16.msra.mxu0 0
    %1104 = vmatprep.subr.bf16.mxu0 0
    %1105 = vmatpush2.bf16.msra.mxu0 0
    %1106 = vmatprep.subr.bf16.mxu0 0
    %1107 = vmatpush2.bf16.msra.mxu0 0
    %1108 = vmatprep.subr.bf16.mxu0 0
    %1109 = vmatpush2.bf16.msra.mxu0 0
    %1110 = vmatprep.subr.bf16.mxu0 0
    %1111 = vmatpush2.bf16.msra.mxu0 0
    %1112 = vmatprep.subr.bf16.mxu0 0
    %1113 = vmatpush2.bf16.msra.mxu0 0
    %1114 = vmatprep.mubr.bf16.mxu0 0
    %1115 = vmatmul.mubr.bf16.gmra.mxu0 %v1074
    %v1116 = vpop.f32.mrf.mxu0
    %v1117 = vadd.f32 0.0, %v1116
    %v1118 = vpop.f32.mrf.mxu0
    %v1119 = vadd.f32 0.0, %v1118
    %v1120 = vpop.f32.mrf.mxu0
    %v1121 = vadd.f32 0.0, %v1120
    %v1122 = vpop.f32.mrf.mxu0
    %v1123 = vadd.f32 0.0, %v1122
    %1124 = vdwg.mxu0
    %v1125 = vadd.f32 %v996, %v1117
    %v1126 = vadd.f32 %v998, %v1119
    %v1127 = vadd.f32 %v1000, %v1121
    %v1128 = vadd.f32 %v1002, %v1123
    %s1129 = scalar_lea.vmem %s5, 264
    %v1130 = vld [vmem:[%s1129] sm:$0xff]
    %v1131 = vld [vmem:[%s1129 + $0x8] sm:$0xff]
    %v1132 = vld [vmem:[%s1129 + $0x10] sm:$0xff]
    %v1133 = vld [vmem:[%s1129 + $0x18] sm:$0xff]
    %v1134 = vld [vmem:[%s1129 + $0x20] sm:$0xff]
    %v1135 = vld [vmem:[%s1129 + $0x28] sm:$0xff]
    %v1136 = vld [vmem:[%s1129 + $0x30] sm:$0xff]
    %v1137 = vld [vmem:[%s1129 + $0x38] sm:$0xff]
    %v1138 = vld [vmem:[%s1129 + $0x40] sm:$0xff]
    %v1139 = vld [vmem:[%s1129 + $0x48] sm:$0xff]
    %v1140 = vld [vmem:[%s1129 + $0x50] sm:$0x33]
    %v1141 = vrot.slane %v783, 1
    %v1142 = vrot.slane %v785, 2
    %v1143 = vor.u32 %v1141, %v1142
    %v1155 = vunpack.c.l.b16 %v1130
    %v1156 = vunpack.c.h.b16 %v1130
    %v1157 = vunpack.c.l.b16 %v1131
    %v1158 = vunpack.c.h.b16 %v1131
    %v1159 = vunpack.c.l.b16 %v1132
    %v1160 = vunpack.c.h.b16 %v1132
    %v1161 = vunpack.c.l.b16 %v1133
    %v1162 = vunpack.c.h.b16 %v1133
    %v1163 = vunpack.c.l.b16 %v1134
    %v1164 = vunpack.c.h.b16 %v1134
    %v1165 = vunpack.c.l.b16 %v1135
    %v1166 = vunpack.c.h.b16 %v1135
    %v1167 = vunpack.c.l.b16 %v1136
    %v1168 = vunpack.c.h.b16 %v1136
    %v1169 = vunpack.c.l.b16 %v1137
    %v1170 = vunpack.c.h.b16 %v1137
    %v1171 = vunpack.c.l.b16 %v1138
    %v1172 = vunpack.c.h.b16 %v1138
    %v1173 = vunpack.c.l.b16 %v1139
    %v1174 = vunpack.c.h.b16 %v1139
    %v1175 = vunpack.c.l.b16 %v1140
    %v1176 = vunpack.c.h.b16 %v1140
    %v1177 = vpack.c.b16 %v1157, %v1155
    %v1178 = vpack.c.b16 %v1158, %v1156
    %v1179 = vpack.c.b16 %v1161, %v1159
    %v1180 = vpack.c.b16 %v1162, %v1160
    %v1181 = vpack.c.b16 %v1165, %v1163
    %v1182 = vpack.c.b16 %v1166, %v1164
    %v1183 = vpack.c.b16 %v1169, %v1167
    %v1184 = vpack.c.b16 %v1170, %v1168
    %v1185 = vpack.c.b16 %v1173, %v1171
    %v1186 = vpack.c.b16 %v1174, %v1172
    %v1187 = vpack.c.b16 %v1175, %v1175
    %v1188 = vpack.c.b16 %v1176, %v1176
    %v1200 = vsel %vm844, %v1143, 0
    %v1203 = vsel %vm848, %v1187, 0
    %v1206 = vsel %vm848, %v1188, 0
    %1208 = vmatprep.subr.bf16.mxu0 0
    %1209 = vmatpush1.bf16.msra.mxu0 0
    %1210 = vmatprep.subr.bf16.mxu0 0
    %1211 = vmatpush1.bf16.msra.mxu0 0
    %1212 = vmatprep.subr.bf16.mxu0 %v1206
    %1213 = vmatpush1.bf16.msra.mxu0 %v1203
    %1214 = vmatprep.subr.bf16.mxu0 %v1186
    %1215 = vmatpush1.bf16.msra.mxu0 %v1185
    %1216 = vmatprep.subr.bf16.mxu0 %v1184
    %1217 = vmatpush1.bf16.msra.mxu0 %v1183
    %1218 = vmatprep.subr.bf16.mxu0 %v1182
    %1219 = vmatpush1.bf16.msra.mxu0 %v1181
    %1220 = vmatprep.subr.bf16.mxu0 %v1180
    %1221 = vmatpush1.bf16.msra.mxu0 %v1179
    %1222 = vmatprep.subr.bf16.mxu0 %v1178
    %1223 = vmatpush1.bf16.msra.mxu0 %v1177
    %1224 = vmatprep.subr.bf16.mxu0 0
    %1225 = vmatpush2.bf16.msra.mxu0 0
    %1226 = vmatprep.subr.bf16.mxu0 0
    %1227 = vmatpush2.bf16.msra.mxu0 0
    %1228 = vmatprep.subr.bf16.mxu0 0
    %1229 = vmatpush2.bf16.msra.mxu0 0
    %1230 = vmatprep.subr.bf16.mxu0 0
    %1231 = vmatpush2.bf16.msra.mxu0 0
    %1232 = vmatprep.subr.bf16.mxu0 0
    %1233 = vmatpush2.bf16.msra.mxu0 0
    %1234 = vmatprep.subr.bf16.mxu0 0
    %1235 = vmatpush2.bf16.msra.mxu0 0
    %1236 = vmatprep.subr.bf16.mxu0 0
    %1237 = vmatpush2.bf16.msra.mxu0 0
    %1238 = vmatprep.subr.bf16.mxu0 0
    %1239 = vmatpush2.bf16.msra.mxu0 0
    %1240 = vmatprep.mubr.bf16.mxu0 0
    %1241 = vmatmul.mubr.bf16.gmra.mxu0 %v1200
    %v1242 = vpop.f32.mrf.mxu0
    %v1243 = vadd.f32 0.0, %v1242
    %v1244 = vpop.f32.mrf.mxu0
    %v1245 = vadd.f32 0.0, %v1244
    %v1246 = vpop.f32.mrf.mxu0
    %v1247 = vadd.f32 0.0, %v1246
    %v1248 = vpop.f32.mrf.mxu0
    %v1249 = vadd.f32 0.0, %v1248
    %1250 = vdwg.mxu0
    %v1251 = vadd.f32 %v1125, %v1243
    %v1252 = vadd.f32 %v1126, %v1245
    %v1253 = vadd.f32 %v1127, %v1247
    %v1254 = vadd.f32 %v1128, %v1249
    %s1255 = scalar_lea.vmem %s5, 352
    %v1256 = vld [vmem:[%s1255] sm:$0xff]
    %v1257 = vld [vmem:[%s1255 + $0x8] sm:$0xff]
    %v1258 = vld [vmem:[%s1255 + $0x10] sm:$0xff]
    %v1259 = vld [vmem:[%s1255 + $0x18] sm:$0xff]
    %v1260 = vld [vmem:[%s1255 + $0x20] sm:$0xff]
    %v1261 = vld [vmem:[%s1255 + $0x28] sm:$0xff]
    %v1262 = vld [vmem:[%s1255 + $0x30] sm:$0xff]
    %v1263 = vld [vmem:[%s1255 + $0x38] sm:$0xff]
    %v1264 = vld [vmem:[%s1255 + $0x40] sm:$0xff]
    %v1265 = vld [vmem:[%s1255 + $0x48] sm:$0xff]
    %v1266 = vld [vmem:[%s1255 + $0x50] sm:$0x33]
    %v1267 = vrot.slane %v758, 2
    %v1279 = vunpack.c.l.b16 %v1256
    %v1280 = vunpack.c.h.b16 %v1256
    %v1281 = vunpack.c.l.b16 %v1257
    %v1282 = vunpack.c.h.b16 %v1257
    %v1283 = vunpack.c.l.b16 %v1258
    %v1284 = vunpack.c.h.b16 %v1258
    %v1285 = vunpack.c.l.b16 %v1259
    %v1286 = vunpack.c.h.b16 %v1259
    %v1287 = vunpack.c.l.b16 %v1260
    %v1288 = vunpack.c.h.b16 %v1260
    %v1289 = vunpack.c.l.b16 %v1261
    %v1290 = vunpack.c.h.b16 %v1261
    %v1291 = vunpack.c.l.b16 %v1262
    %v1292 = vunpack.c.h.b16 %v1262
    %v1293 = vunpack.c.l.b16 %v1263
    %v1294 = vunpack.c.h.b16 %v1263
    %v1295 = vunpack.c.l.b16 %v1264
    %v1296 = vunpack.c.h.b16 %v1264
    %v1297 = vunpack.c.l.b16 %v1265
    %v1298 = vunpack.c.h.b16 %v1265
    %v1299 = vunpack.c.l.b16 %v1266
    %v1300 = vunpack.c.h.b16 %v1266
    %v1301 = vpack.c.b16 %v1281, %v1279
    %v1302 = vpack.c.b16 %v1282, %v1280
    %v1303 = vpack.c.b16 %v1285, %v1283
    %v1304 = vpack.c.b16 %v1286, %v1284
    %v1305 = vpack.c.b16 %v1289, %v1287
    %v1306 = vpack.c.b16 %v1290, %v1288
    %v1307 = vpack.c.b16 %v1293, %v1291
    %v1308 = vpack.c.b16 %v1294, %v1292
    %v1309 = vpack.c.b16 %v1297, %v1295
    %v1310 = vpack.c.b16 %v1298, %v1296
    %v1311 = vpack.c.b16 %v1299, %v1299
    %v1312 = vpack.c.b16 %v1300, %v1300
    %v1324 = vsel %vm844, %v1267, 0
    %v1327 = vsel %vm848, %v1311, 0
    %v1330 = vsel %vm848, %v1312, 0
    %1332 = vmatprep.subr.bf16.mxu0 0
    %1333 = vmatpush1.bf16.msra.mxu0 0
    %1334 = vmatprep.subr.bf16.mxu0 0
    %1335 = vmatpush1.bf16.msra.mxu0 0
    %1336 = vmatprep.subr.bf16.mxu0 %v1330
    %1337 = vmatpush1.bf16.msra.mxu0 %v1327
    %1338 = vmatprep.subr.bf16.mxu0 %v1310
    %1339 = vmatpush1.bf16.msra.mxu0 %v1309
    %1340 = vmatprep.subr.bf16.mxu0 %v1308
    %1341 = vmatpush1.bf16.msra.mxu0 %v1307
    %1342 = vmatprep.subr.bf16.mxu0 %v1306
    %1343 = vmatpush1.bf16.msra.mxu0 %v1305
    %1344 = vmatprep.subr.bf16.mxu0 %v1304
    %1345 = vmatpush1.bf16.msra.mxu0 %v1303
    %1346 = vmatprep.subr.bf16.mxu0 %v1302
    %1347 = vmatpush1.bf16.msra.mxu0 %v1301
    %1348 = vmatprep.subr.bf16.mxu0 0
    %1349 = vmatpush2.bf16.msra.mxu0 0
    %1350 = vmatprep.subr.bf16.mxu0 0
    %1351 = vmatpush2.bf16.msra.mxu0 0
    %1352 = vmatprep.subr.bf16.mxu0 0
    %1353 = vmatpush2.bf16.msra.mxu0 0
    %1354 = vmatprep.subr.bf16.mxu0 0
    %1355 = vmatpush2.bf16.msra.mxu0 0
    %1356 = vmatprep.subr.bf16.mxu0 0
    %1357 = vmatpush2.bf16.msra.mxu0 0
    %1358 = vmatprep.subr.bf16.mxu0 0
    %1359 = vmatpush2.bf16.msra.mxu0 0
    %1360 = vmatprep.subr.bf16.mxu0 0
    %1361 = vmatpush2.bf16.msra.mxu0 0
    %1362 = vmatprep.subr.bf16.mxu0 0
    %1363 = vmatpush2.bf16.msra.mxu0 0
    %1364 = vmatprep.mubr.bf16.mxu0 0
    %1365 = vmatmul.mubr.bf16.gmra.mxu0 %v1324
    %v1366 = vpop.f32.mrf.mxu0
    %v1367 = vadd.f32 0.0, %v1366
    %v1368 = vpop.f32.mrf.mxu0
    %v1369 = vadd.f32 0.0, %v1368
    %v1370 = vpop.f32.mrf.mxu0
    %v1371 = vadd.f32 0.0, %v1370
    %v1372 = vpop.f32.mrf.mxu0
    %v1373 = vadd.f32 0.0, %v1372
    %1374 = vdwg.mxu0
    %v1375 = vadd.f32 %v1251, %v1367
    %v1376 = vadd.f32 %v1252, %v1369
    %v1377 = vadd.f32 %v1253, %v1371
    %v1378 = vadd.f32 %v1254, %v1373
    %v1379 = vld [vmem:[%s6] sm:$0x3]
    %v1381 = vlaneseq
    %v1382 = vshrl.u32 %v1381, 7
    %v1383 = vsub.s32 0, %v1382
    %v1384 = vrot.slane %v1379, %v1383
    %v1385 = vlaneseq
    %v1386 = vshrl.u32 %v1385, 7
    %v1387 = vsub.s32 1, %v1386
    %v1388 = vrot.slane %v1379, %v1387
    %v1391 = vadd.f32 %v1375, %v1384
    %v1392 = vadd.f32 %v1376, %v1388
    %v1393 = vadd.f32 %v1377, %v1384
    %v1394 = vadd.f32 %v1378, %v1388
    %v1395 = vmax.f32 %v1391, 0.0
    %v1396 = vmax.f32 %v1392, 0.0
    %v1397 = vmax.f32 %v1393, 0.0
    %v1398 = vmax.f32 %v1394, 0.0
    %v1399 = vld [vmem:[%s7] sm:$0x1f]
    %v1400 = vld [vmem:[%s8] sm:$0xff]
    %v1401 = vld [vmem:[%s8 + $0x8] sm:$0xff]
    %v1402 = vld [vmem:[%s8 + $0x10] sm:$0xff]
    %v1403 = vld [vmem:[%s8 + $0x18] sm:$0xff]
    %v1404 = vld [vmem:[%s8 + $0x20] sm:$0xff]
    %v1405 = vld [vmem:[%s8 + $0x28] sm:$0xff]
    %v1406 = vld [vmem:[%s8 + $0x30] sm:$0xff]
    %v1407 = vld [vmem:[%s8 + $0x38] sm:$0xff]
    %v1408 = vld [vmem:[%s8 + $0x40] sm:$0xff]
    %v1409 = vld [vmem:[%s8 + $0x48] sm:$0xff]
    %v1410 = vld [vmem:[%s8 + $0x50] sm:$0xff]
    %v1411 = vld [vmem:[%s8 + $0x58] sm:$0xff]
    %v1412 = vld [vmem:[%s8 + $0x60] sm:$0xff]
    %v1413 = vld [vmem:[%s8 + $0x68] sm:$0xff]
    %v1414 = vld [vmem:[%s8 + $0x70] sm:$0xff]
    %v1415 = vld [vmem:[%s8 + $0x78] sm:$0xff]
    %v1416 = vld [vmem:[%s8 + $0x80] sm:$0xff]
    %v1417 = vld [vmem:[%s8 + $0x88] sm:$0xff]
    %v1418 = vld [vmem:[%s8 + $0x90] sm:$0xff]
    %v1419 = vld [vmem:[%s8 + $0x98] sm:$0xff]
    %v1421 = vsel %vm103, %v1396, 0
    %v1424 = vsel %vm103, %v1398, 0
    %1426 = vmatprep.subr.mxu0 0.0
    %1427 = vmatpush1.msra.mxu0 %v1415
    %1428 = vmatprep.subr.mxu0 0.0
    %1429 = vmatpush1.msra.mxu0 %v1414
    %1430 = vmatprep.subr.mxu0 0.0
    %1431 = vmatpush1.msra.mxu0 %v1413
    %1432 = vmatprep.subr.mxu0 0.0
    %1433 = vmatpush1.msra.mxu0 %v1412
    %1434 = vmatprep.subr.mxu0 0.0
    %1435 = vmatpush1.msra.mxu0 %v1411
    %1436 = vmatprep.subr.mxu0 0.0
    %1437 = vmatpush1.msra.mxu0 %v1410
    %1438 = vmatprep.subr.mxu0 0.0
    %1439 = vmatpush1.msra.mxu0 %v1409
    %1440 = vmatprep.subr.mxu0 0.0
    %1441 = vmatpush1.msra.mxu0 %v1408
    %1442 = vmatprep.subr.mxu0 0.0
    %1443 = vmatpush1.msra.mxu0 %v1407
    %1444 = vmatprep.subr.mxu0 0.0
    %1445 = vmatpush1.msra.mxu0 %v1406
    %1446 = vmatprep.subr.mxu0 0.0
    %1447 = vmatpush1.msra.mxu0 %v1405
    %1448 = vmatprep.subr.mxu0 0.0
    %1449 = vmatpush1.msra.mxu0 %v1404
    %1450 = vmatprep.subr.mxu0 0.0
    %1451 = vmatpush1.msra.mxu0 %v1403
    %1452 = vmatprep.subr.mxu0 0.0
    %1453 = vmatpush1.msra.mxu0 %v1402
    %1454 = vmatprep.subr.mxu0 0.0
    %1455 = vmatpush1.msra.mxu0 %v1401
    %1456 = vmatprep.subr.mxu0 0.0
    %1457 = vmatpush1.msra.mxu0 %v1400
    %1458 = vmatprep.subr.mxu0 0.0
    %1459 = vmatpush2.msra.mxu0 0.0
    %1460 = vmatprep.subr.mxu0 0.0
    %1461 = vmatpush2.msra.mxu0 0.0
    %1462 = vmatprep.subr.mxu0 0.0
    %1463 = vmatpush2.msra.mxu0 0.0
    %1464 = vmatprep.subr.mxu0 0.0
    %1465 = vmatpush2.msra.mxu0 0.0
    %1466 = vmatprep.subr.mxu0 0.0
    %1467 = vmatpush2.msra.mxu0 0.0
    %1468 = vmatprep.subr.mxu0 0.0
    %1469 = vmatpush2.msra.mxu0 0.0
    %1470 = vmatprep.subr.mxu0 0.0
    %1471 = vmatpush2.msra.mxu0 0.0
    %1472 = vmatprep.subr.mxu0 0.0
    %1473 = vmatpush2.msra.mxu0 0.0
    %1474 = vmatprep.subr.mxu0 0.0
    %1475 = vmatpush2.msra.mxu0 0.0
    %1476 = vmatprep.subr.mxu0 0.0
    %1477 = vmatpush2.msra.mxu0 0.0
    %1478 = vmatprep.subr.mxu0 0.0
    %1479 = vmatpush2.msra.mxu0 0.0
    %1480 = vmatprep.subr.mxu0 0.0
    %1481 = vmatpush2.msra.mxu0 0.0
    %1482 = vmatprep.subr.mxu0 0.0
    %1483 = vmatpush2.msra.mxu0 %v1419
    %1484 = vmatprep.subr.mxu0 0.0
    %1485 = vmatpush2.msra.mxu0 %v1418
    %1486 = vmatprep.subr.mxu0 0.0
    %1487 = vmatpush2.msra.mxu0 %v1417
    %1488 = vmatprep.subr.mxu0 0.0
    %1489 = vmatpush2.msra.mxu0 %v1416
    %1490 = vmatprep.mubr.f32.mxu0 %v1421
    %1491 = vmatmul.mubr.f32.gmra.mxu0 %v1395
    %v1492 = vpop.f32.mrf.mxu0
    %v1493 = vadd.f32 0.0, %v1492
    %v1494 = vpop.f32.mrf.mxu0
    %1495 = vmatprep.mubr.f32.mxu0 %v1424
    %1496 = vmatmul.mubr.f32.gmra.mxu0 %v1397
    %v1497 = vpop.f32.mrf.mxu0
    %v1498 = vadd.f32 0.0, %v1497
    %v1499 = vpop.f32.mrf.mxu0
    %1500 = vdwg.mxu0
    %vm1501 = vcmask 80896
    %v1503 = vsel %vm1501, %v1399, 0
    %v1506 = vsel %vm848, %v1498, 0
    %1508 = vmatprep.subr.mxu0 0.0
    %1509 = vmatpush1.msra.mxu0 0.0
    %1510 = vmatprep.subr.mxu0 0.0
    %1511 = vmatpush1.msra.mxu0 0.0
    %1512 = vmatprep.subr.mxu0 0.0
    %1513 = vmatpush1.msra.mxu0 0.0
    %1514 = vmatprep.subr.mxu0 0.0
    %1515 = vmatpush1.msra.mxu0 0.0
    %1516 = vmatprep.subr.mxu0 0.0
    %1517 = vmatpush1.msra.mxu0 0.0
    %1518 = vmatprep.subr.mxu0 0.0
    %1519 = vmatpush1.msra.mxu0 0.0
    %1520 = vmatprep.subr.mxu0 0.0
    %1521 = vmatpush1.msra.mxu0 0.0
    %1522 = vmatprep.subr.mxu0 0.0
    %1523 = vmatpush1.msra.mxu0 0.0
    %1524 = vmatprep.subr.mxu0 0.0
    %1525 = vmatpush1.msra.mxu0 0.0
    %1526 = vmatprep.subr.mxu0 0.0
    %1527 = vmatpush1.msra.mxu0 0.0
    %1528 = vmatprep.subr.mxu0 0.0
    %1529 = vmatpush1.msra.mxu0 0.0
    %1530 = vmatprep.subr.mxu0 0.0
    %1531 = vmatpush1.msra.mxu0 0.0
    %1532 = vmatprep.subr.mxu0 0.0
    %1533 = vmatpush1.msra.mxu0 0.0
    %1534 = vmatprep.subr.mxu0 0.0
    %1535 = vmatpush1.msra.mxu0 0.0
    %1536 = vmatprep.subr.mxu0 0.0
    %1537 = vmatpush1.msra.mxu0 %v1506
    %1538 = vmatprep.subr.mxu0 0.0
    %1539 = vmatpush1.msra.mxu0 %v1493
    %1540 = vmatprep.subr.mxu0 0.0
    %1541 = vmatpush2.msra.mxu0 0.0
    %1542 = vmatprep.subr.mxu0 0.0
    %1543 = vmatpush2.msra.mxu0 0.0
    %1544 = vmatprep.subr.mxu0 0.0
    %1545 = vmatpush2.msra.mxu0 0.0
    %1546 = vmatprep.subr.mxu0 0.0
    %1547 = vmatpush2.msra.mxu0 0.0
    %1548 = vmatprep.subr.mxu0 0.0
    %1549 = vmatpush2.msra.mxu0 0.0
    %1550 = vmatprep.subr.mxu0 0.0
    %1551 = vmatpush2.msra.mxu0 0.0
    %1552 = vmatprep.subr.mxu0 0.0
    %1553 = vmatpush2.msra.mxu0 0.0
    %1554 = vmatprep.subr.mxu0 0.0
    %1555 = vmatpush2.msra.mxu0 0.0
    %1556 = vmatprep.subr.mxu0 0.0
    %1557 = vmatpush2.msra.mxu0 0.0
    %1558 = vmatprep.subr.mxu0 0.0
    %1559 = vmatpush2.msra.mxu0 0.0
    %1560 = vmatprep.subr.mxu0 0.0
    %1561 = vmatpush2.msra.mxu0 0.0
    %1562 = vmatprep.subr.mxu0 0.0
    %1563 = vmatpush2.msra.mxu0 0.0
    %1564 = vmatprep.subr.mxu0 0.0
    %1565 = vmatpush2.msra.mxu0 0.0
    %1566 = vmatprep.subr.mxu0 0.0
    %1567 = vmatpush2.msra.mxu0 0.0
    %1568 = vmatprep.subr.mxu0 0.0
    %1569 = vmatpush2.msra.mxu0 0.0
    %1570 = vmatprep.subr.mxu0 0.0
    %1571 = vmatpush2.msra.mxu0 0.0
    %1572 = vmatprep.mubr.f32.mxu0 0.0
    %1573 = vmatmul.mubr.f32.gmra.mxu0 %v1503
    %v1574 = vpop.f32.mrf.mxu0
    %v1575 = vadd.f32 0.0, %v1574
    %v1576 = vpop.f32.mrf.mxu0
    %1577 = vdwg.mxu0
    %v1578 = vpack.c.bf16 %v1575, %v1575
    %v1579 = vld [vmem:[%s9] sm:$0xf]
    %v1580 = vld [vmem:[%s9 + $0x4] sm:$0xf]
    %v1581 = vld [vmem:[%s9 + $0x8] sm:$0xf]
    %v1582 = vld [vmem:[%s9 + $0xc] sm:$0xf]
    %v1583 = vld [vmem:[%s9 + $0x10] sm:$0xf]
    %v1584 = vld [vmem:[%s9 + $0x14] sm:$0xf]
    %v1585 = vld [vmem:[%s9 + $0x18] sm:$0xf]
    %v1586 = vld [vmem:[%s9 + $0x1c] sm:$0xf]
    %v1587 = vld [vmem:[%s9 + $0x20] sm:$0xf]
    %v1588 = vld [vmem:[%s9 + $0x24] sm:$0xf]
    %s1589 = scalar_lea.vmem %s9, 40
    %v1590 = vld [vmem:[%s1589] sm:$0xf]
    %v1591 = vld [vmem:[%s1589 + $0x4] sm:$0xf]
    %v1592 = vld [vmem:[%s1589 + $0x8] sm:$0xf]
    %v1593 = vld [vmem:[%s1589 + $0xc] sm:$0xf]
    %v1594 = vld [vmem:[%s1589 + $0x10] sm:$0xf]
    %v1595 = vld [vmem:[%s1589 + $0x14] sm:$0xf]
    %v1596 = vld [vmem:[%s1589 + $0x18] sm:$0xf]
    %v1597 = vld [vmem:[%s1589 + $0x1c] sm:$0xf]
    %v1598 = vld [vmem:[%s1589 + $0x20] sm:$0xf]
    %v1599 = vld [vmem:[%s1589 + $0x24] sm:$0xf]
    %v1601 = vshrl.u32 %v1578, 16
    %v1613 = vunpack.c.l.b16 %v1590
    %v1614 = vunpack.c.l.b16 %v1591
    %v1615 = vunpack.c.l.b16 %v1592
    %v1616 = vunpack.c.l.b16 %v1593
    %v1617 = vunpack.c.l.b16 %v1594
    %v1618 = vunpack.c.l.b16 %v1595
    %v1619 = vunpack.c.l.b16 %v1596
    %v1620 = vunpack.c.l.b16 %v1597
    %v1621 = vunpack.c.l.b16 %v1598
    %v1622 = vunpack.c.l.b16 %v1599
    %v1623 = vpack.c.b16 %v1614, %v1613
    %v1624 = vpack.c.b16 %v1616, %v1615
    %v1625 = vpack.c.b16 %v1618, %v1617
    %v1626 = vpack.c.b16 %v1620, %v1619
    %v1627 = vpack.c.b16 %v1622, %v1621
    %vm1633 = vcmask 654336
    %v1635 = vsel %vm1633, %v1601, 0
    %1637 = vmatprep.subr.bf16.mxu0 0
    %1638 = vmatpush1.bf16.msra.mxu0 0
    %1639 = vmatprep.subr.bf16.mxu0 0
    %1640 = vmatpush1.bf16.msra.mxu0 0
    %1641 = vmatprep.subr.bf16.mxu0 0
    %1642 = vmatpush1.bf16.msra.mxu0 0
    %1643 = vmatprep.subr.bf16.mxu0 0
    %1644 = vmatpush1.bf16.msra.mxu0 %v1627
    %1645 = vmatprep.subr.bf16.mxu0 0
    %1646 = vmatpush1.bf16.msra.mxu0 %v1626
    %1647 = vmatprep.subr.bf16.mxu0 0
    %1648 = vmatpush1.bf16.msra.mxu0 %v1625
    %1649 = vmatprep.subr.bf16.mxu0 0
    %1650 = vmatpush1.bf16.msra.mxu0 %v1624
    %1651 = vmatprep.subr.bf16.mxu0 0
    %1652 = vmatpush1.bf16.msra.mxu0 %v1623
    %1653 = vmatprep.subr.bf16.mxu0 0
    %1654 = vmatpush2.bf16.msra.mxu0 0
    %1655 = vmatprep.subr.bf16.mxu0 0
    %1656 = vmatpush2.bf16.msra.mxu0 0
    %1657 = vmatprep.subr.bf16.mxu0 0
    %1658 = vmatpush2.bf16.msra.mxu0 0
    %1659 = vmatprep.subr.bf16.mxu0 0
    %1660 = vmatpush2.bf16.msra.mxu0 0
    %1661 = vmatprep.subr.bf16.mxu0 0
    %1662 = vmatpush2.bf16.msra.mxu0 0
    %1663 = vmatprep.subr.bf16.mxu0 0
    %1664 = vmatpush2.bf16.msra.mxu0 0
    %1665 = vmatprep.subr.bf16.mxu0 0
    %1666 = vmatpush2.bf16.msra.mxu0 0
    %1667 = vmatprep.subr.bf16.mxu0 0
    %1668 = vmatpush2.bf16.msra.mxu0 0
    %1669 = vmatprep.mubr.bf16.mxu0 0
    %1670 = vmatmul.mubr.bf16.gmra.mxu0 %v1635
    %v1671 = vpop.f32.mrf.mxu0
    %v1672 = vadd.f32 0.0, %v1671
    %v1673 = vpop.f32.mrf.mxu0
    %v1674 = vpop.f32.mrf.mxu0
    %v1675 = vpop.f32.mrf.mxu0
    %1676 = vdwg.mxu0
    %v1687 = vunpack.c.l.b16 %v1579
    %v1688 = vunpack.c.l.b16 %v1580
    %v1689 = vunpack.c.l.b16 %v1581
    %v1690 = vunpack.c.l.b16 %v1582
    %v1691 = vunpack.c.l.b16 %v1583
    %v1692 = vunpack.c.l.b16 %v1584
    %v1693 = vunpack.c.l.b16 %v1585
    %v1694 = vunpack.c.l.b16 %v1586
    %v1695 = vunpack.c.l.b16 %v1587
    %v1696 = vunpack.c.l.b16 %v1588
    %v1697 = vpack.c.b16 %v1688, %v1687
    %v1698 = vpack.c.b16 %v1690, %v1689
    %v1699 = vpack.c.b16 %v1692, %v1691
    %v1700 = vpack.c.b16 %v1694, %v1693
    %v1701 = vpack.c.b16 %v1696, %v1695
    %v1707 = vsel %vm1633, %v1578, 0
    %1709 = vmatprep.subr.bf16.mxu0 0
    %1710 = vmatpush1.bf16.msra.mxu0 0
    %1711 = vmatprep.subr.bf16.mxu0 0
    %1712 = vmatpush1.bf16.msra.mxu0 0
    %1713 = vmatprep.subr.bf16.mxu0 0
    %1714 = vmatpush1.bf16.msra.mxu0 0
    %1715 = vmatprep.subr.bf16.mxu0 0
    %1716 = vmatpush1.bf16.msra.mxu0 %v1701
    %1717 = vmatprep.subr.bf16.mxu0 0
    %1718 = vmatpush1.bf16.msra.mxu0 %v1700
    %1719 = vmatprep.subr.bf16.mxu0 0
    %1720 = vmatpush1.bf16.msra.mxu0 %v1699
    %1721 = vmatprep.subr.bf16.mxu0 0
    %1722 = vmatpush1.bf16.msra.mxu0 %v1698
    %1723 = vmatprep.subr.bf16.mxu0 0
    %1724 = vmatpush1.bf16.msra.mxu0 %v1697
    %1725 = vmatprep.subr.bf16.mxu0 0
    %1726 = vmatpush2.bf16.msra.mxu0 0
    %1727 = vmatprep.subr.bf16.mxu0 0
    %1728 = vmatpush2.bf16.msra.mxu0 0
    %1729 = vmatprep.subr.bf16.mxu0 0
    %1730 = vmatpush2.bf16.msra.mxu0 0
    %1731 = vmatprep.subr.bf16.mxu0 0
    %1732 = vmatpush2.bf16.msra.mxu0 0
    %1733 = vmatprep.subr.bf16.mxu0 0
    %1734 = vmatpush2.bf16.msra.mxu0 0
    %1735 = vmatprep.subr.bf16.mxu0 0
    %1736 = vmatpush2.bf16.msra.mxu0 0
    %1737 = vmatprep.subr.bf16.mxu0 0
    %1738 = vmatpush2.bf16.msra.mxu0 0
    %1739 = vmatprep.subr.bf16.mxu0 0
    %1740 = vmatpush2.bf16.msra.mxu0 0
    %1741 = vmatprep.mubr.bf16.mxu0 0
    %1742 = vmatmul.mubr.bf16.gmra.mxu0 %v1707
    %v1743 = vpop.f32.mrf.mxu0
    %v1744 = vadd.f32 %v1672, %v1743
    %v1745 = vpop.f32.mrf.mxu0
    %v1746 = vpop.f32.mrf.mxu0
    %v1747 = vpop.f32.mrf.mxu0
    %1748 = vdwg.mxu0
    %s1749 = scalar_lea.vmem %s9, 80
    %v1750 = vld [vmem:[%s1749] sm:$0xf]
    %v1751 = vld [vmem:[%s1749 + $0x4] sm:$0xf]
    %v1752 = vld [vmem:[%s1749 + $0x8] sm:$0xf]
    %v1753 = vld [vmem:[%s1749 + $0xc] sm:$0xf]
    %v1754 = vld [vmem:[%s1749 + $0x10] sm:$0xf]
    %v1755 = vld [vmem:[%s1749 + $0x14] sm:$0xf]
    %v1756 = vld [vmem:[%s1749 + $0x18] sm:$0xf]
    %v1757 = vld [vmem:[%s1749 + $0x1c] sm:$0xf]
    %v1758 = vld [vmem:[%s1749 + $0x20] sm:$0xf]
    %v1759 = vld [vmem:[%s1749 + $0x24] sm:$0xf]
    %v1761 = vrot.slane %v1578, 1
    %v1772 = vunpack.c.l.b16 %v1750
    %v1773 = vunpack.c.l.b16 %v1751
    %v1774 = vunpack.c.l.b16 %v1752
    %v1775 = vunpack.c.l.b16 %v1753
    %v1776 = vunpack.c.l.b16 %v1754
    %v1777 = vunpack.c.l.b16 %v1755
    %v1778 = vunpack.c.l.b16 %v1756
    %v1779 = vunpack.c.l.b16 %v1757
    %v1780 = vunpack.c.l.b16 %v1758
    %v1781 = vunpack.c.l.b16 %v1759
    %v1782 = vpack.c.b16 %v1773, %v1772
    %v1783 = vpack.c.b16 %v1775, %v1774
    %v1784 = vpack.c.b16 %v1777, %v1776
    %v1785 = vpack.c.b16 %v1779, %v1778
    %v1786 = vpack.c.b16 %v1781, %v1780
    %v1793 = vsel %vm1633, %v1761, 0
    %1795 = vmatprep.subr.bf16.mxu0 0
    %1796 = vmatpush1.bf16.msra.mxu0 0
    %1797 = vmatprep.subr.bf16.mxu0 0
    %1798 = vmatpush1.bf16.msra.mxu0 0
    %1799 = vmatprep.subr.bf16.mxu0 0
    %1800 = vmatpush1.bf16.msra.mxu0 0
    %1801 = vmatprep.subr.bf16.mxu0 0
    %1802 = vmatpush1.bf16.msra.mxu0 %v1786
    %1803 = vmatprep.subr.bf16.mxu0 0
    %1804 = vmatpush1.bf16.msra.mxu0 %v1785
    %1805 = vmatprep.subr.bf16.mxu0 0
    %1806 = vmatpush1.bf16.msra.mxu0 %v1784
    %1807 = vmatprep.subr.bf16.mxu0 0
    %1808 = vmatpush1.bf16.msra.mxu0 %v1783
    %1809 = vmatprep.subr.bf16.mxu0 0
    %1810 = vmatpush1.bf16.msra.mxu0 %v1782
    %1811 = vmatprep.subr.bf16.mxu0 0
    %1812 = vmatpush2.bf16.msra.mxu0 0
    %1813 = vmatprep.subr.bf16.mxu0 0
    %1814 = vmatpush2.bf16.msra.mxu0 0
    %1815 = vmatprep.subr.bf16.mxu0 0
    %1816 = vmatpush2.bf16.msra.mxu0 0
    %1817 = vmatprep.subr.bf16.mxu0 0
    %1818 = vmatpush2.bf16.msra.mxu0 0
    %1819 = vmatprep.subr.bf16.mxu0 0
    %1820 = vmatpush2.bf16.msra.mxu0 0
    %1821 = vmatprep.subr.bf16.mxu0 0
    %1822 = vmatpush2.bf16.msra.mxu0 0
    %1823 = vmatprep.subr.bf16.mxu0 0
    %1824 = vmatpush2.bf16.msra.mxu0 0
    %1825 = vmatprep.subr.bf16.mxu0 0
    %1826 = vmatpush2.bf16.msra.mxu0 0
    %1827 = vmatprep.mubr.bf16.mxu0 0
    %1828 = vmatmul.mubr.bf16.gmra.mxu0 %v1793
    %v1829 = vpop.f32.mrf.mxu0
    %v1830 = vadd.f32 0.0, %v1829
    %v1831 = vpop.f32.mrf.mxu0
    %v1832 = vpop.f32.mrf.mxu0
    %v1833 = vpop.f32.mrf.mxu0
    %1834 = vdwg.mxu0
    %v1835 = vadd.f32 %v1744, %v1830
    %s1836 = scalar_lea.vmem %s9, 120
    %v1837 = vld [vmem:[%s1836] sm:$0xf]
    %v1838 = vld [vmem:[%s1836 + $0x4] sm:$0xf]
    %v1839 = vld [vmem:[%s1836 + $0x8] sm:$0xf]
    %v1840 = vld [vmem:[%s1836 + $0xc] sm:$0xf]
    %v1841 = vld [vmem:[%s1836 + $0x10] sm:$0xf]
    %v1842 = vld [vmem:[%s1836 + $0x14] sm:$0xf]
    %v1843 = vld [vmem:[%s1836 + $0x18] sm:$0xf]
    %v1844 = vld [vmem:[%s1836 + $0x1c] sm:$0xf]
    %v1845 = vld [vmem:[%s1836 + $0x20] sm:$0xf]
    %v1846 = vld [vmem:[%s1836 + $0x24] sm:$0xf]
    %v1847 = vrot.slane %v1601, 1
    %v1858 = vunpack.c.l.b16 %v1837
    %v1859 = vunpack.c.l.b16 %v1838
    %v1860 = vunpack.c.l.b16 %v1839
    %v1861 = vunpack.c.l.b16 %v1840
    %v1862 = vunpack.c.l.b16 %v1841
    %v1863 = vunpack.c.l.b16 %v1842
    %v1864 = vunpack.c.l.b16 %v1843
    %v1865 = vunpack.c.l.b16 %v1844
    %v1866 = vunpack.c.l.b16 %v1845
    %v1867 = vunpack.c.l.b16 %v1846
    %v1868 = vpack.c.b16 %v1859, %v1858
    %v1869 = vpack.c.b16 %v1861, %v1860
    %v1870 = vpack.c.b16 %v1863, %v1862
    %v1871 = vpack.c.b16 %v1865, %v1864
    %v1872 = vpack.c.b16 %v1867, %v1866
    %v1879 = vsel %vm1633, %v1847, 0
    %1881 = vmatprep.subr.bf16.mxu0 0
    %1882 = vmatpush1.bf16.msra.mxu0 0
    %1883 = vmatprep.subr.bf16.mxu0 0
    %1884 = vmatpush1.bf16.msra.mxu0 0
    %1885 = vmatprep.subr.bf16.mxu0 0
    %1886 = vmatpush1.bf16.msra.mxu0 0
    %1887 = vmatprep.subr.bf16.mxu0 0
    %1888 = vmatpush1.bf16.msra.mxu0 %v1872
    %1889 = vmatprep.subr.bf16.mxu0 0
    %1890 = vmatpush1.bf16.msra.mxu0 %v1871
    %1891 = vmatprep.subr.bf16.mxu0 0
    %1892 = vmatpush1.bf16.msra.mxu0 %v1870
    %1893 = vmatprep.subr.bf16.mxu0 0
    %1894 = vmatpush1.bf16.msra.mxu0 %v1869
    %1895 = vmatprep.subr.bf16.mxu0 0
    %1896 = vmatpush1.bf16.msra.mxu0 %v1868
    %1897 = vmatprep.subr.bf16.mxu0 0
    %1898 = vmatpush2.bf16.msra.mxu0 0
    %1899 = vmatprep.subr.bf16.mxu0 0
    %1900 = vmatpush2.bf16.msra.mxu0 0
    %1901 = vmatprep.subr.bf16.mxu0 0
    %1902 = vmatpush2.bf16.msra.mxu0 0
    %1903 = vmatprep.subr.bf16.mxu0 0
    %1904 = vmatpush2.bf16.msra.mxu0 0
    %1905 = vmatprep.subr.bf16.mxu0 0
    %1906 = vmatpush2.bf16.msra.mxu0 0
    %1907 = vmatprep.subr.bf16.mxu0 0
    %1908 = vmatpush2.bf16.msra.mxu0 0
    %1909 = vmatprep.subr.bf16.mxu0 0
    %1910 = vmatpush2.bf16.msra.mxu0 0
    %1911 = vmatprep.subr.bf16.mxu0 0
    %1912 = vmatpush2.bf16.msra.mxu0 0
    %1913 = vmatprep.mubr.bf16.mxu0 0
    %1914 = vmatmul.mubr.bf16.gmra.mxu0 %v1879
    %v1915 = vpop.f32.mrf.mxu0
    %v1916 = vadd.f32 0.0, %v1915
    %v1917 = vpop.f32.mrf.mxu0
    %v1918 = vpop.f32.mrf.mxu0
    %v1919 = vpop.f32.mrf.mxu0
    %1920 = vdwg.mxu0
    %v1921 = vadd.f32 %v1835, %v1916
    %s1922 = scalar_lea.vmem %s9, 160
    %v1923 = vld [vmem:[%s1922] sm:$0xf]
    %v1924 = vld [vmem:[%s1922 + $0x4] sm:$0xf]
    %v1925 = vld [vmem:[%s1922 + $0x8] sm:$0xf]
    %v1926 = vld [vmem:[%s1922 + $0xc] sm:$0xf]
    %v1927 = vld [vmem:[%s1922 + $0x10] sm:$0xf]
    %v1928 = vld [vmem:[%s1922 + $0x14] sm:$0xf]
    %v1929 = vld [vmem:[%s1922 + $0x18] sm:$0xf]
    %v1930 = vld [vmem:[%s1922 + $0x1c] sm:$0xf]
    %v1931 = vld [vmem:[%s1922 + $0x20] sm:$0xf]
    %v1932 = vld [vmem:[%s1922 + $0x24] sm:$0xf]
    %v1933 = vrot.slane %v1578, 2
    %v1944 = vunpack.c.l.b16 %v1923
    %v1945 = vunpack.c.l.b16 %v1924
    %v1946 = vunpack.c.l.b16 %v1925
    %v1947 = vunpack.c.l.b16 %v1926
    %v1948 = vunpack.c.l.b16 %v1927
    %v1949 = vunpack.c.l.b16 %v1928
    %v1950 = vunpack.c.l.b16 %v1929
    %v1951 = vunpack.c.l.b16 %v1930
    %v1952 = vunpack.c.l.b16 %v1931
    %v1953 = vunpack.c.l.b16 %v1932
    %v1954 = vpack.c.b16 %v1945, %v1944
    %v1955 = vpack.c.b16 %v1947, %v1946
    %v1956 = vpack.c.b16 %v1949, %v1948
    %v1957 = vpack.c.b16 %v1951, %v1950
    %v1958 = vpack.c.b16 %v1953, %v1952
    %v1965 = vsel %vm1633, %v1933, 0
    %1967 = vmatprep.subr.bf16.mxu0 0
    %1968 = vmatpush1.bf16.msra.mxu0 0
    %1969 = vmatprep.subr.bf16.mxu0 0
    %1970 = vmatpush1.bf16.msra.mxu0 0
    %1971 = vmatprep.subr.bf16.mxu0 0
    %1972 = vmatpush1.bf16.msra.mxu0 0
    %1973 = vmatprep.subr.bf16.mxu0 0
    %1974 = vmatpush1.bf16.msra.mxu0 %v1958
    %1975 = vmatprep.subr.bf16.mxu0 0
    %1976 = vmatpush1.bf16.msra.mxu0 %v1957
    %1977 = vmatprep.subr.bf16.mxu0 0
    %1978 = vmatpush1.bf16.msra.mxu0 %v1956
    %1979 = vmatprep.subr.bf16.mxu0 0
    %1980 = vmatpush1.bf16.msra.mxu0 %v1955
    %1981 = vmatprep.subr.bf16.mxu0 0
    %1982 = vmatpush1.bf16.msra.mxu0 %v1954
    %1983 = vmatprep.subr.bf16.mxu0 0
    %1984 = vmatpush2.bf16.msra.mxu0 0
    %1985 = vmatprep.subr.bf16.mxu0 0
    %1986 = vmatpush2.bf16.msra.mxu0 0
    %1987 = vmatprep.subr.bf16.mxu0 0
    %1988 = vmatpush2.bf16.msra.mxu0 0
    %1989 = vmatprep.subr.bf16.mxu0 0
    %1990 = vmatpush2.bf16.msra.mxu0 0
    %1991 = vmatprep.subr.bf16.mxu0 0
    %1992 = vmatpush2.bf16.msra.mxu0 0
    %1993 = vmatprep.subr.bf16.mxu0 0
    %1994 = vmatpush2.bf16.msra.mxu0 0
    %1995 = vmatprep.subr.bf16.mxu0 0
    %1996 = vmatpush2.bf16.msra.mxu0 0
    %1997 = vmatprep.subr.bf16.mxu0 0
    %1998 = vmatpush2.bf16.msra.mxu0 0
    %1999 = vmatprep.mubr.bf16.mxu0 0
    %2000 = vmatmul.mubr.bf16.gmra.mxu0 %v1965
    %v2001 = vpop.f32.mrf.mxu0
    %v2002 = vadd.f32 0.0, %v2001
    %v2003 = vpop.f32.mrf.mxu0
    %v2004 = vpop.f32.mrf.mxu0
    %v2005 = vpop.f32.mrf.mxu0
    %2006 = vdwg.mxu0
    %v2007 = vadd.f32 %v1921, %v2002
    %v2008 = vld [vmem:[%s10] sm:$0x1]
    %v2009 = vadd.f32 %v2007, %v2008
    %v2010 = vmax.f32 %v2009, 0.0
    %v2011 = vpack.c.bf16 %v2010, %v2010
    %v2012 = vld [vmem:[%s11] sm:$0xf]
    %v2013 = vld [vmem:[%s11 + $0x4] sm:$0xf]
    %v2014 = vld [vmem:[%s11 + $0x8] sm:$0xf]
    %v2015 = vld [vmem:[%s11 + $0xc] sm:$0xf]
    %v2016 = vld [vmem:[%s11 + $0x10] sm:$0xf]
    %v2017 = vld [vmem:[%s11 + $0x14] sm:$0xf]
    %v2018 = vld [vmem:[%s11 + $0x18] sm:$0xf]
    %v2019 = vld [vmem:[%s11 + $0x1c] sm:$0xf]
    %v2020 = vld [vmem:[%s11 + $0x20] sm:$0xf]
    %v2021 = vld [vmem:[%s11 + $0x24] sm:$0xf]
    %v2022 = vld [vmem:[%s11 + $0x28] sm:$0xf]
    %v2023 = vld [vmem:[%s11 + $0x2c] sm:$0xf]
    %v2024 = vld [vmem:[%s11 + $0x30] sm:$0xf]
    %v2025 = vld [vmem:[%s11 + $0x34] sm:$0xf]
    %v2026 = vld [vmem:[%s11 + $0x38] sm:$0xf]
    %v2027 = vld [vmem:[%s12] sm:$0x1]
    %v2043 = vunpack.c.l.b16 %v2012
    %v2044 = vunpack.c.l.b16 %v2013
    %v2045 = vunpack.c.l.b16 %v2014
    %v2046 = vunpack.c.l.b16 %v2015
    %v2047 = vunpack.c.l.b16 %v2016
    %v2048 = vunpack.c.l.b16 %v2017
    %v2049 = vunpack.c.l.b16 %v2018
    %v2050 = vunpack.c.l.b16 %v2019
    %v2051 = vunpack.c.l.b16 %v2020
    %v2052 = vunpack.c.l.b16 %v2021
    %v2053 = vunpack.c.l.b16 %v2022
    %v2054 = vunpack.c.l.b16 %v2023
    %v2055 = vunpack.c.l.b16 %v2024
    %v2056 = vunpack.c.l.b16 %v2025
    %v2057 = vunpack.c.l.b16 %v2026
    %v2058 = vpack.c.b16 %v2044, %v2043
    %v2059 = vpack.c.b16 %v2046, %v2045
    %v2060 = vpack.c.b16 %v2048, %v2047
    %v2061 = vpack.c.b16 %v2050, %v2049
    %v2062 = vpack.c.b16 %v2052, %v2051
    %v2063 = vpack.c.b16 %v2054, %v2053
    %v2064 = vpack.c.b16 %v2056, %v2055
    %v2065 = vpack.c.b16 %v2057, %v2057
    %vm2073 = vcmask 982016
    %v2075 = vsel %vm2073, %v2011, 0
    %v2078 = vsel %vm571, %v2065, 0
    %2080 = vmatprep.subr.bf16.mxu0 0
    %2081 = vmatpush1.bf16.msra.mxu0 %v2078
    %2082 = vmatprep.subr.bf16.mxu0 0
    %2083 = vmatpush1.bf16.msra.mxu0 %v2064
    %2084 = vmatprep.subr.bf16.mxu0 0
    %2085 = vmatpush1.bf16.msra.mxu0 %v2063
    %2086 = vmatprep.subr.bf16.mxu0 0
    %2087 = vmatpush1.bf16.msra.mxu0 %v2062
    %2088 = vmatprep.subr.bf16.mxu0 0
    %2089 = vmatpush1.bf16.msra.mxu0 %v2061
    %2090 = vmatprep.subr.bf16.mxu0 0
    %2091 = vmatpush1.bf16.msra.mxu0 %v2060
    %2092 = vmatprep.subr.bf16.mxu0 0
    %2093 = vmatpush1.bf16.msra.mxu0 %v2059
    %2094 = vmatprep.subr.bf16.mxu0 0
    %2095 = vmatpush1.bf16.msra.mxu0 %v2058
    %2096 = vmatprep.subr.bf16.mxu0 0
    %2097 = vmatpush2.bf16.msra.mxu0 0
    %2098 = vmatprep.subr.bf16.mxu0 0
    %2099 = vmatpush2.bf16.msra.mxu0 0
    %2100 = vmatprep.subr.bf16.mxu0 0
    %2101 = vmatpush2.bf16.msra.mxu0 0
    %2102 = vmatprep.subr.bf16.mxu0 0
    %2103 = vmatpush2.bf16.msra.mxu0 0
    %2104 = vmatprep.subr.bf16.mxu0 0
    %2105 = vmatpush2.bf16.msra.mxu0 0
    %2106 = vmatprep.subr.bf16.mxu0 0
    %2107 = vmatpush2.bf16.msra.mxu0 0
    %2108 = vmatprep.subr.bf16.mxu0 0
    %2109 = vmatpush2.bf16.msra.mxu0 0
    %2110 = vmatprep.subr.bf16.mxu0 0
    %2111 = vmatpush2.bf16.msra.mxu0 0
    %2112 = vmatprep.mubr.bf16.mxu0 0
    %2113 = vmatmul.mubr.bf16.gmra.mxu0 %v2075
    %v2114 = vpop.f32.mrf.mxu0
    %v2115 = vadd.f32 %v2027, %v2114
    %v2116 = vpop.f32.mrf.mxu0
    %v2117 = vpop.f32.mrf.mxu0
    %v2118 = vpop.f32.mrf.mxu0
    %2119 = vdwg.mxu0
    %v2120 = vmax.f32 %v2115, 0.0
    %v2121 = vpack.c.bf16 %v2120, %v2120
    %v2122 = vld [vmem:[%s13] sm:$0xf]
    %v2123 = vld [vmem:[%s13 + $0x4] sm:$0xf]
    %v2124 = vld [vmem:[%s13 + $0x8] sm:$0xf]
    %v2125 = vld [vmem:[%s13 + $0xc] sm:$0xf]
    %v2126 = vld [vmem:[%s13 + $0x10] sm:$0xf]
    %v2127 = vld [vmem:[%s13 + $0x14] sm:$0xf]
    %v2128 = vld [vmem:[%s13 + $0x18] sm:$0xf]
    %v2129 = vld [vmem:[%s13 + $0x1c] sm:$0xf]
    %v2130 = vld [vmem:[%s13 + $0x20] sm:$0xf]
    %v2131 = vld [vmem:[%s13 + $0x24] sm:$0xf]
    %v2132 = vld [vmem:[%s13 + $0x28] sm:$0x3]
    %v2133 = vld [vmem:[%s14] sm:$0x1]
    %v2145 = vunpack.c.l.b16 %v2122
    %v2146 = vunpack.c.l.b16 %v2123
    %v2147 = vunpack.c.l.b16 %v2124
    %v2148 = vunpack.c.l.b16 %v2125
    %v2149 = vunpack.c.l.b16 %v2126
    %v2150 = vunpack.c.l.b16 %v2127
    %v2151 = vunpack.c.l.b16 %v2128
    %v2152 = vunpack.c.l.b16 %v2129
    %v2153 = vunpack.c.l.b16 %v2130
    %v2154 = vunpack.c.l.b16 %v2131
    %v2155 = vunpack.c.l.b16 %v2132
    %v2156 = vpack.c.b16 %v2146, %v2145
    %v2157 = vpack.c.b16 %v2148, %v2147
    %v2158 = vpack.c.b16 %v2150, %v2149
    %v2159 = vpack.c.b16 %v2152, %v2151
    %v2160 = vpack.c.b16 %v2154, %v2153
    %v2161 = vpack.c.b16 %v2155, %v2155
    %v2168 = vsel %vm844, %v2121, 0
    %v2171 = vsel %vm848, %v2161, 0
    %2173 = vmatprep.subr.bf16.mxu0 0
    %2174 = vmatpush1.bf16.msra.mxu0 0
    %2175 = vmatprep.subr.bf16.mxu0 0
    %2176 = vmatpush1.bf16.msra.mxu0 0
    %2177 = vmatprep.subr.bf16.mxu0 0
    %2178 = vmatpush1.bf16.msra.mxu0 %v2171
    %2179 = vmatprep.subr.bf16.mxu0 0
    %2180 = vmatpush1.bf16.msra.mxu0 %v2160
    %2181 = vmatprep.subr.bf16.mxu0 0
    %2182 = vmatpush1.bf16.msra.mxu0 %v2159
    %2183 = vmatprep.subr.bf16.mxu0 0
    %2184 = vmatpush1.bf16.msra.mxu0 %v2158
    %2185 = vmatprep.subr.bf16.mxu0 0
    %2186 = vmatpush1.bf16.msra.mxu0 %v2157
    %2187 = vmatprep.subr.bf16.mxu0 0
    %2188 = vmatpush1.bf16.msra.mxu0 %v2156
    %2189 = vmatprep.subr.bf16.mxu0 0
    %2190 = vmatpush2.bf16.msra.mxu0 0
    %2191 = vmatprep.subr.bf16.mxu0 0
    %2192 = vmatpush2.bf16.msra.mxu0 0
    %2193 = vmatprep.subr.bf16.mxu0 0
    %2194 = vmatpush2.bf16.msra.mxu0 0
    %2195 = vmatprep.subr.bf16.mxu0 0
    %2196 = vmatpush2.bf16.msra.mxu0 0
    %2197 = vmatprep.subr.bf16.mxu0 0
    %2198 = vmatpush2.bf16.msra.mxu0 0
    %2199 = vmatprep.subr.bf16.mxu0 0
    %2200 = vmatpush2.bf16.msra.mxu0 0
    %2201 = vmatprep.subr.bf16.mxu0 0
    %2202 = vmatpush2.bf16.msra.mxu0 0
    %2203 = vmatprep.subr.bf16.mxu0 0
    %2204 = vmatpush2.bf16.msra.mxu0 0
    %2205 = vmatprep.mubr.bf16.mxu0 0
    %2206 = vmatmul.mubr.bf16.gmra.mxu0 %v2168
    %v2207 = vpop.f32.mrf.mxu0
    %v2208 = vadd.f32 %v2133, %v2207
    %v2209 = vpop.f32.mrf.mxu0
    %v2210 = vpop.f32.mrf.mxu0
    %v2211 = vpop.f32.mrf.mxu0
    %2212 = vdwg.mxu0
    %2213 = vst [vmem:[#allocation2] sm:$0x1] %v2208
    %s2214 = scalar_lea.vmem %s0, 32
    %v2215 = vld [vmem:[%s2214] sm:$0xff]
    %v2216 = vld [vmem:[%s2214 + $0x8] sm:$0xff]
    %v2217 = vld [vmem:[%s2214 + $0x10] sm:$0xff]
    %v2218 = vld [vmem:[%s2214 + $0x18] sm:$0xff]
    %v2219 = vpack.c.bf16 %v2216, %v2215
    %v2220 = vpack.c.bf16 %v2218, %v2217
    %v2221 = vld [vmem:[%s1] sm:$0xff]
    %v2222 = vld [vmem:[%s1 + $0x8] sm:$0xff]
    %v2223 = vld [vmem:[%s1 + $0x10] sm:$0xff]
    %v2224 = vld [vmem:[%s1 + $0x18] sm:$0xff]
    %v2225 = vld [vmem:[%s62] sm:$0xff]
    %v2226 = vld [vmem:[%s62 + $0x8] sm:$0xff]
    %v2227 = vld [vmem:[%s62 + $0x10] sm:$0xff]
    %v2228 = vld [vmem:[%s62 + $0x18] sm:$0xff]
    %v2230 = vshrl.u32 %v2219, 16
    %v2232 = vshll.u32 %v2219, 16
    %v2234 = vrot.slane %v2232, 1
    %v2235 = vor.u32 %v2230, %v2234
    %v2237 = vshll.u32 %v2220, 16
    %v2239 = vrot.slane %v2237, 1
    %v2240 = vsel %vm67, %v2235, %v2239
    %v2241 = vshrl.u32 %v2220, 16
    %v2243 = vor.u32 %v2241, %v2239
    %v2248 = vunpack.c.l.b16 %v2225
    %v2249 = vunpack.c.h.b16 %v2225
    %v2250 = vunpack.c.l.b16 %v2226
    %v2251 = vunpack.c.h.b16 %v2226
    %v2252 = vunpack.c.l.b16 %v2227
    %v2253 = vunpack.c.h.b16 %v2227
    %v2254 = vunpack.c.l.b16 %v2228
    %v2255 = vunpack.c.h.b16 %v2228
    %v2256 = vpack.c.b16 %v2250, %v2248
    %v2257 = vpack.c.b16 %v2251, %v2249
    %v2258 = vpack.c.b16 %v2254, %v2252
    %v2259 = vpack.c.b16 %v2255, %v2253
    %v2265 = vsel %vm103, %v2240, 0
    %v2268 = vsel %vm103, %v2243, 0
    %2270 = vmatprep.subr.bf16.mxu0 0
    %2271 = vmatpush1.bf16.msra.mxu0 0
    %2272 = vmatprep.subr.bf16.mxu0 0
    %2273 = vmatpush1.bf16.msra.mxu0 0
    %2274 = vmatprep.subr.bf16.mxu0 0
    %2275 = vmatpush1.bf16.msra.mxu0 0
    %2276 = vmatprep.subr.bf16.mxu0 0
    %2277 = vmatpush1.bf16.msra.mxu0 0
    %2278 = vmatprep.subr.bf16.mxu0 0
    %2279 = vmatpush1.bf16.msra.mxu0 0
    %2280 = vmatprep.subr.bf16.mxu0 0
    %2281 = vmatpush1.bf16.msra.mxu0 0
    %2282 = vmatprep.subr.bf16.mxu0 %v2259
    %2283 = vmatpush1.bf16.msra.mxu0 %v2258
    %2284 = vmatprep.subr.bf16.mxu0 %v2257
    %2285 = vmatpush1.bf16.msra.mxu0 %v2256
    %2286 = vmatprep.subr.bf16.mxu0 0
    %2287 = vmatpush2.bf16.msra.mxu0 0
    %2288 = vmatprep.subr.bf16.mxu0 0
    %2289 = vmatpush2.bf16.msra.mxu0 0
    %2290 = vmatprep.subr.bf16.mxu0 0
    %2291 = vmatpush2.bf16.msra.mxu0 0
    %2292 = vmatprep.subr.bf16.mxu0 0
    %2293 = vmatpush2.bf16.msra.mxu0 0
    %2294 = vmatprep.subr.bf16.mxu0 0
    %2295 = vmatpush2.bf16.msra.mxu0 0
    %2296 = vmatprep.subr.bf16.mxu0 0
    %2297 = vmatpush2.bf16.msra.mxu0 0
    %2298 = vmatprep.subr.bf16.mxu0 0
    %2299 = vmatpush2.bf16.msra.mxu0 0
    %2300 = vmatprep.subr.bf16.mxu0 0
    %2301 = vmatpush2.bf16.msra.mxu0 0
    %2302 = vmatprep.mubr.bf16.mxu0 0
    %2303 = vmatmul.mubr.bf16.gmra.mxu0 %v2265
    %v2304 = vpop.f32.mrf.mxu0
    %v2305 = vadd.f32 0.0, %v2304
    %v2306 = vpop.f32.mrf.mxu0
    %v2307 = vadd.f32 0.0, %v2306
    %v2308 = vpop.f32.mrf.mxu0
    %v2309 = vadd.f32 0.0, %v2308
    %v2310 = vpop.f32.mrf.mxu0
    %v2311 = vadd.f32 0.0, %v2310
    %2312 = vmatprep.mubr.bf16.mxu0 0
    %2313 = vmatmul.mubr.bf16.gmra.mxu0 %v2268
    %v2314 = vpop.f32.mrf.mxu0
    %v2315 = vadd.f32 0.0, %v2314
    %v2316 = vpop.f32.mrf.mxu0
    %v2317 = vadd.f32 0.0, %v2316
    %v2318 = vpop.f32.mrf.mxu0
    %v2319 = vadd.f32 0.0, %v2318
    %v2320 = vpop.f32.mrf.mxu0
    %v2321 = vadd.f32 0.0, %v2320
    %2322 = vdwg.mxu0
    %v2327 = vunpack.c.l.b16 %v2221
    %v2328 = vunpack.c.h.b16 %v2221
    %v2329 = vunpack.c.l.b16 %v2222
    %v2330 = vunpack.c.h.b16 %v2222
    %v2331 = vunpack.c.l.b16 %v2223
    %v2332 = vunpack.c.h.b16 %v2223
    %v2333 = vunpack.c.l.b16 %v2224
    %v2334 = vunpack.c.h.b16 %v2224
    %v2335 = vpack.c.b16 %v2329, %v2327
    %v2336 = vpack.c.b16 %v2330, %v2328
    %v2337 = vpack.c.b16 %v2333, %v2331
    %v2338 = vpack.c.b16 %v2334, %v2332
    %v2343 = vsel %vm103, %v2219, 0
    %v2345 = vsel %vm103, %v2220, 0
    %2347 = vmatprep.subr.bf16.mxu0 0
    %2348 = vmatpush1.bf16.msra.mxu0 0
    %2349 = vmatprep.subr.bf16.mxu0 0
    %2350 = vmatpush1.bf16.msra.mxu0 0
    %2351 = vmatprep.subr.bf16.mxu0 0
    %2352 = vmatpush1.bf16.msra.mxu0 0
    %2353 = vmatprep.subr.bf16.mxu0 0
    %2354 = vmatpush1.bf16.msra.mxu0 0
    %2355 = vmatprep.subr.bf16.mxu0 0
    %2356 = vmatpush1.bf16.msra.mxu0 0
    %2357 = vmatprep.subr.bf16.mxu0 0
    %2358 = vmatpush1.bf16.msra.mxu0 0
    %2359 = vmatprep.subr.bf16.mxu0 %v2338
    %2360 = vmatpush1.bf16.msra.mxu0 %v2337
    %2361 = vmatprep.subr.bf16.mxu0 %v2336
    %2362 = vmatpush1.bf16.msra.mxu0 %v2335
    %2363 = vmatprep.subr.bf16.mxu0 0
    %2364 = vmatpush2.bf16.msra.mxu0 0
    %2365 = vmatprep.subr.bf16.mxu0 0
    %2366 = vmatpush2.bf16.msra.mxu0 0
    %2367 = vmatprep.subr.bf16.mxu0 0
    %2368 = vmatpush2.bf16.msra.mxu0 0
    %2369 = vmatprep.subr.bf16.mxu0 0
    %2370 = vmatpush2.bf16.msra.mxu0 0
    %2371 = vmatprep.subr.bf16.mxu0 0
    %2372 = vmatpush2.bf16.msra.mxu0 0
    %2373 = vmatprep.subr.bf16.mxu0 0
    %2374 = vmatpush2.bf16.msra.mxu0 0
    %2375 = vmatprep.subr.bf16.mxu0 0
    %2376 = vmatpush2.bf16.msra.mxu0 0
    %2377 = vmatprep.subr.bf16.mxu0 0
    %2378 = vmatpush2.bf16.msra.mxu0 0
    %2379 = vmatprep.mubr.bf16.mxu0 0
    %2380 = vmatmul.mubr.bf16.gmra.mxu0 %v2343
    %v2381 = vpop.f32.mrf.mxu0
    %v2382 = vadd.f32 %v2305, %v2381
    %v2383 = vpop.f32.mrf.mxu0
    %v2384 = vadd.f32 %v2307, %v2383
    %v2385 = vpop.f32.mrf.mxu0
    %v2386 = vadd.f32 %v2309, %v2385
    %v2387 = vpop.f32.mrf.mxu0
    %v2388 = vadd.f32 %v2311, %v2387
    %2389 = vmatprep.mubr.bf16.mxu0 0
    %2390 = vmatmul.mubr.bf16.gmra.mxu0 %v2345
    %v2391 = vpop.f32.mrf.mxu0
    %v2392 = vadd.f32 %v2315, %v2391
    %v2393 = vpop.f32.mrf.mxu0
    %v2394 = vadd.f32 %v2317, %v2393
    %v2395 = vpop.f32.mrf.mxu0
    %v2396 = vadd.f32 %v2319, %v2395
    %v2397 = vpop.f32.mrf.mxu0
    %v2398 = vadd.f32 %v2321, %v2397
    %2399 = vdwg.mxu0
    %v2400 = vld [vmem:[%s240] sm:$0xff]
    %v2401 = vld [vmem:[%s240 + $0x8] sm:$0xff]
    %v2402 = vld [vmem:[%s240 + $0x10] sm:$0xff]
    %v2403 = vld [vmem:[%s240 + $0x18] sm:$0xff]
    %v2406 = vrot.slane %v2219, 1
    %v2407 = vrot.slane %v2220, 1
    %v2408 = vsel %vm247, %v2406, %v2407
    %v2413 = vunpack.c.l.b16 %v2400
    %v2414 = vunpack.c.h.b16 %v2400
    %v2415 = vunpack.c.l.b16 %v2401
    %v2416 = vunpack.c.h.b16 %v2401
    %v2417 = vunpack.c.l.b16 %v2402
    %v2418 = vunpack.c.h.b16 %v2402
    %v2419 = vunpack.c.l.b16 %v2403
    %v2420 = vunpack.c.h.b16 %v2403
    %v2421 = vpack.c.b16 %v2415, %v2413
    %v2422 = vpack.c.b16 %v2416, %v2414
    %v2423 = vpack.c.b16 %v2419, %v2417
    %v2424 = vpack.c.b16 %v2420, %v2418
    %v2430 = vsel %vm103, %v2408, 0
    %v2433 = vsel %vm103, %v2407, 0
    %2435 = vmatprep.subr.bf16.mxu0 0
    %2436 = vmatpush1.bf16.msra.mxu0 0
    %2437 = vmatprep.subr.bf16.mxu0 0
    %2438 = vmatpush1.bf16.msra.mxu0 0
    %2439 = vmatprep.subr.bf16.mxu0 0
    %2440 = vmatpush1.bf16.msra.mxu0 0
    %2441 = vmatprep.subr.bf16.mxu0 0
    %2442 = vmatpush1.bf16.msra.mxu0 0
    %2443 = vmatprep.subr.bf16.mxu0 0
    %2444 = vmatpush1.bf16.msra.mxu0 0
    %2445 = vmatprep.subr.bf16.mxu0 0
    %2446 = vmatpush1.bf16.msra.mxu0 0
    %2447 = vmatprep.subr.bf16.mxu0 %v2424
    %2448 = vmatpush1.bf16.msra.mxu0 %v2423
    %2449 = vmatprep.subr.bf16.mxu0 %v2422
    %2450 = vmatpush1.bf16.msra.mxu0 %v2421
    %2451 = vmatprep.subr.bf16.mxu0 0
    %2452 = vmatpush2.bf16.msra.mxu0 0
    %2453 = vmatprep.subr.bf16.mxu0 0
    %2454 = vmatpush2.bf16.msra.mxu0 0
    %2455 = vmatprep.subr.bf16.mxu0 0
    %2456 = vmatpush2.bf16.msra.mxu0 0
    %2457 = vmatprep.subr.bf16.mxu0 0
    %2458 = vmatpush2.bf16.msra.mxu0 0
    %2459 = vmatprep.subr.bf16.mxu0 0
    %2460 = vmatpush2.bf16.msra.mxu0 0
    %2461 = vmatprep.subr.bf16.mxu0 0
    %2462 = vmatpush2.bf16.msra.mxu0 0
    %2463 = vmatprep.subr.bf16.mxu0 0
    %2464 = vmatpush2.bf16.msra.mxu0 0
    %2465 = vmatprep.subr.bf16.mxu0 0
    %2466 = vmatpush2.bf16.msra.mxu0 0
    %2467 = vmatprep.mubr.bf16.mxu0 0
    %2468 = vmatmul.mubr.bf16.gmra.mxu0 %v2430
    %v2469 = vpop.f32.mrf.mxu0
    %v2470 = vadd.f32 0.0, %v2469
    %v2471 = vpop.f32.mrf.mxu0
    %v2472 = vadd.f32 0.0, %v2471
    %v2473 = vpop.f32.mrf.mxu0
    %v2474 = vadd.f32 0.0, %v2473
    %v2475 = vpop.f32.mrf.mxu0
    %v2476 = vadd.f32 0.0, %v2475
    %2477 = vmatprep.mubr.bf16.mxu0 0
    %2478 = vmatmul.mubr.bf16.gmra.mxu0 %v2433
    %v2479 = vpop.f32.mrf.mxu0
    %v2480 = vadd.f32 0.0, %v2479
    %v2481 = vpop.f32.mrf.mxu0
    %v2482 = vadd.f32 0.0, %v2481
    %v2483 = vpop.f32.mrf.mxu0
    %v2484 = vadd.f32 0.0, %v2483
    %v2485 = vpop.f32.mrf.mxu0
    %v2486 = vadd.f32 0.0, %v2485
    %2487 = vdwg.mxu0
    %v2488 = vadd.f32 %v2382, %v2470
    %v2489 = vadd.f32 %v2384, %v2472
    %v2490 = vadd.f32 %v2386, %v2474
    %v2491 = vadd.f32 %v2388, %v2476
    %v2492 = vadd.f32 %v2392, %v2480
    %v2493 = vadd.f32 %v2394, %v2482
    %v2494 = vadd.f32 %v2396, %v2484
    %v2495 = vadd.f32 %v2398, %v2486
    %v2496 = vld [vmem:[%s338] sm:$0xff]
    %v2497 = vld [vmem:[%s338 + $0x8] sm:$0xff]
    %v2498 = vld [vmem:[%s338 + $0x10] sm:$0xff]
    %v2499 = vld [vmem:[%s338 + $0x18] sm:$0xff]
    %v2500 = vrot.slane %v2230, 1
    %v2501 = vrot.slane %v2232, 2
    %v2502 = vor.u32 %v2500, %v2501
    %v2503 = vrot.slane %v2241, 1
    %v2504 = vrot.slane %v2237, 2
    %v2505 = vor.u32 %v2503, %v2504
    %v2506 = vsel %vm343, %v2502, %v2505
    %v2511 = vunpack.c.l.b16 %v2496
    %v2512 = vunpack.c.h.b16 %v2496
    %v2513 = vunpack.c.l.b16 %v2497
    %v2514 = vunpack.c.h.b16 %v2497
    %v2515 = vunpack.c.l.b16 %v2498
    %v2516 = vunpack.c.h.b16 %v2498
    %v2517 = vunpack.c.l.b16 %v2499
    %v2518 = vunpack.c.h.b16 %v2499
    %v2519 = vpack.c.b16 %v2513, %v2511
    %v2520 = vpack.c.b16 %v2514, %v2512
    %v2521 = vpack.c.b16 %v2517, %v2515
    %v2522 = vpack.c.b16 %v2518, %v2516
    %v2528 = vsel %vm103, %v2506, 0
    %v2531 = vsel %vm103, %v2505, 0
    %2533 = vmatprep.subr.bf16.mxu0 0
    %2534 = vmatpush1.bf16.msra.mxu0 0
    %2535 = vmatprep.subr.bf16.mxu0 0
    %2536 = vmatpush1.bf16.msra.mxu0 0
    %2537 = vmatprep.subr.bf16.mxu0 0
    %2538 = vmatpush1.bf16.msra.mxu0 0
    %2539 = vmatprep.subr.bf16.mxu0 0
    %2540 = vmatpush1.bf16.msra.mxu0 0
    %2541 = vmatprep.subr.bf16.mxu0 0
    %2542 = vmatpush1.bf16.msra.mxu0 0
    %2543 = vmatprep.subr.bf16.mxu0 0
    %2544 = vmatpush1.bf16.msra.mxu0 0
    %2545 = vmatprep.subr.bf16.mxu0 %v2522
    %2546 = vmatpush1.bf16.msra.mxu0 %v2521
    %2547 = vmatprep.subr.bf16.mxu0 %v2520
    %2548 = vmatpush1.bf16.msra.mxu0 %v2519
    %2549 = vmatprep.subr.bf16.mxu0 0
    %2550 = vmatpush2.bf16.msra.mxu0 0
    %2551 = vmatprep.subr.bf16.mxu0 0
    %2552 = vmatpush2.bf16.msra.mxu0 0
    %2553 = vmatprep.subr.bf16.mxu0 0
    %2554 = vmatpush2.bf16.msra.mxu0 0
    %2555 = vmatprep.subr.bf16.mxu0 0
    %2556 = vmatpush2.bf16.msra.mxu0 0
    %2557 = vmatprep.subr.bf16.mxu0 0
    %2558 = vmatpush2.bf16.msra.mxu0 0
    %2559 = vmatprep.subr.bf16.mxu0 0
    %2560 = vmatpush2.bf16.msra.mxu0 0
    %2561 = vmatprep.subr.bf16.mxu0 0
    %2562 = vmatpush2.bf16.msra.mxu0 0
    %2563 = vmatprep.subr.bf16.mxu0 0
    %2564 = vmatpush2.bf16.msra.mxu0 0
    %2565 = vmatprep.mubr.bf16.mxu0 0
    %2566 = vmatmul.mubr.bf16.gmra.mxu0 %v2528
    %v2567 = vpop.f32.mrf.mxu0
    %v2568 = vadd.f32 0.0, %v2567
    %v2569 = vpop.f32.mrf.mxu0
    %v2570 = vadd.f32 0.0, %v2569
    %v2571 = vpop.f32.mrf.mxu0
    %v2572 = vadd.f32 0.0, %v2571
    %v2573 = vpop.f32.mrf.mxu0
    %v2574 = vadd.f32 0.0, %v2573
    %2575 = vmatprep.mubr.bf16.mxu0 0
    %2576 = vmatmul.mubr.bf16.gmra.mxu0 %v2531
    %v2577 = vpop.f32.mrf.mxu0
    %v2578 = vadd.f32 0.0, %v2577
    %v2579 = vpop.f32.mrf.mxu0
    %v2580 = vadd.f32 0.0, %v2579
    %v2581 = vpop.f32.mrf.mxu0
    %v2582 = vadd.f32 0.0, %v2581
    %v2583 = vpop.f32.mrf.mxu0
    %v2584 = vadd.f32 0.0, %v2583
    %2585 = vdwg.mxu0
    %v2586 = vadd.f32 %v2488, %v2568
    %v2587 = vadd.f32 %v2489, %v2570
    %v2588 = vadd.f32 %v2490, %v2572
    %v2589 = vadd.f32 %v2491, %v2574
    %v2590 = vadd.f32 %v2492, %v2578
    %v2591 = vadd.f32 %v2493, %v2580
    %v2592 = vadd.f32 %v2494, %v2582
    %v2593 = vadd.f32 %v2495, %v2584
    %v2594 = vld [vmem:[%s438] sm:$0xff]
    %v2595 = vld [vmem:[%s438 + $0x8] sm:$0xff]
    %v2596 = vld [vmem:[%s438 + $0x10] sm:$0xff]
    %v2597 = vld [vmem:[%s438 + $0x18] sm:$0xff]
    %v2598 = vrot.slane %v2219, 2
    %v2599 = vrot.slane %v2220, 2
    %v2600 = vsel %vm443, %v2598, %v2599
    %v2605 = vunpack.c.l.b16 %v2594
    %v2606 = vunpack.c.h.b16 %v2594
    %v2607 = vunpack.c.l.b16 %v2595
    %v2608 = vunpack.c.h.b16 %v2595
    %v2609 = vunpack.c.l.b16 %v2596
    %v2610 = vunpack.c.h.b16 %v2596
    %v2611 = vunpack.c.l.b16 %v2597
    %v2612 = vunpack.c.h.b16 %v2597
    %v2613 = vpack.c.b16 %v2607, %v2605
    %v2614 = vpack.c.b16 %v2608, %v2606
    %v2615 = vpack.c.b16 %v2611, %v2609
    %v2616 = vpack.c.b16 %v2612, %v2610
    %v2622 = vsel %vm103, %v2600, 0
    %v2625 = vsel %vm103, %v2599, 0
    %2627 = vmatprep.subr.bf16.mxu0 0
    %2628 = vmatpush1.bf16.msra.mxu0 0
    %2629 = vmatprep.subr.bf16.mxu0 0
    %2630 = vmatpush1.bf16.msra.mxu0 0
    %2631 = vmatprep.subr.bf16.mxu0 0
    %2632 = vmatpush1.bf16.msra.mxu0 0
    %2633 = vmatprep.subr.bf16.mxu0 0
    %2634 = vmatpush1.bf16.msra.mxu0 0
    %2635 = vmatprep.subr.bf16.mxu0 0
    %2636 = vmatpush1.bf16.msra.mxu0 0
    %2637 = vmatprep.subr.bf16.mxu0 0
    %2638 = vmatpush1.bf16.msra.mxu0 0
    %2639 = vmatprep.subr.bf16.mxu0 %v2616
    %2640 = vmatpush1.bf16.msra.mxu0 %v2615
    %2641 = vmatprep.subr.bf16.mxu0 %v2614
    %2642 = vmatpush1.bf16.msra.mxu0 %v2613
    %2643 = vmatprep.subr.bf16.mxu0 0
    %2644 = vmatpush2.bf16.msra.mxu0 0
    %2645 = vmatprep.subr.bf16.mxu0 0
    %2646 = vmatpush2.bf16.msra.mxu0 0
    %2647 = vmatprep.subr.bf16.mxu0 0
    %2648 = vmatpush2.bf16.msra.mxu0 0
    %2649 = vmatprep.subr.bf16.mxu0 0
    %2650 = vmatpush2.bf16.msra.mxu0 0
    %2651 = vmatprep.subr.bf16.mxu0 0
    %2652 = vmatpush2.bf16.msra.mxu0 0
    %2653 = vmatprep.subr.bf16.mxu0 0
    %2654 = vmatpush2.bf16.msra.mxu0 0
    %2655 = vmatprep.subr.bf16.mxu0 0
    %2656 = vmatpush2.bf16.msra.mxu0 0
    %2657 = vmatprep.subr.bf16.mxu0 0
    %2658 = vmatpush2.bf16.msra.mxu0 0
    %2659 = vmatprep.mubr.bf16.mxu0 0
    %2660 = vmatmul.mubr.bf16.gmra.mxu0 %v2622
    %v2661 = vpop.f32.mrf.mxu0
    %v2662 = vadd.f32 0.0, %v2661
    %v2663 = vpop.f32.mrf.mxu0
    %v2664 = vadd.f32 0.0, %v2663
    %v2665 = vpop.f32.mrf.mxu0
    %v2666 = vadd.f32 0.0, %v2665
    %v2667 = vpop.f32.mrf.mxu0
    %v2668 = vadd.f32 0.0, %v2667
    %2669 = vmatprep.mubr.bf16.mxu0 0
    %2670 = vmatmul.mubr.bf16.gmra.mxu0 %v2625
    %v2671 = vpop.f32.mrf.mxu0
    %v2672 = vadd.f32 0.0, %v2671
    %v2673 = vpop.f32.mrf.mxu0
    %v2674 = vadd.f32 0.0, %v2673
    %v2675 = vpop.f32.mrf.mxu0
    %v2676 = vadd.f32 0.0, %v2675
    %v2677 = vpop.f32.mrf.mxu0
    %v2678 = vadd.f32 0.0, %v2677
    %2679 = vdwg.mxu0
    %v2680 = vadd.f32 %v2586, %v2662
    %v2681 = vadd.f32 %v2587, %v2664
    %v2682 = vadd.f32 %v2588, %v2666
    %v2683 = vadd.f32 %v2589, %v2668
    %v2684 = vadd.f32 %v2590, %v2672
    %v2685 = vadd.f32 %v2591, %v2674
    %v2686 = vadd.f32 %v2592, %v2676
    %v2687 = vadd.f32 %v2593, %v2678
    %v2688 = vld [vmem:[%s2] sm:$0x3]
    %v2690 = vlaneseq
    %v2691 = vshrl.u32 %v2690, 7
    %v2692 = vsub.s32 0, %v2691
    %v2693 = vrot.slane %v2688, %v2692
    %v2694 = vlaneseq
    %v2695 = vshrl.u32 %v2694, 7
    %v2696 = vsub.s32 1, %v2695
    %v2697 = vrot.slane %v2688, %v2696
    %v2700 = vadd.f32 %v2680, %v2693
    %v2701 = vadd.f32 %v2681, %v2697
    %v2702 = vadd.f32 %v2682, %v2693
    %v2703 = vadd.f32 %v2683, %v2697
    %v2704 = vadd.f32 %v2684, %v2693
    %v2705 = vadd.f32 %v2685, %v2697
    %v2706 = vadd.f32 %v2686, %v2693
    %v2707 = vadd.f32 %v2687, %v2697
    %v2708 = vmax.f32 %v2700, 0.0
    %v2709 = vmax.f32 %v2701, 0.0
    %v2710 = vmax.f32 %v2702, 0.0
    %v2711 = vmax.f32 %v2703, 0.0
    %v2712 = vmax.f32 %v2704, 0.0
    %v2713 = vmax.f32 %v2705, 0.0
    %v2714 = vmax.f32 %v2706, 0.0
    %v2715 = vmax.f32 %v2707, 0.0
    %v2716 = vld [vmem:[%s3] sm:$0xff]
    %v2717 = vld [vmem:[%s3 + $0x8] sm:$0x3f]
    %v2719 = vsel %vm564, %v2716, 0
    %v2722 = vsel %vm564, %v2717, 0
    %v2725 = vsel %vm571, %v2714, 0
    %v2728 = vsel %vm571, %v2715, 0
    %2730 = vmatprep.subr.mxu0 0.0
    %2731 = vmatpush1.msra.mxu0 0.0
    %2732 = vmatprep.subr.mxu0 0.0
    %2733 = vmatpush1.msra.mxu0 0.0
    %2734 = vmatprep.subr.mxu0 0.0
    %2735 = vmatpush1.msra.mxu0 0.0
    %2736 = vmatprep.subr.mxu0 0.0
    %2737 = vmatpush1.msra.mxu0 0.0
    %2738 = vmatprep.subr.mxu0 0.0
    %2739 = vmatpush1.msra.mxu0 0.0
    %2740 = vmatprep.subr.mxu0 0.0
    %2741 = vmatpush1.msra.mxu0 0.0
    %2742 = vmatprep.subr.mxu0 0.0
    %2743 = vmatpush1.msra.mxu0 0.0
    %2744 = vmatprep.subr.mxu0 0.0
    %2745 = vmatpush1.msra.mxu0 0.0
    %2746 = vmatprep.subr.mxu0 0.0
    %2747 = vmatpush1.msra.mxu0 0.0
    %2748 = vmatprep.subr.mxu0 0.0
    %2749 = vmatpush1.msra.mxu0 0.0
    %2750 = vmatprep.subr.mxu0 0.0
    %2751 = vmatpush1.msra.mxu0 0.0
    %2752 = vmatprep.subr.mxu0 0.0
    %2753 = vmatpush1.msra.mxu0 0.0
    %2754 = vmatprep.subr.mxu0 %v2728
    %2755 = vmatpush1.msra.mxu0 %v2725
    %2756 = vmatprep.subr.mxu0 %v2713
    %2757 = vmatpush1.msra.mxu0 %v2712
    %2758 = vmatprep.subr.mxu0 %v2711
    %2759 = vmatpush1.msra.mxu0 %v2710
    %2760 = vmatprep.subr.mxu0 %v2709
    %2761 = vmatpush1.msra.mxu0 %v2708
    %2762 = vmatprep.subr.mxu0 0.0
    %2763 = vmatpush2.msra.mxu0 0.0
    %2764 = vmatprep.subr.mxu0 0.0
    %2765 = vmatpush2.msra.mxu0 0.0
    %2766 = vmatprep.subr.mxu0 0.0
    %2767 = vmatpush2.msra.mxu0 0.0
    %2768 = vmatprep.subr.mxu0 0.0
    %2769 = vmatpush2.msra.mxu0 0.0
    %2770 = vmatprep.subr.mxu0 0.0
    %2771 = vmatpush2.msra.mxu0 0.0
    %2772 = vmatprep.subr.mxu0 0.0
    %2773 = vmatpush2.msra.mxu0 0.0
    %2774 = vmatprep.subr.mxu0 0.0
    %2775 = vmatpush2.msra.mxu0 0.0
    %2776 = vmatprep.subr.mxu0 0.0
    %2777 = vmatpush2.msra.mxu0 0.0
    %2778 = vmatprep.subr.mxu0 0.0
    %2779 = vmatpush2.msra.mxu0 0.0
    %2780 = vmatprep.subr.mxu0 0.0
    %2781 = vmatpush2.msra.mxu0 0.0
    %2782 = vmatprep.subr.mxu0 0.0
    %2783 = vmatpush2.msra.mxu0 0.0
    %2784 = vmatprep.subr.mxu0 0.0
    %2785 = vmatpush2.msra.mxu0 0.0
    %2786 = vmatprep.subr.mxu0 0.0
    %2787 = vmatpush2.msra.mxu0 0.0
    %2788 = vmatprep.subr.mxu0 0.0
    %2789 = vmatpush2.msra.mxu0 0.0
    %2790 = vmatprep.subr.mxu0 0.0
    %2791 = vmatpush2.msra.mxu0 0.0
    %2792 = vmatprep.subr.mxu0 0.0
    %2793 = vmatpush2.msra.mxu0 0.0
    %2794 = vmatprep.mubr.f32.mxu0 0.0
    %2795 = vmatmul.mubr.f32.gmra.mxu0 %v2719
    %v2796 = vpop.f32.mrf.mxu0
    %v2797 = vadd.f32 0.0, %v2796
    %v2798 = vpop.f32.mrf.mxu0
    %v2799 = vadd.f32 0.0, %v2798
    %2800 = vmatprep.mubr.f32.mxu0 0.0
    %2801 = vmatmul.mubr.f32.gmra.mxu0 %v2722
    %v2802 = vpop.f32.mrf.mxu0
    %v2803 = vadd.f32 0.0, %v2802
    %v2804 = vpop.f32.mrf.mxu0
    %v2805 = vadd.f32 0.0, %v2804
    %2806 = vdwg.mxu0
    %v2807 = vld [vmem:[%s4] sm:$0xff]
    %v2808 = vld [vmem:[%s4 + $0x8] sm:$0xff]
    %v2809 = vld [vmem:[%s4 + $0x10] sm:$0xff]
    %v2810 = vld [vmem:[%s4 + $0x18] sm:$0xff]
    %v2811 = vld [vmem:[%s4 + $0x20] sm:$0xff]
    %v2812 = vld [vmem:[%s4 + $0x28] sm:$0xff]
    %v2813 = vld [vmem:[%s4 + $0x30] sm:$0xff]
    %v2814 = vld [vmem:[%s4 + $0x38] sm:$0xff]
    %v2815 = vld [vmem:[%s4 + $0x40] sm:$0xff]
    %v2816 = vld [vmem:[%s4 + $0x48] sm:$0xff]
    %v2817 = vld [vmem:[%s4 + $0x50] sm:$0xff]
    %v2818 = vld [vmem:[%s4 + $0x58] sm:$0xff]
    %v2819 = vld [vmem:[%s4 + $0x60] sm:$0xff]
    %v2820 = vld [vmem:[%s4 + $0x68] sm:$0xff]
    %v2821 = vld [vmem:[%s4 + $0x70] sm:$0xff]
    %v2822 = vld [vmem:[%s4 + $0x78] sm:$0xff]
    %v2823 = vld [vmem:[%s4 + $0x80] sm:$0xff]
    %v2824 = vld [vmem:[%s4 + $0x88] sm:$0xff]
    %v2825 = vld [vmem:[%s4 + $0x90] sm:$0xff]
    %v2826 = vld [vmem:[%s4 + $0x98] sm:$0xff]
    %v2827 = vld [vmem:[%s4 + $0xa0] sm:$0xff]
    %v2829 = vsel %vm676, %v2799, 0
    %v2832 = vsel %vm676, %v2805, 0
    %2834 = vmatprep.subr.mxu0 0.0
    %2835 = vmatpush1.msra.mxu0 %v2822
    %2836 = vmatprep.subr.mxu0 0.0
    %2837 = vmatpush1.msra.mxu0 %v2821
    %2838 = vmatprep.subr.mxu0 0.0
    %2839 = vmatpush1.msra.mxu0 %v2820
    %2840 = vmatprep.subr.mxu0 0.0
    %2841 = vmatpush1.msra.mxu0 %v2819
    %2842 = vmatprep.subr.mxu0 0.0
    %2843 = vmatpush1.msra.mxu0 %v2818
    %2844 = vmatprep.subr.mxu0 0.0
    %2845 = vmatpush1.msra.mxu0 %v2817
    %2846 = vmatprep.subr.mxu0 0.0
    %2847 = vmatpush1.msra.mxu0 %v2816
    %2848 = vmatprep.subr.mxu0 0.0
    %2849 = vmatpush1.msra.mxu0 %v2815
    %2850 = vmatprep.subr.mxu0 0.0
    %2851 = vmatpush1.msra.mxu0 %v2814
    %2852 = vmatprep.subr.mxu0 0.0
    %2853 = vmatpush1.msra.mxu0 %v2813
    %2854 = vmatprep.subr.mxu0 0.0
    %2855 = vmatpush1.msra.mxu0 %v2812
    %2856 = vmatprep.subr.mxu0 0.0
    %2857 = vmatpush1.msra.mxu0 %v2811
    %2858 = vmatprep.subr.mxu0 0.0
    %2859 = vmatpush1.msra.mxu0 %v2810
    %2860 = vmatprep.subr.mxu0 0.0
    %2861 = vmatpush1.msra.mxu0 %v2809
    %2862 = vmatprep.subr.mxu0 0.0
    %2863 = vmatpush1.msra.mxu0 %v2808
    %2864 = vmatprep.subr.mxu0 0.0
    %2865 = vmatpush1.msra.mxu0 %v2807
    %2866 = vmatprep.subr.mxu0 0.0
    %2867 = vmatpush2.msra.mxu0 0.0
    %2868 = vmatprep.subr.mxu0 0.0
    %2869 = vmatpush2.msra.mxu0 0.0
    %2870 = vmatprep.subr.mxu0 0.0
    %2871 = vmatpush2.msra.mxu0 0.0
    %2872 = vmatprep.subr.mxu0 0.0
    %2873 = vmatpush2.msra.mxu0 0.0
    %2874 = vmatprep.subr.mxu0 0.0
    %2875 = vmatpush2.msra.mxu0 0.0
    %2876 = vmatprep.subr.mxu0 0.0
    %2877 = vmatpush2.msra.mxu0 0.0
    %2878 = vmatprep.subr.mxu0 0.0
    %2879 = vmatpush2.msra.mxu0 0.0
    %2880 = vmatprep.subr.mxu0 0.0
    %2881 = vmatpush2.msra.mxu0 0.0
    %2882 = vmatprep.subr.mxu0 0.0
    %2883 = vmatpush2.msra.mxu0 0.0
    %2884 = vmatprep.subr.mxu0 0.0
    %2885 = vmatpush2.msra.mxu0 0.0
    %2886 = vmatprep.subr.mxu0 0.0
    %2887 = vmatpush2.msra.mxu0 0.0
    %2888 = vmatprep.subr.mxu0 0.0
    %2889 = vmatpush2.msra.mxu0 %v2827
    %2890 = vmatprep.subr.mxu0 0.0
    %2891 = vmatpush2.msra.mxu0 %v2826
    %2892 = vmatprep.subr.mxu0 0.0
    %2893 = vmatpush2.msra.mxu0 %v2825
    %2894 = vmatprep.subr.mxu0 0.0
    %2895 = vmatpush2.msra.mxu0 %v2824
    %2896 = vmatprep.subr.mxu0 0.0
    %2897 = vmatpush2.msra.mxu0 %v2823
    %2898 = vmatprep.mubr.f32.mxu0 %v2829
    %2899 = vmatmul.mubr.f32.gmra.mxu0 %v2797
    %v2900 = vpop.f32.mrf.mxu0
    %v2901 = vadd.f32 0.0, %v2900
    %v2902 = vpop.f32.mrf.mxu0
    %2903 = vmatprep.mubr.f32.mxu0 %v2832
    %2904 = vmatmul.mubr.f32.gmra.mxu0 %v2803
    %v2905 = vpop.f32.mrf.mxu0
    %v2906 = vadd.f32 0.0, %v2905
    %v2907 = vpop.f32.mrf.mxu0
    %2908 = vdwg.mxu0
    %v2909 = vpack.c.bf16 %v2906, %v2901
    %v2910 = vld [vmem:[%s5] sm:$0xff]
    %v2911 = vld [vmem:[%s5 + $0x8] sm:$0xff]
    %v2912 = vld [vmem:[%s5 + $0x10] sm:$0xff]
    %v2913 = vld [vmem:[%s5 + $0x18] sm:$0xff]
    %v2914 = vld [vmem:[%s5 + $0x20] sm:$0xff]
    %v2915 = vld [vmem:[%s5 + $0x28] sm:$0xff]
    %v2916 = vld [vmem:[%s5 + $0x30] sm:$0xff]
    %v2917 = vld [vmem:[%s5 + $0x38] sm:$0xff]
    %v2918 = vld [vmem:[%s5 + $0x40] sm:$0xff]
    %v2919 = vld [vmem:[%s5 + $0x48] sm:$0xff]
    %v2920 = vld [vmem:[%s5 + $0x50] sm:$0x33]
    %v2921 = vld [vmem:[%s770] sm:$0xff]
    %v2922 = vld [vmem:[%s770 + $0x8] sm:$0xff]
    %v2923 = vld [vmem:[%s770 + $0x10] sm:$0xff]
    %v2924 = vld [vmem:[%s770 + $0x18] sm:$0xff]
    %v2925 = vld [vmem:[%s770 + $0x20] sm:$0xff]
    %v2926 = vld [vmem:[%s770 + $0x28] sm:$0xff]
    %v2927 = vld [vmem:[%s770 + $0x30] sm:$0xff]
    %v2928 = vld [vmem:[%s770 + $0x38] sm:$0xff]
    %v2929 = vld [vmem:[%s770 + $0x40] sm:$0xff]
    %v2930 = vld [vmem:[%s770 + $0x48] sm:$0xff]
    %v2931 = vld [vmem:[%s770 + $0x50] sm:$0x33]
    %v2933 = vshrl.u32 %v2909, 16
    %v2935 = vshll.u32 %v2909, 16
    %v2937 = vrot.slane %v2935, 1
    %v2938 = vor.u32 %v2933, %v2937
    %v2950 = vunpack.c.l.b16 %v2921
    %v2951 = vunpack.c.h.b16 %v2921
    %v2952 = vunpack.c.l.b16 %v2922
    %v2953 = vunpack.c.h.b16 %v2922
    %v2954 = vunpack.c.l.b16 %v2923
    %v2955 = vunpack.c.h.b16 %v2923
    %v2956 = vunpack.c.l.b16 %v2924
    %v2957 = vunpack.c.h.b16 %v2924
    %v2958 = vunpack.c.l.b16 %v2925
    %v2959 = vunpack.c.h.b16 %v2925
    %v2960 = vunpack.c.l.b16 %v2926
    %v2961 = vunpack.c.h.b16 %v2926
    %v2962 = vunpack.c.l.b16 %v2927
    %v2963 = vunpack.c.h.b16 %v2927
    %v2964 = vunpack.c.l.b16 %v2928
    %v2965 = vunpack.c.h.b16 %v2928
    %v2966 = vunpack.c.l.b16 %v2929
    %v2967 = vunpack.c.h.b16 %v2929
    %v2968 = vunpack.c.l.b16 %v2930
    %v2969 = vunpack.c.h.b16 %v2930
    %v2970 = vunpack.c.l.b16 %v2931
    %v2971 = vunpack.c.h.b16 %v2931
    %v2972 = vpack.c.b16 %v2952, %v2950
    %v2973 = vpack.c.b16 %v2953, %v2951
    %v2974 = vpack.c.b16 %v2956, %v2954
    %v2975 = vpack.c.b16 %v2957, %v2955
    %v2976 = vpack.c.b16 %v2960, %v2958
    %v2977 = vpack.c.b16 %v2961, %v2959
    %v2978 = vpack.c.b16 %v2964, %v2962
    %v2979 = vpack.c.b16 %v2965, %v2963
    %v2980 = vpack.c.b16 %v2968, %v2966
    %v2981 = vpack.c.b16 %v2969, %v2967
    %v2982 = vpack.c.b16 %v2970, %v2970
    %v2983 = vpack.c.b16 %v2971, %v2971
    %v2995 = vsel %vm844, %v2938, 0
    %v2998 = vsel %vm848, %v2982, 0
    %v3001 = vsel %vm848, %v2983, 0
    %3003 = vmatprep.subr.bf16.mxu0 0
    %3004 = vmatpush1.bf16.msra.mxu0 0
    %3005 = vmatprep.subr.bf16.mxu0 0
    %3006 = vmatpush1.bf16.msra.mxu0 0
    %3007 = vmatprep.subr.bf16.mxu0 %v3001
    %3008 = vmatpush1.bf16.msra.mxu0 %v2998
    %3009 = vmatprep.subr.bf16.mxu0 %v2981
    %3010 = vmatpush1.bf16.msra.mxu0 %v2980
    %3011 = vmatprep.subr.bf16.mxu0 %v2979
    %3012 = vmatpush1.bf16.msra.mxu0 %v2978
    %3013 = vmatprep.subr.bf16.mxu0 %v2977
    %3014 = vmatpush1.bf16.msra.mxu0 %v2976
    %3015 = vmatprep.subr.bf16.mxu0 %v2975
    %3016 = vmatpush1.bf16.msra.mxu0 %v2974
    %3017 = vmatprep.subr.bf16.mxu0 %v2973
    %3018 = vmatpush1.bf16.msra.mxu0 %v2972
    %3019 = vmatprep.subr.bf16.mxu0 0
    %3020 = vmatpush2.bf16.msra.mxu0 0
    %3021 = vmatprep.subr.bf16.mxu0 0
    %3022 = vmatpush2.bf16.msra.mxu0 0
    %3023 = vmatprep.subr.bf16.mxu0 0
    %3024 = vmatpush2.bf16.msra.mxu0 0
    %3025 = vmatprep.subr.bf16.mxu0 0
    %3026 = vmatpush2.bf16.msra.mxu0 0
    %3027 = vmatprep.subr.bf16.mxu0 0
    %3028 = vmatpush2.bf16.msra.mxu0 0
    %3029 = vmatprep.subr.bf16.mxu0 0
    %3030 = vmatpush2.bf16.msra.mxu0 0
    %3031 = vmatprep.subr.bf16.mxu0 0
    %3032 = vmatpush2.bf16.msra.mxu0 0
    %3033 = vmatprep.subr.bf16.mxu0 0
    %3034 = vmatpush2.bf16.msra.mxu0 0
    %3035 = vmatprep.mubr.bf16.mxu0 0
    %3036 = vmatmul.mubr.bf16.gmra.mxu0 %v2995
    %v3037 = vpop.f32.mrf.mxu0
    %v3038 = vadd.f32 0.0, %v3037
    %v3039 = vpop.f32.mrf.mxu0
    %v3040 = vadd.f32 0.0, %v3039
    %v3041 = vpop.f32.mrf.mxu0
    %v3042 = vadd.f32 0.0, %v3041
    %v3043 = vpop.f32.mrf.mxu0
    %v3044 = vadd.f32 0.0, %v3043
    %3045 = vdwg.mxu0
    %v3057 = vunpack.c.l.b16 %v2910
    %v3058 = vunpack.c.h.b16 %v2910
    %v3059 = vunpack.c.l.b16 %v2911
    %v3060 = vunpack.c.h.b16 %v2911
    %v3061 = vunpack.c.l.b16 %v2912
    %v3062 = vunpack.c.h.b16 %v2912
    %v3063 = vunpack.c.l.b16 %v2913
    %v3064 = vunpack.c.h.b16 %v2913
    %v3065 = vunpack.c.l.b16 %v2914
    %v3066 = vunpack.c.h.b16 %v2914
    %v3067 = vunpack.c.l.b16 %v2915
    %v3068 = vunpack.c.h.b16 %v2915
    %v3069 = vunpack.c.l.b16 %v2916
    %v3070 = vunpack.c.h.b16 %v2916
    %v3071 = vunpack.c.l.b16 %v2917
    %v3072 = vunpack.c.h.b16 %v2917
    %v3073 = vunpack.c.l.b16 %v2918
    %v3074 = vunpack.c.h.b16 %v2918
    %v3075 = vunpack.c.l.b16 %v2919
    %v3076 = vunpack.c.h.b16 %v2919
    %v3077 = vunpack.c.l.b16 %v2920
    %v3078 = vunpack.c.h.b16 %v2920
    %v3079 = vpack.c.b16 %v3059, %v3057
    %v3080 = vpack.c.b16 %v3060, %v3058
    %v3081 = vpack.c.b16 %v3063, %v3061
    %v3082 = vpack.c.b16 %v3064, %v3062
    %v3083 = vpack.c.b16 %v3067, %v3065
    %v3084 = vpack.c.b16 %v3068, %v3066
    %v3085 = vpack.c.b16 %v3071, %v3069
    %v3086 = vpack.c.b16 %v3072, %v3070
    %v3087 = vpack.c.b16 %v3075, %v3073
    %v3088 = vpack.c.b16 %v3076, %v3074
    %v3089 = vpack.c.b16 %v3077, %v3077
    %v3090 = vpack.c.b16 %v3078, %v3078
    %v3101 = vsel %vm844, %v2909, 0
    %v3104 = vsel %vm848, %v3089, 0
    %v3107 = vsel %vm848, %v3090, 0
    %3109 = vmatprep.subr.bf16.mxu0 0
    %3110 = vmatpush1.bf16.msra.mxu0 0
    %3111 = vmatprep.subr.bf16.mxu0 0
    %3112 = vmatpush1.bf16.msra.mxu0 0
    %3113 = vmatprep.subr.bf16.mxu0 %v3107
    %3114 = vmatpush1.bf16.msra.mxu0 %v3104
    %3115 = vmatprep.subr.bf16.mxu0 %v3088
    %3116 = vmatpush1.bf16.msra.mxu0 %v3087
    %3117 = vmatprep.subr.bf16.mxu0 %v3086
    %3118 = vmatpush1.bf16.msra.mxu0 %v3085
    %3119 = vmatprep.subr.bf16.mxu0 %v3084
    %3120 = vmatpush1.bf16.msra.mxu0 %v3083
    %3121 = vmatprep.subr.bf16.mxu0 %v3082
    %3122 = vmatpush1.bf16.msra.mxu0 %v3081
    %3123 = vmatprep.subr.bf16.mxu0 %v3080
    %3124 = vmatpush1.bf16.msra.mxu0 %v3079
    %3125 = vmatprep.subr.bf16.mxu0 0
    %3126 = vmatpush2.bf16.msra.mxu0 0
    %3127 = vmatprep.subr.bf16.mxu0 0
    %3128 = vmatpush2.bf16.msra.mxu0 0
    %3129 = vmatprep.subr.bf16.mxu0 0
    %3130 = vmatpush2.bf16.msra.mxu0 0
    %3131 = vmatprep.subr.bf16.mxu0 0
    %3132 = vmatpush2.bf16.msra.mxu0 0
    %3133 = vmatprep.subr.bf16.mxu0 0
    %3134 = vmatpush2.bf16.msra.mxu0 0
    %3135 = vmatprep.subr.bf16.mxu0 0
    %3136 = vmatpush2.bf16.msra.mxu0 0
    %3137 = vmatprep.subr.bf16.mxu0 0
    %3138 = vmatpush2.bf16.msra.mxu0 0
    %3139 = vmatprep.subr.bf16.mxu0 0
    %3140 = vmatpush2.bf16.msra.mxu0 0
    %3141 = vmatprep.mubr.bf16.mxu0 0
    %3142 = vmatmul.mubr.bf16.gmra.mxu0 %v3101
    %v3143 = vpop.f32.mrf.mxu0
    %v3144 = vadd.f32 %v3038, %v3143
    %v3145 = vpop.f32.mrf.mxu0
    %v3146 = vadd.f32 %v3040, %v3145
    %v3147 = vpop.f32.mrf.mxu0
    %v3148 = vadd.f32 %v3042, %v3147
    %v3149 = vpop.f32.mrf.mxu0
    %v3150 = vadd.f32 %v3044, %v3149
    %3151 = vdwg.mxu0
    %v3152 = vld [vmem:[%s1004] sm:$0xff]
    %v3153 = vld [vmem:[%s1004 + $0x8] sm:$0xff]
    %v3154 = vld [vmem:[%s1004 + $0x10] sm:$0xff]
    %v3155 = vld [vmem:[%s1004 + $0x18] sm:$0xff]
    %v3156 = vld [vmem:[%s1004 + $0x20] sm:$0xff]
    %v3157 = vld [vmem:[%s1004 + $0x28] sm:$0xff]
    %v3158 = vld [vmem:[%s1004 + $0x30] sm:$0xff]
    %v3159 = vld [vmem:[%s1004 + $0x38] sm:$0xff]
    %v3160 = vld [vmem:[%s1004 + $0x40] sm:$0xff]
    %v3161 = vld [vmem:[%s1004 + $0x48] sm:$0xff]
    %v3162 = vld [vmem:[%s1004 + $0x50] sm:$0x33]
    %v3164 = vrot.slane %v2909, 1
    %v3176 = vunpack.c.l.b16 %v3152
    %v3177 = vunpack.c.h.b16 %v3152
    %v3178 = vunpack.c.l.b16 %v3153
    %v3179 = vunpack.c.h.b16 %v3153
    %v3180 = vunpack.c.l.b16 %v3154
    %v3181 = vunpack.c.h.b16 %v3154
    %v3182 = vunpack.c.l.b16 %v3155
    %v3183 = vunpack.c.h.b16 %v3155
    %v3184 = vunpack.c.l.b16 %v3156
    %v3185 = vunpack.c.h.b16 %v3156
    %v3186 = vunpack.c.l.b16 %v3157
    %v3187 = vunpack.c.h.b16 %v3157
    %v3188 = vunpack.c.l.b16 %v3158
    %v3189 = vunpack.c.h.b16 %v3158
    %v3190 = vunpack.c.l.b16 %v3159
    %v3191 = vunpack.c.h.b16 %v3159
    %v3192 = vunpack.c.l.b16 %v3160
    %v3193 = vunpack.c.h.b16 %v3160
    %v3194 = vunpack.c.l.b16 %v3161
    %v3195 = vunpack.c.h.b16 %v3161
    %v3196 = vunpack.c.l.b16 %v3162
    %v3197 = vunpack.c.h.b16 %v3162
    %v3198 = vpack.c.b16 %v3178, %v3176
    %v3199 = vpack.c.b16 %v3179, %v3177
    %v3200 = vpack.c.b16 %v3182, %v3180
    %v3201 = vpack.c.b16 %v3183, %v3181
    %v3202 = vpack.c.b16 %v3186, %v3184
    %v3203 = vpack.c.b16 %v3187, %v3185
    %v3204 = vpack.c.b16 %v3190, %v3188
    %v3205 = vpack.c.b16 %v3191, %v3189
    %v3206 = vpack.c.b16 %v3194, %v3192
    %v3207 = vpack.c.b16 %v3195, %v3193
    %v3208 = vpack.c.b16 %v3196, %v3196
    %v3209 = vpack.c.b16 %v3197, %v3197
    %v3221 = vsel %vm844, %v3164, 0
    %v3224 = vsel %vm848, %v3208, 0
    %v3227 = vsel %vm848, %v3209, 0
    %3229 = vmatprep.subr.bf16.mxu0 0
    %3230 = vmatpush1.bf16.msra.mxu0 0
    %3231 = vmatprep.subr.bf16.mxu0 0
    %3232 = vmatpush1.bf16.msra.mxu0 0
    %3233 = vmatprep.subr.bf16.mxu0 %v3227
    %3234 = vmatpush1.bf16.msra.mxu0 %v3224
    %3235 = vmatprep.subr.bf16.mxu0 %v3207
    %3236 = vmatpush1.bf16.msra.mxu0 %v3206
    %3237 = vmatprep.subr.bf16.mxu0 %v3205
    %3238 = vmatpush1.bf16.msra.mxu0 %v3204
    %3239 = vmatprep.subr.bf16.mxu0 %v3203
    %3240 = vmatpush1.bf16.msra.mxu0 %v3202
    %3241 = vmatprep.subr.bf16.mxu0 %v3201
    %3242 = vmatpush1.bf16.msra.mxu0 %v3200
    %3243 = vmatprep.subr.bf16.mxu0 %v3199
    %3244 = vmatpush1.bf16.msra.mxu0 %v3198
    %3245 = vmatprep.subr.bf16.mxu0 0
    %3246 = vmatpush2.bf16.msra.mxu0 0
    %3247 = vmatprep.subr.bf16.mxu0 0
    %3248 = vmatpush2.bf16.msra.mxu0 0
    %3249 = vmatprep.subr.bf16.mxu0 0
    %3250 = vmatpush2.bf16.msra.mxu0 0
    %3251 = vmatprep.subr.bf16.mxu0 0
    %3252 = vmatpush2.bf16.msra.mxu0 0
    %3253 = vmatprep.subr.bf16.mxu0 0
    %3254 = vmatpush2.bf16.msra.mxu0 0
    %3255 = vmatprep.subr.bf16.mxu0 0
    %3256 = vmatpush2.bf16.msra.mxu0 0
    %3257 = vmatprep.subr.bf16.mxu0 0
    %3258 = vmatpush2.bf16.msra.mxu0 0
    %3259 = vmatprep.subr.bf16.mxu0 0
    %3260 = vmatpush2.bf16.msra.mxu0 0
    %3261 = vmatprep.mubr.bf16.mxu0 0
    %3262 = vmatmul.mubr.bf16.gmra.mxu0 %v3221
    %v3263 = vpop.f32.mrf.mxu0
    %v3264 = vadd.f32 0.0, %v3263
    %v3265 = vpop.f32.mrf.mxu0
    %v3266 = vadd.f32 0.0, %v3265
    %v3267 = vpop.f32.mrf.mxu0
    %v3268 = vadd.f32 0.0, %v3267
    %v3269 = vpop.f32.mrf.mxu0
    %v3270 = vadd.f32 0.0, %v3269
    %3271 = vdwg.mxu0
    %v3272 = vadd.f32 %v3144, %v3264
    %v3273 = vadd.f32 %v3146, %v3266
    %v3274 = vadd.f32 %v3148, %v3268
    %v3275 = vadd.f32 %v3150, %v3270
    %v3276 = vld [vmem:[%s1129] sm:$0xff]
    %v3277 = vld [vmem:[%s1129 + $0x8] sm:$0xff]
    %v3278 = vld [vmem:[%s1129 + $0x10] sm:$0xff]
    %v3279 = vld [vmem:[%s1129 + $0x18] sm:$0xff]
    %v3280 = vld [vmem:[%s1129 + $0x20] sm:$0xff]
    %v3281 = vld [vmem:[%s1129 + $0x28] sm:$0xff]
    %v3282 = vld [vmem:[%s1129 + $0x30] sm:$0xff]
    %v3283 = vld [vmem:[%s1129 + $0x38] sm:$0xff]
    %v3284 = vld [vmem:[%s1129 + $0x40] sm:$0xff]
    %v3285 = vld [vmem:[%s1129 + $0x48] sm:$0xff]
    %v3286 = vld [vmem:[%s1129 + $0x50] sm:$0x33]
    %v3287 = vrot.slane %v2933, 1
    %v3288 = vrot.slane %v2935, 2
    %v3289 = vor.u32 %v3287, %v3288
    %v3301 = vunpack.c.l.b16 %v3276
    %v3302 = vunpack.c.h.b16 %v3276
    %v3303 = vunpack.c.l.b16 %v3277
    %v3304 = vunpack.c.h.b16 %v3277
    %v3305 = vunpack.c.l.b16 %v3278
    %v3306 = vunpack.c.h.b16 %v3278
    %v3307 = vunpack.c.l.b16 %v3279
    %v3308 = vunpack.c.h.b16 %v3279
    %v3309 = vunpack.c.l.b16 %v3280
    %v3310 = vunpack.c.h.b16 %v3280
    %v3311 = vunpack.c.l.b16 %v3281
    %v3312 = vunpack.c.h.b16 %v3281
    %v3313 = vunpack.c.l.b16 %v3282
    %v3314 = vunpack.c.h.b16 %v3282
    %v3315 = vunpack.c.l.b16 %v3283
    %v3316 = vunpack.c.h.b16 %v3283
    %v3317 = vunpack.c.l.b16 %v3284
    %v3318 = vunpack.c.h.b16 %v3284
    %v3319 = vunpack.c.l.b16 %v3285
    %v3320 = vunpack.c.h.b16 %v3285
    %v3321 = vunpack.c.l.b16 %v3286
    %v3322 = vunpack.c.h.b16 %v3286
    %v3323 = vpack.c.b16 %v3303, %v3301
    %v3324 = vpack.c.b16 %v3304, %v3302
    %v3325 = vpack.c.b16 %v3307, %v3305
    %v3326 = vpack.c.b16 %v3308, %v3306
    %v3327 = vpack.c.b16 %v3311, %v3309
    %v3328 = vpack.c.b16 %v3312, %v3310
    %v3329 = vpack.c.b16 %v3315, %v3313
    %v3330 = vpack.c.b16 %v3316, %v3314
    %v3331 = vpack.c.b16 %v3319, %v3317
    %v3332 = vpack.c.b16 %v3320, %v3318
    %v3333 = vpack.c.b16 %v3321, %v3321
    %v3334 = vpack.c.b16 %v3322, %v3322
    %v3346 = vsel %vm844, %v3289, 0
    %v3349 = vsel %vm848, %v3333, 0
    %v3352 = vsel %vm848, %v3334, 0
    %3354 = vmatprep.subr.bf16.mxu0 0
    %3355 = vmatpush1.bf16.msra.mxu0 0
    %3356 = vmatprep.subr.bf16.mxu0 0
    %3357 = vmatpush1.bf16.msra.mxu0 0
    %3358 = vmatprep.subr.bf16.mxu0 %v3352
    %3359 = vmatpush1.bf16.msra.mxu0 %v3349
    %3360 = vmatprep.subr.bf16.mxu0 %v3332
    %3361 = vmatpush1.bf16.msra.mxu0 %v3331
    %3362 = vmatprep.subr.bf16.mxu0 %v3330
    %3363 = vmatpush1.bf16.msra.mxu0 %v3329
    %3364 = vmatprep.subr.bf16.mxu0 %v3328
    %3365 = vmatpush1.bf16.msra.mxu0 %v3327
    %3366 = vmatprep.subr.bf16.mxu0 %v3326
    %3367 = vmatpush1.bf16.msra.mxu0 %v3325
    %3368 = vmatprep.subr.bf16.mxu0 %v3324
    %3369 = vmatpush1.bf16.msra.mxu0 %v3323
    %3370 = vmatprep.subr.bf16.mxu0 0
    %3371 = vmatpush2.bf16.msra.mxu0 0
    %3372 = vmatprep.subr.bf16.mxu0 0
    %3373 = vmatpush2.bf16.msra.mxu0 0
    %3374 = vmatprep.subr.bf16.mxu0 0
    %3375 = vmatpush2.bf16.msra.mxu0 0
    %3376 = vmatprep.subr.bf16.mxu0 0
    %3377 = vmatpush2.bf16.msra.mxu0 0
    %3378 = vmatprep.subr.bf16.mxu0 0
    %3379 = vmatpush2.bf16.msra.mxu0 0
    %3380 = vmatprep.subr.bf16.mxu0 0
    %3381 = vmatpush2.bf16.msra.mxu0 0
    %3382 = vmatprep.subr.bf16.mxu0 0
    %3383 = vmatpush2.bf16.msra.mxu0 0
    %3384 = vmatprep.subr.bf16.mxu0 0
    %3385 = vmatpush2.bf16.msra.mxu0 0
    %3386 = vmatprep.mubr.bf16.mxu0 0
    %3387 = vmatmul.mubr.bf16.gmra.mxu0 %v3346
    %v3388 = vpop.f32.mrf.mxu0
    %v3389 = vadd.f32 0.0, %v3388
    %v3390 = vpop.f32.mrf.mxu0
    %v3391 = vadd.f32 0.0, %v3390
    %v3392 = vpop.f32.mrf.mxu0
    %v3393 = vadd.f32 0.0, %v3392
    %v3394 = vpop.f32.mrf.mxu0
    %v3395 = vadd.f32 0.0, %v3394
    %3396 = vdwg.mxu0
    %v3397 = vadd.f32 %v3272, %v3389
    %v3398 = vadd.f32 %v3273, %v3391
    %v3399 = vadd.f32 %v3274, %v3393
    %v3400 = vadd.f32 %v3275, %v3395
    %v3401 = vld [vmem:[%s1255] sm:$0xff]
    %v3402 = vld [vmem:[%s1255 + $0x8] sm:$0xff]
    %v3403 = vld [vmem:[%s1255 + $0x10] sm:$0xff]
    %v3404 = vld [vmem:[%s1255 + $0x18] sm:$0xff]
    %v3405 = vld [vmem:[%s1255 + $0x20] sm:$0xff]
    %v3406 = vld [vmem:[%s1255 + $0x28] sm:$0xff]
    %v3407 = vld [vmem:[%s1255 + $0x30] sm:$0xff]
    %v3408 = vld [vmem:[%s1255 + $0x38] sm:$0xff]
    %v3409 = vld [vmem:[%s1255 + $0x40] sm:$0xff]
    %v3410 = vld [vmem:[%s1255 + $0x48] sm:$0xff]
    %v3411 = vld [vmem:[%s1255 + $0x50] sm:$0x33]
    %v3412 = vrot.slane %v2909, 2
    %v3424 = vunpack.c.l.b16 %v3401
    %v3425 = vunpack.c.h.b16 %v3401
    %v3426 = vunpack.c.l.b16 %v3402
    %v3427 = vunpack.c.h.b16 %v3402
    %v3428 = vunpack.c.l.b16 %v3403
    %v3429 = vunpack.c.h.b16 %v3403
    %v3430 = vunpack.c.l.b16 %v3404
    %v3431 = vunpack.c.h.b16 %v3404
    %v3432 = vunpack.c.l.b16 %v3405
    %v3433 = vunpack.c.h.b16 %v3405
    %v3434 = vunpack.c.l.b16 %v3406
    %v3435 = vunpack.c.h.b16 %v3406
    %v3436 = vunpack.c.l.b16 %v3407
    %v3437 = vunpack.c.h.b16 %v3407
    %v3438 = vunpack.c.l.b16 %v3408
    %v3439 = vunpack.c.h.b16 %v3408
    %v3440 = vunpack.c.l.b16 %v3409
    %v3441 = vunpack.c.h.b16 %v3409
    %v3442 = vunpack.c.l.b16 %v3410
    %v3443 = vunpack.c.h.b16 %v3410
    %v3444 = vunpack.c.l.b16 %v3411
    %v3445 = vunpack.c.h.b16 %v3411
    %v3446 = vpack.c.b16 %v3426, %v3424
    %v3447 = vpack.c.b16 %v3427, %v3425
    %v3448 = vpack.c.b16 %v3430, %v3428
    %v3449 = vpack.c.b16 %v3431, %v3429
    %v3450 = vpack.c.b16 %v3434, %v3432
    %v3451 = vpack.c.b16 %v3435, %v3433
    %v3452 = vpack.c.b16 %v3438, %v3436
    %v3453 = vpack.c.b16 %v3439, %v3437
    %v3454 = vpack.c.b16 %v3442, %v3440
    %v3455 = vpack.c.b16 %v3443, %v3441
    %v3456 = vpack.c.b16 %v3444, %v3444
    %v3457 = vpack.c.b16 %v3445, %v3445
    %v3469 = vsel %vm844, %v3412, 0
    %v3472 = vsel %vm848, %v3456, 0
    %v3475 = vsel %vm848, %v3457, 0
    %3477 = vmatprep.subr.bf16.mxu0 0
    %3478 = vmatpush1.bf16.msra.mxu0 0
    %3479 = vmatprep.subr.bf16.mxu0 0
    %3480 = vmatpush1.bf16.msra.mxu0 0
    %3481 = vmatprep.subr.bf16.mxu0 %v3475
    %3482 = vmatpush1.bf16.msra.mxu0 %v3472
    %3483 = vmatprep.subr.bf16.mxu0 %v3455
    %3484 = vmatpush1.bf16.msra.mxu0 %v3454
    %3485 = vmatprep.subr.bf16.mxu0 %v3453
    %3486 = vmatpush1.bf16.msra.mxu0 %v3452
    %3487 = vmatprep.subr.bf16.mxu0 %v3451
    %3488 = vmatpush1.bf16.msra.mxu0 %v3450
    %3489 = vmatprep.subr.bf16.mxu0 %v3449
    %3490 = vmatpush1.bf16.msra.mxu0 %v3448
    %3491 = vmatprep.subr.bf16.mxu0 %v3447
    %3492 = vmatpush1.bf16.msra.mxu0 %v3446
    %3493 = vmatprep.subr.bf16.mxu0 0
    %3494 = vmatpush2.bf16.msra.mxu0 0
    %3495 = vmatprep.subr.bf16.mxu0 0
    %3496 = vmatpush2.bf16.msra.mxu0 0
    %3497 = vmatprep.subr.bf16.mxu0 0
    %3498 = vmatpush2.bf16.msra.mxu0 0
    %3499 = vmatprep.subr.bf16.mxu0 0
    %3500 = vmatpush2.bf16.msra.mxu0 0
    %3501 = vmatprep.subr.bf16.mxu0 0
    %3502 = vmatpush2.bf16.msra.mxu0 0
    %3503 = vmatprep.subr.bf16.mxu0 0
    %3504 = vmatpush2.bf16.msra.mxu0 0
    %3505 = vmatprep.subr.bf16.mxu0 0
    %3506 = vmatpush2.bf16.msra.mxu0 0
    %3507 = vmatprep.subr.bf16.mxu0 0
    %3508 = vmatpush2.bf16.msra.mxu0 0
    %3509 = vmatprep.mubr.bf16.mxu0 0
    %3510 = vmatmul.mubr.bf16.gmra.mxu0 %v3469
    %v3511 = vpop.f32.mrf.mxu0
    %v3512 = vadd.f32 0.0, %v3511
    %v3513 = vpop.f32.mrf.mxu0
    %v3514 = vadd.f32 0.0, %v3513
    %v3515 = vpop.f32.mrf.mxu0
    %v3516 = vadd.f32 0.0, %v3515
    %v3517 = vpop.f32.mrf.mxu0
    %v3518 = vadd.f32 0.0, %v3517
    %3519 = vdwg.mxu0
    %v3520 = vadd.f32 %v3397, %v3512
    %v3521 = vadd.f32 %v3398, %v3514
    %v3522 = vadd.f32 %v3399, %v3516
    %v3523 = vadd.f32 %v3400, %v3518
    %v3524 = vld [vmem:[%s6] sm:$0x3]
    %v3526 = vlaneseq
    %v3527 = vshrl.u32 %v3526, 7
    %v3528 = vsub.s32 0, %v3527
    %v3529 = vrot.slane %v3524, %v3528
    %v3530 = vlaneseq
    %v3531 = vshrl.u32 %v3530, 7
    %v3532 = vsub.s32 1, %v3531
    %v3533 = vrot.slane %v3524, %v3532
    %v3536 = vadd.f32 %v3520, %v3529
    %v3537 = vadd.f32 %v3521, %v3533
    %v3538 = vadd.f32 %v3522, %v3529
    %v3539 = vadd.f32 %v3523, %v3533
    %v3540 = vmax.f32 %v3536, 0.0
    %v3541 = vmax.f32 %v3537, 0.0
    %v3542 = vmax.f32 %v3538, 0.0
    %v3543 = vmax.f32 %v3539, 0.0
    %v3544 = vld [vmem:[%s7] sm:$0x1f]
    %v3545 = vld [vmem:[%s8] sm:$0xff]
    %v3546 = vld [vmem:[%s8 + $0x8] sm:$0xff]
    %v3547 = vld [vmem:[%s8 + $0x10] sm:$0xff]
    %v3548 = vld [vmem:[%s8 + $0x18] sm:$0xff]
    %v3549 = vld [vmem:[%s8 + $0x20] sm:$0xff]
    %v3550 = vld [vmem:[%s8 + $0x28] sm:$0xff]
    %v3551 = vld [vmem:[%s8 + $0x30] sm:$0xff]
    %v3552 = vld [vmem:[%s8 + $0x38] sm:$0xff]
    %v3553 = vld [vmem:[%s8 + $0x40] sm:$0xff]
    %v3554 = vld [vmem:[%s8 + $0x48] sm:$0xff]
    %v3555 = vld [vmem:[%s8 + $0x50] sm:$0xff]
    %v3556 = vld [vmem:[%s8 + $0x58] sm:$0xff]
    %v3557 = vld [vmem:[%s8 + $0x60] sm:$0xff]
    %v3558 = vld [vmem:[%s8 + $0x68] sm:$0xff]
    %v3559 = vld [vmem:[%s8 + $0x70] sm:$0xff]
    %v3560 = vld [vmem:[%s8 + $0x78] sm:$0xff]
    %v3561 = vld [vmem:[%s8 + $0x80] sm:$0xff]
    %v3562 = vld [vmem:[%s8 + $0x88] sm:$0xff]
    %v3563 = vld [vmem:[%s8 + $0x90] sm:$0xff]
    %v3564 = vld [vmem:[%s8 + $0x98] sm:$0xff]
    %v3566 = vsel %vm103, %v3541, 0
    %v3569 = vsel %vm103, %v3543, 0
    %3571 = vmatprep.subr.mxu0 0.0
    %3572 = vmatpush1.msra.mxu0 %v3560
    %3573 = vmatprep.subr.mxu0 0.0
    %3574 = vmatpush1.msra.mxu0 %v3559
    %3575 = vmatprep.subr.mxu0 0.0
    %3576 = vmatpush1.msra.mxu0 %v3558
    %3577 = vmatprep.subr.mxu0 0.0
    %3578 = vmatpush1.msra.mxu0 %v3557
    %3579 = vmatprep.subr.mxu0 0.0
    %3580 = vmatpush1.msra.mxu0 %v3556
    %3581 = vmatprep.subr.mxu0 0.0
    %3582 = vmatpush1.msra.mxu0 %v3555
    %3583 = vmatprep.subr.mxu0 0.0
    %3584 = vmatpush1.msra.mxu0 %v3554
    %3585 = vmatprep.subr.mxu0 0.0
    %3586 = vmatpush1.msra.mxu0 %v3553
    %3587 = vmatprep.subr.mxu0 0.0
    %3588 = vmatpush1.msra.mxu0 %v3552
    %3589 = vmatprep.subr.mxu0 0.0
    %3590 = vmatpush1.msra.mxu0 %v3551
    %3591 = vmatprep.subr.mxu0 0.0
    %3592 = vmatpush1.msra.mxu0 %v3550
    %3593 = vmatprep.subr.mxu0 0.0
    %3594 = vmatpush1.msra.mxu0 %v3549
    %3595 = vmatprep.subr.mxu0 0.0
    %3596 = vmatpush1.msra.mxu0 %v3548
    %3597 = vmatprep.subr.mxu0 0.0
    %3598 = vmatpush1.msra.mxu0 %v3547
    %3599 = vmatprep.subr.mxu0 0.0
    %3600 = vmatpush1.msra.mxu0 %v3546
    %3601 = vmatprep.subr.mxu0 0.0
    %3602 = vmatpush1.msra.mxu0 %v3545
    %3603 = vmatprep.subr.mxu0 0.0
    %3604 = vmatpush2.msra.mxu0 0.0
    %3605 = vmatprep.subr.mxu0 0.0
    %3606 = vmatpush2.msra.mxu0 0.0
    %3607 = vmatprep.subr.mxu0 0.0
    %3608 = vmatpush2.msra.mxu0 0.0
    %3609 = vmatprep.subr.mxu0 0.0
    %3610 = vmatpush2.msra.mxu0 0.0
    %3611 = vmatprep.subr.mxu0 0.0
    %3612 = vmatpush2.msra.mxu0 0.0
    %3613 = vmatprep.subr.mxu0 0.0
    %3614 = vmatpush2.msra.mxu0 0.0
    %3615 = vmatprep.subr.mxu0 0.0
    %3616 = vmatpush2.msra.mxu0 0.0
    %3617 = vmatprep.subr.mxu0 0.0
    %3618 = vmatpush2.msra.mxu0 0.0
    %3619 = vmatprep.subr.mxu0 0.0
    %3620 = vmatpush2.msra.mxu0 0.0
    %3621 = vmatprep.subr.mxu0 0.0
    %3622 = vmatpush2.msra.mxu0 0.0
    %3623 = vmatprep.subr.mxu0 0.0
    %3624 = vmatpush2.msra.mxu0 0.0
    %3625 = vmatprep.subr.mxu0 0.0
    %3626 = vmatpush2.msra.mxu0 0.0
    %3627 = vmatprep.subr.mxu0 0.0
    %3628 = vmatpush2.msra.mxu0 %v3564
    %3629 = vmatprep.subr.mxu0 0.0
    %3630 = vmatpush2.msra.mxu0 %v3563
    %3631 = vmatprep.subr.mxu0 0.0
    %3632 = vmatpush2.msra.mxu0 %v3562
    %3633 = vmatprep.subr.mxu0 0.0
    %3634 = vmatpush2.msra.mxu0 %v3561
    %3635 = vmatprep.mubr.f32.mxu0 %v3566
    %3636 = vmatmul.mubr.f32.gmra.mxu0 %v3540
    %v3637 = vpop.f32.mrf.mxu0
    %v3638 = vadd.f32 0.0, %v3637
    %v3639 = vpop.f32.mrf.mxu0
    %3640 = vmatprep.mubr.f32.mxu0 %v3569
    %3641 = vmatmul.mubr.f32.gmra.mxu0 %v3542
    %v3642 = vpop.f32.mrf.mxu0
    %v3643 = vadd.f32 0.0, %v3642
    %v3644 = vpop.f32.mrf.mxu0
    %3645 = vdwg.mxu0
    %v3647 = vsel %vm1501, %v3544, 0
    %v3650 = vsel %vm848, %v3643, 0
    %3652 = vmatprep.subr.mxu0 0.0
    %3653 = vmatpush1.msra.mxu0 0.0
    %3654 = vmatprep.subr.mxu0 0.0
    %3655 = vmatpush1.msra.mxu0 0.0
    %3656 = vmatprep.subr.mxu0 0.0
    %3657 = vmatpush1.msra.mxu0 0.0
    %3658 = vmatprep.subr.mxu0 0.0
    %3659 = vmatpush1.msra.mxu0 0.0
    %3660 = vmatprep.subr.mxu0 0.0
    %3661 = vmatpush1.msra.mxu0 0.0
    %3662 = vmatprep.subr.mxu0 0.0
    %3663 = vmatpush1.msra.mxu0 0.0
    %3664 = vmatprep.subr.mxu0 0.0
    %3665 = vmatpush1.msra.mxu0 0.0
    %3666 = vmatprep.subr.mxu0 0.0
    %3667 = vmatpush1.msra.mxu0 0.0
    %3668 = vmatprep.subr.mxu0 0.0
    %3669 = vmatpush1.msra.mxu0 0.0
    %3670 = vmatprep.subr.mxu0 0.0
    %3671 = vmatpush1.msra.mxu0 0.0
    %3672 = vmatprep.subr.mxu0 0.0
    %3673 = vmatpush1.msra.mxu0 0.0
    %3674 = vmatprep.subr.mxu0 0.0
    %3675 = vmatpush1.msra.mxu0 0.0
    %3676 = vmatprep.subr.mxu0 0.0
    %3677 = vmatpush1.msra.mxu0 0.0
    %3678 = vmatprep.subr.mxu0 0.0
    %3679 = vmatpush1.msra.mxu0 0.0
    %3680 = vmatprep.subr.mxu0 0.0
    %3681 = vmatpush1.msra.mxu0 %v3650
    %3682 = vmatprep.subr.mxu0 0.0
    %3683 = vmatpush1.msra.mxu0 %v3638
    %3684 = vmatprep.subr.mxu0 0.0
    %3685 = vmatpush2.msra.mxu0 0.0
    %3686 = vmatprep.subr.mxu0 0.0
    %3687 = vmatpush2.msra.mxu0 0.0
    %3688 = vmatprep.subr.mxu0 0.0
    %3689 = vmatpush2.msra.mxu0 0.0
    %3690 = vmatprep.subr.mxu0 0.0
    %3691 = vmatpush2.msra.mxu0 0.0
    %3692 = vmatprep.subr.mxu0 0.0
    %3693 = vmatpush2.msra.mxu0 0.0
    %3694 = vmatprep.subr.mxu0 0.0
    %3695 = vmatpush2.msra.mxu0 0.0
    %3696 = vmatprep.subr.mxu0 0.0
    %3697 = vmatpush2.msra.mxu0 0.0
    %3698 = vmatprep.subr.mxu0 0.0
    %3699 = vmatpush2.msra.mxu0 0.0
    %3700 = vmatprep.subr.mxu0 0.0
    %3701 = vmatpush2.msra.mxu0 0.0
    %3702 = vmatprep.subr.mxu0 0.0
    %3703 = vmatpush2.msra.mxu0 0.0
    %3704 = vmatprep.subr.mxu0 0.0
    %3705 = vmatpush2.msra.mxu0 0.0
    %3706 = vmatprep.subr.mxu0 0.0
    %3707 = vmatpush2.msra.mxu0 0.0
    %3708 = vmatprep.subr.mxu0 0.0
    %3709 = vmatpush2.msra.mxu0 0.0
    %3710 = vmatprep.subr.mxu0 0.0
    %3711 = vmatpush2.msra.mxu0 0.0
    %3712 = vmatprep.subr.mxu0 0.0
    %3713 = vmatpush2.msra.mxu0 0.0
    %3714 = vmatprep.subr.mxu0 0.0
    %3715 = vmatpush2.msra.mxu0 0.0
    %3716 = vmatprep.mubr.f32.mxu0 0.0
    %3717 = vmatmul.mubr.f32.gmra.mxu0 %v3647
    %v3718 = vpop.f32.mrf.mxu0
    %v3719 = vadd.f32 0.0, %v3718
    %v3720 = vpop.f32.mrf.mxu0
    %3721 = vdwg.mxu0
    %v3722 = vpack.c.bf16 %v3719, %v3719
    %v3723 = vld [vmem:[%s9] sm:$0xf]
    %v3724 = vld [vmem:[%s9 + $0x4] sm:$0xf]
    %v3725 = vld [vmem:[%s9 + $0x8] sm:$0xf]
    %v3726 = vld [vmem:[%s9 + $0xc] sm:$0xf]
    %v3727 = vld [vmem:[%s9 + $0x10] sm:$0xf]
    %v3728 = vld [vmem:[%s9 + $0x14] sm:$0xf]
    %v3729 = vld [vmem:[%s9 + $0x18] sm:$0xf]
    %v3730 = vld [vmem:[%s9 + $0x1c] sm:$0xf]
    %v3731 = vld [vmem:[%s9 + $0x20] sm:$0xf]
    %v3732 = vld [vmem:[%s9 + $0x24] sm:$0xf]
    %v3733 = vld [vmem:[%s1589] sm:$0xf]
    %v3734 = vld [vmem:[%s1589 + $0x4] sm:$0xf]
    %v3735 = vld [vmem:[%s1589 + $0x8] sm:$0xf]
    %v3736 = vld [vmem:[%s1589 + $0xc] sm:$0xf]
    %v3737 = vld [vmem:[%s1589 + $0x10] sm:$0xf]
    %v3738 = vld [vmem:[%s1589 + $0x14] sm:$0xf]
    %v3739 = vld [vmem:[%s1589 + $0x18] sm:$0xf]
    %v3740 = vld [vmem:[%s1589 + $0x1c] sm:$0xf]
    %v3741 = vld [vmem:[%s1589 + $0x20] sm:$0xf]
    %v3742 = vld [vmem:[%s1589 + $0x24] sm:$0xf]
    %v3744 = vshrl.u32 %v3722, 16
    %v3756 = vunpack.c.l.b16 %v3733
    %v3757 = vunpack.c.l.b16 %v3734
    %v3758 = vunpack.c.l.b16 %v3735
    %v3759 = vunpack.c.l.b16 %v3736
    %v3760 = vunpack.c.l.b16 %v3737
    %v3761 = vunpack.c.l.b16 %v3738
    %v3762 = vunpack.c.l.b16 %v3739
    %v3763 = vunpack.c.l.b16 %v3740
    %v3764 = vunpack.c.l.b16 %v3741
    %v3765 = vunpack.c.l.b16 %v3742
    %v3766 = vpack.c.b16 %v3757, %v3756
    %v3767 = vpack.c.b16 %v3759, %v3758
    %v3768 = vpack.c.b16 %v3761, %v3760
    %v3769 = vpack.c.b16 %v3763, %v3762
    %v3770 = vpack.c.b16 %v3765, %v3764
    %v3777 = vsel %vm1633, %v3744, 0
    %3779 = vmatprep.subr.bf16.mxu0 0
    %3780 = vmatpush1.bf16.msra.mxu0 0
    %3781 = vmatprep.subr.bf16.mxu0 0
    %3782 = vmatpush1.bf16.msra.mxu0 0
    %3783 = vmatprep.subr.bf16.mxu0 0
    %3784 = vmatpush1.bf16.msra.mxu0 0
    %3785 = vmatprep.subr.bf16.mxu0 0
    %3786 = vmatpush1.bf16.msra.mxu0 %v3770
    %3787 = vmatprep.subr.bf16.mxu0 0
    %3788 = vmatpush1.bf16.msra.mxu0 %v3769
    %3789 = vmatprep.subr.bf16.mxu0 0
    %3790 = vmatpush1.bf16.msra.mxu0 %v3768
    %3791 = vmatprep.subr.bf16.mxu0 0
    %3792 = vmatpush1.bf16.msra.mxu0 %v3767
    %3793 = vmatprep.subr.bf16.mxu0 0
    %3794 = vmatpush1.bf16.msra.mxu0 %v3766
    %3795 = vmatprep.subr.bf16.mxu0 0
    %3796 = vmatpush2.bf16.msra.mxu0 0
    %3797 = vmatprep.subr.bf16.mxu0 0
    %3798 = vmatpush2.bf16.msra.mxu0 0
    %3799 = vmatprep.subr.bf16.mxu0 0
    %3800 = vmatpush2.bf16.msra.mxu0 0
    %3801 = vmatprep.subr.bf16.mxu0 0
    %3802 = vmatpush2.bf16.msra.mxu0 0
    %3803 = vmatprep.subr.bf16.mxu0 0
    %3804 = vmatpush2.bf16.msra.mxu0 0
    %3805 = vmatprep.subr.bf16.mxu0 0
    %3806 = vmatpush2.bf16.msra.mxu0 0
    %3807 = vmatprep.subr.bf16.mxu0 0
    %3808 = vmatpush2.bf16.msra.mxu0 0
    %3809 = vmatprep.subr.bf16.mxu0 0
    %3810 = vmatpush2.bf16.msra.mxu0 0
    %3811 = vmatprep.mubr.bf16.mxu0 0
    %3812 = vmatmul.mubr.bf16.gmra.mxu0 %v3777
    %v3813 = vpop.f32.mrf.mxu0
    %v3814 = vadd.f32 0.0, %v3813
    %v3815 = vpop.f32.mrf.mxu0
    %v3816 = vpop.f32.mrf.mxu0
    %v3817 = vpop.f32.mrf.mxu0
    %3818 = vdwg.mxu0
    %v3829 = vunpack.c.l.b16 %v3723
    %v3830 = vunpack.c.l.b16 %v3724
    %v3831 = vunpack.c.l.b16 %v3725
    %v3832 = vunpack.c.l.b16 %v3726
    %v3833 = vunpack.c.l.b16 %v3727
    %v3834 = vunpack.c.l.b16 %v3728
    %v3835 = vunpack.c.l.b16 %v3729
    %v3836 = vunpack.c.l.b16 %v3730
    %v3837 = vunpack.c.l.b16 %v3731
    %v3838 = vunpack.c.l.b16 %v3732
    %v3839 = vpack.c.b16 %v3830, %v3829
    %v3840 = vpack.c.b16 %v3832, %v3831
    %v3841 = vpack.c.b16 %v3834, %v3833
    %v3842 = vpack.c.b16 %v3836, %v3835
    %v3843 = vpack.c.b16 %v3838, %v3837
    %v3849 = vsel %vm1633, %v3722, 0
    %3851 = vmatprep.subr.bf16.mxu0 0
    %3852 = vmatpush1.bf16.msra.mxu0 0
    %3853 = vmatprep.subr.bf16.mxu0 0
    %3854 = vmatpush1.bf16.msra.mxu0 0
    %3855 = vmatprep.subr.bf16.mxu0 0
    %3856 = vmatpush1.bf16.msra.mxu0 0
    %3857 = vmatprep.subr.bf16.mxu0 0
    %3858 = vmatpush1.bf16.msra.mxu0 %v3843
    %3859 = vmatprep.subr.bf16.mxu0 0
    %3860 = vmatpush1.bf16.msra.mxu0 %v3842
    %3861 = vmatprep.subr.bf16.mxu0 0
    %3862 = vmatpush1.bf16.msra.mxu0 %v3841
    %3863 = vmatprep.subr.bf16.mxu0 0
    %3864 = vmatpush1.bf16.msra.mxu0 %v3840
    %3865 = vmatprep.subr.bf16.mxu0 0
    %3866 = vmatpush1.bf16.msra.mxu0 %v3839
    %3867 = vmatprep.subr.bf16.mxu0 0
    %3868 = vmatpush2.bf16.msra.mxu0 0
    %3869 = vmatprep.subr.bf16.mxu0 0
    %3870 = vmatpush2.bf16.msra.mxu0 0
    %3871 = vmatprep.subr.bf16.mxu0 0
    %3872 = vmatpush2.bf16.msra.mxu0 0
    %3873 = vmatprep.subr.bf16.mxu0 0
    %3874 = vmatpush2.bf16.msra.mxu0 0
    %3875 = vmatprep.subr.bf16.mxu0 0
    %3876 = vmatpush2.bf16.msra.mxu0 0
    %3877 = vmatprep.subr.bf16.mxu0 0
    %3878 = vmatpush2.bf16.msra.mxu0 0
    %3879 = vmatprep.subr.bf16.mxu0 0
    %3880 = vmatpush2.bf16.msra.mxu0 0
    %3881 = vmatprep.subr.bf16.mxu0 0
    %3882 = vmatpush2.bf16.msra.mxu0 0
    %3883 = vmatprep.mubr.bf16.mxu0 0
    %3884 = vmatmul.mubr.bf16.gmra.mxu0 %v3849
    %v3885 = vpop.f32.mrf.mxu0
    %v3886 = vadd.f32 %v3814, %v3885
    %v3887 = vpop.f32.mrf.mxu0
    %v3888 = vpop.f32.mrf.mxu0
    %v3889 = vpop.f32.mrf.mxu0
    %3890 = vdwg.mxu0
    %v3891 = vld [vmem:[%s1749] sm:$0xf]
    %v3892 = vld [vmem:[%s1749 + $0x4] sm:$0xf]
    %v3893 = vld [vmem:[%s1749 + $0x8] sm:$0xf]
    %v3894 = vld [vmem:[%s1749 + $0xc] sm:$0xf]
    %v3895 = vld [vmem:[%s1749 + $0x10] sm:$0xf]
    %v3896 = vld [vmem:[%s1749 + $0x14] sm:$0xf]
    %v3897 = vld [vmem:[%s1749 + $0x18] sm:$0xf]
    %v3898 = vld [vmem:[%s1749 + $0x1c] sm:$0xf]
    %v3899 = vld [vmem:[%s1749 + $0x20] sm:$0xf]
    %v3900 = vld [vmem:[%s1749 + $0x24] sm:$0xf]
    %v3902 = vrot.slane %v3722, 1
    %v3913 = vunpack.c.l.b16 %v3891
    %v3914 = vunpack.c.l.b16 %v3892
    %v3915 = vunpack.c.l.b16 %v3893
    %v3916 = vunpack.c.l.b16 %v3894
    %v3917 = vunpack.c.l.b16 %v3895
    %v3918 = vunpack.c.l.b16 %v3896
    %v3919 = vunpack.c.l.b16 %v3897
    %v3920 = vunpack.c.l.b16 %v3898
    %v3921 = vunpack.c.l.b16 %v3899
    %v3922 = vunpack.c.l.b16 %v3900
    %v3923 = vpack.c.b16 %v3914, %v3913
    %v3924 = vpack.c.b16 %v3916, %v3915
    %v3925 = vpack.c.b16 %v3918, %v3917
    %v3926 = vpack.c.b16 %v3920, %v3919
    %v3927 = vpack.c.b16 %v3922, %v3921
    %v3934 = vsel %vm1633, %v3902, 0
    %3936 = vmatprep.subr.bf16.mxu0 0
    %3937 = vmatpush1.bf16.msra.mxu0 0
    %3938 = vmatprep.subr.bf16.mxu0 0
    %3939 = vmatpush1.bf16.msra.mxu0 0
    %3940 = vmatprep.subr.bf16.mxu0 0
    %3941 = vmatpush1.bf16.msra.mxu0 0
    %3942 = vmatprep.subr.bf16.mxu0 0
    %3943 = vmatpush1.bf16.msra.mxu0 %v3927
    %3944 = vmatprep.subr.bf16.mxu0 0
    %3945 = vmatpush1.bf16.msra.mxu0 %v3926
    %3946 = vmatprep.subr.bf16.mxu0 0
    %3947 = vmatpush1.bf16.msra.mxu0 %v3925
    %3948 = vmatprep.subr.bf16.mxu0 0
    %3949 = vmatpush1.bf16.msra.mxu0 %v3924
    %3950 = vmatprep.subr.bf16.mxu0 0
    %3951 = vmatpush1.bf16.msra.mxu0 %v3923
    %3952 = vmatprep.subr.bf16.mxu0 0
    %3953 = vmatpush2.bf16.msra.mxu0 0
    %3954 = vmatprep.subr.bf16.mxu0 0
    %3955 = vmatpush2.bf16.msra.mxu0 0
    %3956 = vmatprep.subr.bf16.mxu0 0
    %3957 = vmatpush2.bf16.msra.mxu0 0
    %3958 = vmatprep.subr.bf16.mxu0 0
    %3959 = vmatpush2.bf16.msra.mxu0 0
    %3960 = vmatprep.subr.bf16.mxu0 0
    %3961 = vmatpush2.bf16.msra.mxu0 0
    %3962 = vmatprep.subr.bf16.mxu0 0
    %3963 = vmatpush2.bf16.msra.mxu0 0
    %3964 = vmatprep.subr.bf16.mxu0 0
    %3965 = vmatpush2.bf16.msra.mxu0 0
    %3966 = vmatprep.subr.bf16.mxu0 0
    %3967 = vmatpush2.bf16.msra.mxu0 0
    %3968 = vmatprep.mubr.bf16.mxu0 0
    %3969 = vmatmul.mubr.bf16.gmra.mxu0 %v3934
    %v3970 = vpop.f32.mrf.mxu0
    %v3971 = vadd.f32 0.0, %v3970
    %v3972 = vpop.f32.mrf.mxu0
    %v3973 = vpop.f32.mrf.mxu0
    %v3974 = vpop.f32.mrf.mxu0
    %3975 = vdwg.mxu0
    %v3976 = vadd.f32 %v3886, %v3971
    %v3977 = vld [vmem:[%s1836] sm:$0xf]
    %v3978 = vld [vmem:[%s1836 + $0x4] sm:$0xf]
    %v3979 = vld [vmem:[%s1836 + $0x8] sm:$0xf]
    %v3980 = vld [vmem:[%s1836 + $0xc] sm:$0xf]
    %v3981 = vld [vmem:[%s1836 + $0x10] sm:$0xf]
    %v3982 = vld [vmem:[%s1836 + $0x14] sm:$0xf]
    %v3983 = vld [vmem:[%s1836 + $0x18] sm:$0xf]
    %v3984 = vld [vmem:[%s1836 + $0x1c] sm:$0xf]
    %v3985 = vld [vmem:[%s1836 + $0x20] sm:$0xf]
    %v3986 = vld [vmem:[%s1836 + $0x24] sm:$0xf]
    %v3987 = vrot.slane %v3744, 1
    %v3998 = vunpack.c.l.b16 %v3977
    %v3999 = vunpack.c.l.b16 %v3978
    %v4000 = vunpack.c.l.b16 %v3979
    %v4001 = vunpack.c.l.b16 %v3980
    %v4002 = vunpack.c.l.b16 %v3981
    %v4003 = vunpack.c.l.b16 %v3982
    %v4004 = vunpack.c.l.b16 %v3983
    %v4005 = vunpack.c.l.b16 %v3984
    %v4006 = vunpack.c.l.b16 %v3985
    %v4007 = vunpack.c.l.b16 %v3986
    %v4008 = vpack.c.b16 %v3999, %v3998
    %v4009 = vpack.c.b16 %v4001, %v4000
    %v4010 = vpack.c.b16 %v4003, %v4002
    %v4011 = vpack.c.b16 %v4005, %v4004
    %v4012 = vpack.c.b16 %v4007, %v4006
    %v4019 = vsel %vm1633, %v3987, 0
    %4021 = vmatprep.subr.bf16.mxu0 0
    %4022 = vmatpush1.bf16.msra.mxu0 0
    %4023 = vmatprep.subr.bf16.mxu0 0
    %4024 = vmatpush1.bf16.msra.mxu0 0
    %4025 = vmatprep.subr.bf16.mxu0 0
    %4026 = vmatpush1.bf16.msra.mxu0 0
    %4027 = vmatprep.subr.bf16.mxu0 0
    %4028 = vmatpush1.bf16.msra.mxu0 %v4012
    %4029 = vmatprep.subr.bf16.mxu0 0
    %4030 = vmatpush1.bf16.msra.mxu0 %v4011
    %4031 = vmatprep.subr.bf16.mxu0 0
    %4032 = vmatpush1.bf16.msra.mxu0 %v4010
    %4033 = vmatprep.subr.bf16.mxu0 0
    %4034 = vmatpush1.bf16.msra.mxu0 %v4009
    %4035 = vmatprep.subr.bf16.mxu0 0
    %4036 = vmatpush1.bf16.msra.mxu0 %v4008
    %4037 = vmatprep.subr.bf16.mxu0 0
    %4038 = vmatpush2.bf16.msra.mxu0 0
    %4039 = vmatprep.subr.bf16.mxu0 0
    %4040 = vmatpush2.bf16.msra.mxu0 0
    %4041 = vmatprep.subr.bf16.mxu0 0
    %4042 = vmatpush2.bf16.msra.mxu0 0
    %4043 = vmatprep.subr.bf16.mxu0 0
    %4044 = vmatpush2.bf16.msra.mxu0 0
    %4045 = vmatprep.subr.bf16.mxu0 0
    %4046 = vmatpush2.bf16.msra.mxu0 0
    %4047 = vmatprep.subr.bf16.mxu0 0
    %4048 = vmatpush2.bf16.msra.mxu0 0
    %4049 = vmatprep.subr.bf16.mxu0 0
    %4050 = vmatpush2.bf16.msra.mxu0 0
    %4051 = vmatprep.subr.bf16.mxu0 0
    %4052 = vmatpush2.bf16.msra.mxu0 0
    %4053 = vmatprep.mubr.bf16.mxu0 0
    %4054 = vmatmul.mubr.bf16.gmra.mxu0 %v4019
    %v4055 = vpop.f32.mrf.mxu0
    %v4056 = vadd.f32 0.0, %v4055
    %v4057 = vpop.f32.mrf.mxu0
    %v4058 = vpop.f32.mrf.mxu0
    %v4059 = vpop.f32.mrf.mxu0
    %4060 = vdwg.mxu0
    %v4061 = vadd.f32 %v3976, %v4056
    %v4062 = vld [vmem:[%s1922] sm:$0xf]
    %v4063 = vld [vmem:[%s1922 + $0x4] sm:$0xf]
    %v4064 = vld [vmem:[%s1922 + $0x8] sm:$0xf]
    %v4065 = vld [vmem:[%s1922 + $0xc] sm:$0xf]
    %v4066 = vld [vmem:[%s1922 + $0x10] sm:$0xf]
    %v4067 = vld [vmem:[%s1922 + $0x14] sm:$0xf]
    %v4068 = vld [vmem:[%s1922 + $0x18] sm:$0xf]
    %v4069 = vld [vmem:[%s1922 + $0x1c] sm:$0xf]
    %v4070 = vld [vmem:[%s1922 + $0x20] sm:$0xf]
    %v4071 = vld [vmem:[%s1922 + $0x24] sm:$0xf]
    %v4072 = vrot.slane %v3722, 2
    %v4083 = vunpack.c.l.b16 %v4062
    %v4084 = vunpack.c.l.b16 %v4063
    %v4085 = vunpack.c.l.b16 %v4064
    %v4086 = vunpack.c.l.b16 %v4065
    %v4087 = vunpack.c.l.b16 %v4066
    %v4088 = vunpack.c.l.b16 %v4067
    %v4089 = vunpack.c.l.b16 %v4068
    %v4090 = vunpack.c.l.b16 %v4069
    %v4091 = vunpack.c.l.b16 %v4070
    %v4092 = vunpack.c.l.b16 %v4071
    %v4093 = vpack.c.b16 %v4084, %v4083
    %v4094 = vpack.c.b16 %v4086, %v4085
    %v4095 = vpack.c.b16 %v4088, %v4087
    %v4096 = vpack.c.b16 %v4090, %v4089
    %v4097 = vpack.c.b16 %v4092, %v4091
    %v4104 = vsel %vm1633, %v4072, 0
    %4106 = vmatprep.subr.bf16.mxu0 0
    %4107 = vmatpush1.bf16.msra.mxu0 0
    %4108 = vmatprep.subr.bf16.mxu0 0
    %4109 = vmatpush1.bf16.msra.mxu0 0
    %4110 = vmatprep.subr.bf16.mxu0 0
    %4111 = vmatpush1.bf16.msra.mxu0 0
    %4112 = vmatprep.subr.bf16.mxu0 0
    %4113 = vmatpush1.bf16.msra.mxu0 %v4097
    %4114 = vmatprep.subr.bf16.mxu0 0
    %4115 = vmatpush1.bf16.msra.mxu0 %v4096
    %4116 = vmatprep.subr.bf16.mxu0 0
    %4117 = vmatpush1.bf16.msra.mxu0 %v4095
    %4118 = vmatprep.subr.bf16.mxu0 0
    %4119 = vmatpush1.bf16.msra.mxu0 %v4094
    %4120 = vmatprep.subr.bf16.mxu0 0
    %4121 = vmatpush1.bf16.msra.mxu0 %v4093
    %4122 = vmatprep.subr.bf16.mxu0 0
    %4123 = vmatpush2.bf16.msra.mxu0 0
    %4124 = vmatprep.subr.bf16.mxu0 0
    %4125 = vmatpush2.bf16.msra.mxu0 0
    %4126 = vmatprep.subr.bf16.mxu0 0
    %4127 = vmatpush2.bf16.msra.mxu0 0
    %4128 = vmatprep.subr.bf16.mxu0 0
    %4129 = vmatpush2.bf16.msra.mxu0 0
    %4130 = vmatprep.subr.bf16.mxu0 0
    %4131 = vmatpush2.bf16.msra.mxu0 0
    %4132 = vmatprep.subr.bf16.mxu0 0
    %4133 = vmatpush2.bf16.msra.mxu0 0
    %4134 = vmatprep.subr.bf16.mxu0 0
    %4135 = vmatpush2.bf16.msra.mxu0 0
    %4136 = vmatprep.subr.bf16.mxu0 0
    %4137 = vmatpush2.bf16.msra.mxu0 0
    %4138 = vmatprep.mubr.bf16.mxu0 0
    %4139 = vmatmul.mubr.bf16.gmra.mxu0 %v4104
    %v4140 = vpop.f32.mrf.mxu0
    %v4141 = vadd.f32 0.0, %v4140
    %v4142 = vpop.f32.mrf.mxu0
    %v4143 = vpop.f32.mrf.mxu0
    %v4144 = vpop.f32.mrf.mxu0
    %4145 = vdwg.mxu0
    %v4146 = vadd.f32 %v4061, %v4141
    %v4147 = vld [vmem:[%s10] sm:$0x1]
    %v4148 = vadd.f32 %v4146, %v4147
    %v4149 = vmax.f32 %v4148, 0.0
    %v4150 = vpack.c.bf16 %v4149, %v4149
    %v4151 = vld [vmem:[%s11] sm:$0xf]
    %v4152 = vld [vmem:[%s11 + $0x4] sm:$0xf]
    %v4153 = vld [vmem:[%s11 + $0x8] sm:$0xf]
    %v4154 = vld [vmem:[%s11 + $0xc] sm:$0xf]
    %v4155 = vld [vmem:[%s11 + $0x10] sm:$0xf]
    %v4156 = vld [vmem:[%s11 + $0x14] sm:$0xf]
    %v4157 = vld [vmem:[%s11 + $0x18] sm:$0xf]
    %v4158 = vld [vmem:[%s11 + $0x1c] sm:$0xf]
    %v4159 = vld [vmem:[%s11 + $0x20] sm:$0xf]
    %v4160 = vld [vmem:[%s11 + $0x24] sm:$0xf]
    %v4161 = vld [vmem:[%s11 + $0x28] sm:$0xf]
    %v4162 = vld [vmem:[%s11 + $0x2c] sm:$0xf]
    %v4163 = vld [vmem:[%s11 + $0x30] sm:$0xf]
    %v4164 = vld [vmem:[%s11 + $0x34] sm:$0xf]
    %v4165 = vld [vmem:[%s11 + $0x38] sm:$0xf]
    %v4166 = vld [vmem:[%s12] sm:$0x1]
    %v4182 = vunpack.c.l.b16 %v4151
    %v4183 = vunpack.c.l.b16 %v4152
    %v4184 = vunpack.c.l.b16 %v4153
    %v4185 = vunpack.c.l.b16 %v4154
    %v4186 = vunpack.c.l.b16 %v4155
    %v4187 = vunpack.c.l.b16 %v4156
    %v4188 = vunpack.c.l.b16 %v4157
    %v4189 = vunpack.c.l.b16 %v4158
    %v4190 = vunpack.c.l.b16 %v4159
    %v4191 = vunpack.c.l.b16 %v4160
    %v4192 = vunpack.c.l.b16 %v4161
    %v4193 = vunpack.c.l.b16 %v4162
    %v4194 = vunpack.c.l.b16 %v4163
    %v4195 = vunpack.c.l.b16 %v4164
    %v4196 = vunpack.c.l.b16 %v4165
    %v4197 = vpack.c.b16 %v4183, %v4182
    %v4198 = vpack.c.b16 %v4185, %v4184
    %v4199 = vpack.c.b16 %v4187, %v4186
    %v4200 = vpack.c.b16 %v4189, %v4188
    %v4201 = vpack.c.b16 %v4191, %v4190
    %v4202 = vpack.c.b16 %v4193, %v4192
    %v4203 = vpack.c.b16 %v4195, %v4194
    %v4204 = vpack.c.b16 %v4196, %v4196
    %v4213 = vsel %vm2073, %v4150, 0
    %v4216 = vsel %vm571, %v4204, 0
    %4218 = vmatprep.subr.bf16.mxu0 0
    %4219 = vmatpush1.bf16.msra.mxu0 %v4216
    %4220 = vmatprep.subr.bf16.mxu0 0
    %4221 = vmatpush1.bf16.msra.mxu0 %v4203
    %4222 = vmatprep.subr.bf16.mxu0 0
    %4223 = vmatpush1.bf16.msra.mxu0 %v4202
    %4224 = vmatprep.subr.bf16.mxu0 0
    %4225 = vmatpush1.bf16.msra.mxu0 %v4201
    %4226 = vmatprep.subr.bf16.mxu0 0
    %4227 = vmatpush1.bf16.msra.mxu0 %v4200
    %4228 = vmatprep.subr.bf16.mxu0 0
    %4229 = vmatpush1.bf16.msra.mxu0 %v4199
    %4230 = vmatprep.subr.bf16.mxu0 0
    %4231 = vmatpush1.bf16.msra.mxu0 %v4198
    %4232 = vmatprep.subr.bf16.mxu0 0
    %4233 = vmatpush1.bf16.msra.mxu0 %v4197
    %4234 = vmatprep.subr.bf16.mxu0 0
    %4235 = vmatpush2.bf16.msra.mxu0 0
    %4236 = vmatprep.subr.bf16.mxu0 0
    %4237 = vmatpush2.bf16.msra.mxu0 0
    %4238 = vmatprep.subr.bf16.mxu0 0
    %4239 = vmatpush2.bf16.msra.mxu0 0
    %4240 = vmatprep.subr.bf16.mxu0 0
    %4241 = vmatpush2.bf16.msra.mxu0 0
    %4242 = vmatprep.subr.bf16.mxu0 0
    %4243 = vmatpush2.bf16.msra.mxu0 0
    %4244 = vmatprep.subr.bf16.mxu0 0
    %4245 = vmatpush2.bf16.msra.mxu0 0
    %4246 = vmatprep.subr.bf16.mxu0 0
    %4247 = vmatpush2.bf16.msra.mxu0 0
    %4248 = vmatprep.subr.bf16.mxu0 0
    %4249 = vmatpush2.bf16.msra.mxu0 0
    %4250 = vmatprep.mubr.bf16.mxu0 0
    %4251 = vmatmul.mubr.bf16.gmra.mxu0 %v4213
    %v4252 = vpop.f32.mrf.mxu0
    %v4253 = vadd.f32 %v4166, %v4252
    %v4254 = vpop.f32.mrf.mxu0
    %v4255 = vpop.f32.mrf.mxu0
    %v4256 = vpop.f32.mrf.mxu0
    %4257 = vdwg.mxu0
    %v4258 = vmax.f32 %v4253, 0.0
    %v4259 = vpack.c.bf16 %v4258, %v4258
    %v4260 = vld [vmem:[%s13] sm:$0xf]
    %v4261 = vld [vmem:[%s13 + $0x4] sm:$0xf]
    %v4262 = vld [vmem:[%s13 + $0x8] sm:$0xf]
    %v4263 = vld [vmem:[%s13 + $0xc] sm:$0xf]
    %v4264 = vld [vmem:[%s13 + $0x10] sm:$0xf]
    %v4265 = vld [vmem:[%s13 + $0x14] sm:$0xf]
    %v4266 = vld [vmem:[%s13 + $0x18] sm:$0xf]
    %v4267 = vld [vmem:[%s13 + $0x1c] sm:$0xf]
    %v4268 = vld [vmem:[%s13 + $0x20] sm:$0xf]
    %v4269 = vld [vmem:[%s13 + $0x24] sm:$0xf]
    %v4270 = vld [vmem:[%s13 + $0x28] sm:$0x3]
    %v4271 = vld [vmem:[%s14] sm:$0x1]
    %v4283 = vunpack.c.l.b16 %v4260
    %v4284 = vunpack.c.l.b16 %v4261
    %v4285 = vunpack.c.l.b16 %v4262
    %v4286 = vunpack.c.l.b16 %v4263
    %v4287 = vunpack.c.l.b16 %v4264
    %v4288 = vunpack.c.l.b16 %v4265
    %v4289 = vunpack.c.l.b16 %v4266
    %v4290 = vunpack.c.l.b16 %v4267
    %v4291 = vunpack.c.l.b16 %v4268
    %v4292 = vunpack.c.l.b16 %v4269
    %v4293 = vunpack.c.l.b16 %v4270
    %v4294 = vpack.c.b16 %v4284, %v4283
    %v4295 = vpack.c.b16 %v4286, %v4285
    %v4296 = vpack.c.b16 %v4288, %v4287
    %v4297 = vpack.c.b16 %v4290, %v4289
    %v4298 = vpack.c.b16 %v4292, %v4291
    %v4299 = vpack.c.b16 %v4293, %v4293
    %v4306 = vsel %vm844, %v4259, 0
    %v4309 = vsel %vm848, %v4299, 0
    %4311 = vmatprep.subr.bf16.mxu0 0
    %4312 = vmatpush1.bf16.msra.mxu0 0
    %4313 = vmatprep.subr.bf16.mxu0 0
    %4314 = vmatpush1.bf16.msra.mxu0 0
    %4315 = vmatprep.subr.bf16.mxu0 0
    %4316 = vmatpush1.bf16.msra.mxu0 %v4309
    %4317 = vmatprep.subr.bf16.mxu0 0
    %4318 = vmatpush1.bf16.msra.mxu0 %v4298
    %4319 = vmatprep.subr.bf16.mxu0 0
    %4320 = vmatpush1.bf16.msra.mxu0 %v4297
    %4321 = vmatprep.subr.bf16.mxu0 0
    %4322 = vmatpush1.bf16.msra.mxu0 %v4296
    %4323 = vmatprep.subr.bf16.mxu0 0
    %4324 = vmatpush1.bf16.msra.mxu0 %v4295
    %4325 = vmatprep.subr.bf16.mxu0 0
    %4326 = vmatpush1.bf16.msra.mxu0 %v4294
    %4327 = vmatprep.subr.bf16.mxu0 0
    %4328 = vmatpush2.bf16.msra.mxu0 0
    %4329 = vmatprep.subr.bf16.mxu0 0
    %4330 = vmatpush2.bf16.msra.mxu0 0
    %4331 = vmatprep.subr.bf16.mxu0 0
    %4332 = vmatpush2.bf16.msra.mxu0 0
    %4333 = vmatprep.subr.bf16.mxu0 0
    %4334 = vmatpush2.bf16.msra.mxu0 0
    %4335 = vmatprep.subr.bf16.mxu0 0
    %4336 = vmatpush2.bf16.msra.mxu0 0
    %4337 = vmatprep.subr.bf16.mxu0 0
    %4338 = vmatpush2.bf16.msra.mxu0 0
    %4339 = vmatprep.subr.bf16.mxu0 0
    %4340 = vmatpush2.bf16.msra.mxu0 0
    %4341 = vmatprep.subr.bf16.mxu0 0
    %4342 = vmatpush2.bf16.msra.mxu0 0
    %4343 = vmatprep.mubr.bf16.mxu0 0
    %4344 = vmatmul.mubr.bf16.gmra.mxu0 %v4306
    %v4345 = vpop.f32.mrf.mxu0
    %v4346 = vadd.f32 %v4271, %v4345
    %v4347 = vpop.f32.mrf.mxu0
    %v4348 = vpop.f32.mrf.mxu0
    %v4349 = vpop.f32.mrf.mxu0
    %4350 = vdwg.mxu0
    %4351 = vst [vmem:[#allocation2 + $0x1] sm:$0x1] %v4346
    // Predicated region
    $region62: #{lenet_forward.1} parent=1 // pred_check
      _
    $region63: #{lenet_forward.1} parent=1 // pred_check_branch
      %4353 = sbr.rel (0) target = $region65
    $region64: #{lenet_forward.1} parent=1 // pred_region
      %s4355 = ssub.s32 32, 32
      %4356 = vsyncadd [#allocation3], %s4355
      %s4358 = sshll.u32 [#allocation2], 4
      %s4359 = int_to_ptr.vmem [resolvable:$true] %s4358
      %4361 = dma.vmem_to_hbm [thread:$0]  %s4359, 32, %s15, [#allocation3]
    $region65: #{lenet_forward.1} parent=1 // pred_fallthru
      _
    // Predicated region
    $region66: #{lenet_forward.1} parent=1 // pred_check
      _
    $region67: #{lenet_forward.1} parent=1 // pred_check_branch
      %4363 = sbr.rel (0) target = $region69
    $region68: #{lenet_forward.1} parent=1 // pred_region
      %4364 = dma.done [#allocation3], 32
    $region69: #{lenet_forward.1} parent=1 // pred_fallthru
      _
    %4365 = vsyncpa [#allocation3], 1

</llo_original>
